<compile_context>
chip_gen: v7x
topology: tpu7x:2x2x1
jax: 0.10.0
libtpu: 0.0.40
codegen_flags: <defaults>
</compile_context>

<pallas_src>
import math

import jax
import jax.numpy as jnp
from jax import lax
from jax.experimental import pallas as pl
from jax.experimental.pallas import tpu as pltpu


# ----------------------------------------------------------------------------
# Small helpers (usable inside and outside the kernel).
# ----------------------------------------------------------------------------
def _round_up(x, m):
    return ((x + m - 1) // m) * m


def _gelu_tanh(x):
    c = math.sqrt(2.0 / math.pi)
    return 0.5 * x * (1.0 + jnp.tanh(c * (x + 0.044715 * x * x * x)))


def _softplus(x):
    return jnp.maximum(x, 0.0) + jnp.log(1.0 + jnp.exp(-jnp.abs(x)))


# ----------------------------------------------------------------------------
# Fused kernel: stacked GRU + MLP + beta-mixture head, one invocation.
# ----------------------------------------------------------------------------
def _make_fused_kernel(num_gru_layers, num_mlp_layers, Hp, T, Pp, F, Bblk,
                       return_sequences, unroll):
    L, M = num_gru_layers, num_mlp_layers
    n_w = 4 * L + 2 * M + 3          # first MLP layer split into (W_h, W_x, b)

    def kernel(*refs):
        x_ref, h0_ref = refs[0], refs[1]        # (T,Bblk,F), (L,Bblk,Hp)
        w_refs = refs[2:2 + n_w]
        hT_ref = refs[2 + n_w]                  # (L,Bblk,Hp)
        out_ref = refs[3 + n_w]                 # (T,Bblk,3Pp) or (Bblk,3Pp)
        seq_scr = refs[4 + n_w]                 # (T,Bblk,Hp)   f32 VMEM
        gx_scr = refs[5 + n_w]                  # (T,Bblk,3Hp)  f32 VMEM

        # ---- stacked GRU layers; inter-layer sequence stays in VMEM --------
        wpos = 0
        for layer in range(L):
            wih = w_refs[wpos][...]             # (F or Hp, 3Hp), gates r|z|n
            whh = w_refs[wpos + 1][...]         # (Hp, 3Hp)
            bx = w_refs[wpos + 2][...]          # (1, 3Hp) folded input biases
            bhn = w_refs[wpos + 3][...]         # (1, Hp)  bhh_n (inside r*())
            wpos += 4

            if layer == 0:
                # Layer-0 wih has zero rows for the regular features, so the
                # full (T*Bblk, F) slab can feed the projection directly.
                xin = x_ref[...].astype(jnp.float32).reshape(T * Bblk, F)
            else:
                xin = seq_scr[...].reshape(T * Bblk, Hp)
            # Hoisted input projection: one MXU-efficient matmul per layer.
            # (gx_scr reads complete before the time loop overwrites seq_scr.)
            gx_scr[...] = (
                jnp.dot(xin, wih, preferred_element_type=jnp.float32) + bx
            ).reshape(T, Bblk, 3 * Hp)

            bhn_b = jnp.broadcast_to(bhn, (Bblk, Hp))        # hoisted
            h0 = h0_ref[layer].astype(jnp.float32)           # (Bblk, Hp)

            def step(t, h, whh=whh, bhn_b=bhn_b):
                gx = gx_scr[t]                                # (Bblk, 3Hp)
                gh = jnp.dot(h, whh, preferred_element_type=jnp.float32)
                r = jax.nn.sigmoid(gx[:, :Hp] + gh[:, :Hp])
                z = jax.nn.sigmoid(gx[:, Hp:2 * Hp] + gh[:, Hp:2 * Hp])
                n = jnp.tanh(gx[:, 2 * Hp:] + r * (gh[:, 2 * Hp:] + bhn_b))
                h_new = (1.0 - z) * n + z * h
                seq_scr[t] = h_new
                return h_new

            h_last = lax.fori_loop(0, T, step, h0, unroll=unroll)
            hT_ref[layer] = h_last.astype(hT_ref.dtype)

        # ---- MLP + mixed-beta head (batched over timesteps if needed) ------
        w0_h = w_refs[wpos][...]                # (Hp, W0)
        w0_x = w_refs[wpos + 1][...]            # (F, W0), zero recurrent rows
        b0 = w_refs[wpos + 2][...]              # (1, W0)
        wpos += 3

        if return_sequences:
            hfeat = seq_scr[...].reshape(T * Bblk, Hp)
            xfeat = x_ref[...].astype(jnp.float32).reshape(T * Bblk, F)
        else:
            hfeat = seq_scr[T - 1]
            xfeat = x_ref[T - 1].astype(jnp.float32)

        # concat([gru_out, x_reg]) @ W0  ==  gru_out @ W_h + x_reg @ W_x
        h = _gelu_tanh(
            jnp.dot(hfeat, w0_h, preferred_element_type=jnp.float32)
            + jnp.dot(xfeat, w0_x, preferred_element_type=jnp.float32) + b0)
        pos = wpos
        for _ in range(M - 1):
            w = w_refs[pos][...]
            b = w_refs[pos + 1][...]
            pos += 2
            h = _gelu_tanh(jnp.dot(h, w, preferred_element_type=jnp.float32) + b)

        w_hd = w_refs[pos][...]                 # (prev, 3Pp): alpha|beta|logit
        b_hd = w_refs[pos + 1][...]             # (1, 3Pp); pad logit lanes=-1e30
        raw = jnp.dot(h, w_hd, preferred_element_type=jnp.float32) + b_hd
        alpha = _softplus(raw[:, :Pp]) + 1.0
        beta = _softplus(raw[:, Pp:2 * Pp]) + 1.0
        logits = raw[:, 2 * Pp:]                # padded lanes ~ -1e30 -> exp=0
        mx = jnp.max(logits, axis=-1, keepdims=True)
        e = jnp.exp(logits - mx)
        wts = e * pl.reciprocal(jnp.sum(e, axis=-1, keepdims=True), approx=True)
        out = jnp.concatenate([alpha, beta, wts], axis=-1)    # 128-aligned segs
        if return_sequences:
            out_ref[...] = out.reshape(T, Bblk, 3 * Pp).astype(out_ref.dtype)
        else:
            out_ref[...] = out.astype(out_ref.dtype)

    return kernel


# ----------------------------------------------------------------------------
# Parameter init (deterministic, PyTorch-style layouts).
# ----------------------------------------------------------------------------
def init_params(key, in_rec, in_reg, hidden, num_layers, linear_layers,
                num_peaks):
    n_keys = 4 * num_layers + 2 * len(linear_layers) + 8
    keys = iter(jax.random.split(key, n_keys))

    def u(shape, fan_in):
        bound = 1.0 / math.sqrt(fan_in)
        return jax.random.uniform(next(keys), shape, jnp.float32, -bound, bound)

    H = hidden
    gru = []
    for layer in range(num_layers):
        isz = in_rec if layer == 0 else H
        gru.append(dict(w_ih=u((3 * H, isz), H), w_hh=u((3 * H, H), H),
                        b_ih=u((3 * H,), H), b_hh=u((3 * H,), H)))

    mlp = []
    prev = H + in_reg
    for sz in linear_layers:
        mlp.append(dict(w=u((sz, prev), prev), b=u((sz,), prev)))
        prev = sz

    head = dict(wa=u((num_peaks, prev), prev), ba=u((num_peaks,), prev),
                wb=u((num_peaks, prev), prev), bb=u((num_peaks,), prev),
                ww=u((num_peaks, prev), prev), bw=u((num_peaks,), prev))
    return dict(gru=gru, mlp=mlp, head=head)


# ----------------------------------------------------------------------------
# Host-side packing into the lane-padded fused kernel layout.
# ----------------------------------------------------------------------------
def _pack_params(params, in_rec, H, Hp, P, Pp, F):
    flat = []
    for li, lp in enumerate(params["gru"]):
        I = in_rec if li == 0 else H
        I_k = F if li == 0 else Hp
        wih_k = jnp.zeros((I_k, 3 * Hp), jnp.float32)
        whh_k = jnp.zeros((Hp, 3 * Hp), jnp.float32)
        bx = jnp.zeros((1, 3 * Hp), jnp.float32)
        bhn = jnp.zeros((1, Hp), jnp.float32)
        w_ih, w_hh = lp["w_ih"], lp["w_hh"]
        b_ih, b_hh = lp["b_ih"], lp["b_hh"]
        for g in range(3):
            wih_k = wih_k.at[:I, g * Hp:g * Hp + H].set(
                w_ih[g * H:(g + 1) * H, :].T)
            whh_k = whh_k.at[:H, g * Hp:g * Hp + H].set(
                w_hh[g * H:(g + 1) * H, :].T)
        bx = bx.at[0, 0:H].set(b_ih[0:H] + b_hh[0:H])
        bx = bx.at[0, Hp:Hp + H].set(b_ih[H:2 * H] + b_hh[H:2 * H])
        bx = bx.at[0, 2 * Hp:2 * Hp + H].set(b_ih[2 * H:3 * H])
        bhn = bhn.at[0, 0:H].set(b_hh[2 * H:3 * H])
        flat += [wih_k, whh_k, bx, bhn]

    mlp0 = params["mlp"][0]
    W0 = mlp0["w"].shape[0]
    w0_h = jnp.zeros((Hp, W0), jnp.float32).at[:H, :].set(mlp0["w"][:, :H].T)
    w0_x = jnp.zeros((F, W0), jnp.float32).at[in_rec:, :].set(mlp0["w"][:, H:].T)
    flat += [w0_h, w0_x, mlp0["b"].reshape(1, W0)]
    for lp in params["mlp"][1:]:
        flat += [lp["w"].T, lp["b"].reshape(1, -1)]

    head = params["head"]
    prev = head["wa"].shape[1]
    w_hd = jnp.zeros((prev, 3 * Pp), jnp.float32)
    b_hd = jnp.zeros((1, 3 * Pp), jnp.float32)
    w_hd = w_hd.at[:, 0:P].set(head["wa"].T)
    w_hd = w_hd.at[:, Pp:Pp + P].set(head["wb"].T)
    w_hd = w_hd.at[:, 2 * Pp:2 * Pp + P].set(head["ww"].T)
    b_hd = b_hd.at[0, 0:P].set(head["ba"])
    b_hd = b_hd.at[0, Pp:Pp + P].set(head["bb"])
    b_hd = b_hd.at[0, 2 * Pp:2 * Pp + P].set(head["bw"])
    b_hd = b_hd.at[0, 2 * Pp + P:3 * Pp].set(-1e30)   # mask padded softmax lanes
    flat += [w_hd, b_hd]
    return flat


# ----------------------------------------------------------------------------
# Functional forward.
# ----------------------------------------------------------------------------
def split_gru_action_forward(params, x, in_rec, hidden_size, num_peaks,
                             hidden_state=None, return_sequences=False,
                             action_mask=None, batch_block=None):
    """x: (B, T, in_rec + in_reg) float32.  Returns (dist_dict, new_hidden)."""
    del action_mask  # TODO(synk): action_mask semantics of the head unknown.
    B, T, F = x.shape
    H = hidden_size
    P = num_peaks
    L = len(params["gru"])
    M = len(params["mlp"])
    Hp = _round_up(H, 128)        # lane-aligned gate / hidden width
    Pp = _round_up(P, 128)        # lane-aligned head segment width

    # Batch block: multiple of 8 (clean sublane tiles, free reshapes), target
    # 256 to fill the MXU M dim, capped so the (T,bb,Hp)+(T,bb,3Hp) f32
    # scratches stay well under v7x's 64 MiB VMEM.
    if batch_block is None or batch_block <= 0:
        bb = min(256, _round_up(B, 8))
    else:
        bb = max(8, _round_up(batch_block, 8))
    scratch_budget = 24 * 1024 * 1024
    while bb > 8 and T * bb * Hp * 16 > scratch_budget:
        bb -= 8
    B_pad = _round_up(B, bb)
    nb = B_pad // bb

    # Single time-major input stream (recurrent/regular split happens via zero
    # rows in the packed weights, not by slicing lanes in-kernel).
    x_tm = jnp.transpose(x, (1, 0, 2)).astype(jnp.float32)    # (T, B, F)
    if B_pad != B:
        x_tm = jnp.pad(x_tm, ((0, 0), (0, B_pad - B), (0, 0)))

    h0 = jnp.zeros((L, B_pad, Hp), jnp.float32)
    if hidden_state is not None:
        h0 = h0.at[:, :B, :H].set(hidden_state.astype(jnp.float32))

    flat = _pack_params(params, in_rec, H, Hp, P, Pp, F)

    def const_spec(shape):
        return pl.BlockSpec(tuple(shape), lambda b: (0,) * len(shape))

    in_specs = [
        pl.BlockSpec((T, bb, F), lambda b: (0, b, 0)),
        pl.BlockSpec((L, bb, Hp), lambda b: (0, b, 0)),
    ] + [const_spec(w.shape) for w in flat]

    if return_sequences:
        head_shape = (T, B_pad, 3 * Pp)
        head_spec = pl.BlockSpec((T, bb, 3 * Pp), lambda b: (0, b, 0))
    else:
        head_shape = (B_pad, 3 * Pp)
        head_spec = pl.BlockSpec((bb, 3 * Pp), lambda b: (b, 0))

    unroll = True if T <= 16 else 8
    kernel = _make_fused_kernel(L, M, Hp, T, Pp, F, bb, return_sequences,
                                unroll)

    hT, head_out = pl.pallas_call(
        kernel,
        out_shape=(jax.ShapeDtypeStruct((L, B_pad, Hp), jnp.float32),
                   jax.ShapeDtypeStruct(head_shape, jnp.float32)),
        grid_spec=pltpu.PrefetchScalarGridSpec(
            num_scalar_prefetch=0,
            grid=(nb,),
            in_specs=in_specs,
            out_specs=[
                pl.BlockSpec((L, bb, Hp), lambda b: (0, b, 0)),
                head_spec,
            ],
            scratch_shapes=[
                pltpu.VMEM((T, bb, Hp), jnp.float32),       # layer sequence
                pltpu.VMEM((T, bb, 3 * Hp), jnp.float32),   # hoisted gx
            ],
        ),
        compiler_params=pltpu.CompilerParams(
            dimension_semantics=("parallel",)),
    )(x_tm, h0, *flat)

    new_hidden = hT[:, :B, :H]
    if return_sequences:
        head_out = jnp.transpose(head_out, (1, 0, 2))[:B]     # (B, T, 3Pp)
        alphas = head_out[..., 0:P]
        betas = head_out[..., Pp:Pp + P]
        weights = head_out[..., 2 * Pp:2 * Pp + P]
    else:
        head_out = head_out[:B]
        alphas = head_out[:, 0:P]
        betas = head_out[:, Pp:Pp + P]
        weights = head_out[:, 2 * Pp:2 * Pp + P]

    dist = dict(beta_alphas=alphas, beta_betas=betas, beta_weights=weights)
    return dist, new_hidden


# ----------------------------------------------------------------------------
# Pure-JAX reference (PyTorch-style math) for correctness checks.
# ----------------------------------------------------------------------------
def _reference_forward(params, x, in_rec, H, P, hidden_state=None,
                       return_sequences=False):
    B, T, _ = x.shape
    x_rec = x[..., :in_rec]
    x_reg = x[..., in_rec:]
    seq = x_rec
    hs = []
    for li, lp in enumerate(params["gru"]):
        h = (jnp.zeros((B, H), jnp.float32) if hidden_state is None
             else hidden_state[li])
        outs = []
        for t in range(T):
            gx = seq[:, t] @ lp["w_ih"].T + lp["b_ih"]
            gh = h @ lp["w_hh"].T + lp["b_hh"]
            r = jax.nn.sigmoid(gx[:, :H] + gh[:, :H])
            z = jax.nn.sigmoid(gx[:, H:2 * H] + gh[:, H:2 * H])
            n = jnp.tanh(gx[:, 2 * H:] + r * gh[:, 2 * H:])
            h = (1.0 - z) * n + z * h
            outs.append(h)
        seq = jnp.stack(outs, axis=1)
        hs.append(h)
    if return_sequences:
        feat = jnp.concatenate([seq, x_reg], axis=-1)
    else:
        feat = jnp.concatenate([seq[:, -1], x_reg[:, -1]], axis=-1)
    hmid = feat
    for lp in params["mlp"]:
        hmid = _gelu_tanh(hmid @ lp["w"].T + lp["b"])
    head = params["head"]
    ra = hmid @ head["wa"].T + head["ba"]
    rb = hmid @ head["wb"].T + head["bb"]
    rw = hmid @ head["ww"].T + head["bw"]
    dist = dict(beta_alphas=_softplus(ra) + 1.0,
                beta_betas=_softplus(rb) + 1.0,
                beta_weights=jax.nn.softmax(rw, axis=-1))
    return dist, jnp.stack(hs, axis=0)


# ----------------------------------------------------------------------------
if __name__ == "__main__":
    IN_REC, IN_REG, HIDDEN = 16, 8, 32
    NUM_GRU_LAYERS = 2
    LINEAR_LAYERS = (64, 32)
    NUM_PEAKS = 3
    B, T = 4, 8

    params = init_params(jax.random.PRNGKey(0), IN_REC, IN_REG, HIDDEN,
                         NUM_GRU_LAYERS, LINEAR_LAYERS, NUM_PEAKS)
    x = jax.random.normal(jax.random.PRNGKey(0), (B, T, IN_REC + IN_REG),
                          dtype=jnp.float32)

    # ---- return_sequences=False (main path) ----
    dist, new_hidden = split_gru_action_forward(
        params, x, IN_REC, HIDDEN, NUM_PEAKS,
        hidden_state=None, return_sequences=False)
    jax.block_until_ready((dist["beta_alphas"], dist["beta_betas"],
                           dist["beta_weights"], new_hidden))

    assert dist["beta_alphas"].shape == (B, NUM_PEAKS)
    assert dist["beta_betas"].shape == (B, NUM_PEAKS)
    assert dist["beta_weights"].shape == (B, NUM_PEAKS)
    assert new_hidden.shape == (NUM_GRU_LAYERS, B, HIDDEN)
    assert bool(jnp.all(dist["beta_alphas"] > 1.0))
    assert bool(jnp.all(dist["beta_betas"] > 1.0))
    # approx reciprocal in the softmax denominator -> relaxed tolerance
    assert bool(jnp.allclose(jnp.sum(dist["beta_weights"], axis=-1), 1.0,
                             atol=5e-3))

    ref_dist, ref_hidden = _reference_forward(params, x, IN_REC, HIDDEN,
                                              NUM_PEAKS)
    assert bool(jnp.allclose(new_hidden, ref_hidden, atol=1e-3, rtol=1e-3))
    assert bool(jnp.allclose(dist["beta_alphas"], ref_dist["beta_alphas"],
                             atol=5e-3, rtol=5e-3))
    assert bool(jnp.allclose(dist["beta_betas"], ref_dist["beta_betas"],
                             atol=5e-3, rtol=5e-3))
    assert bool(jnp.allclose(dist["beta_weights"], ref_dist["beta_weights"],
                             atol=1e-2, rtol=1e-2))

    # ---- return_sequences=True (per-timestep head, batched over time) ----
    dist_seq, new_hidden_seq = split_gru_action_forward(
        params, x, IN_REC, HIDDEN, NUM_PEAKS,
        hidden_state=None, return_sequences=True)
    jax.block_until_ready((dist_seq["beta_alphas"], new_hidden_seq))
    assert dist_seq["beta_alphas"].shape == (B, T, NUM_PEAKS)
    assert dist_seq["beta_weights"].shape == (B, T, NUM_PEAKS)
    assert bool(jnp.allclose(new_hidden_seq, new_hidden, atol=1e-4, rtol=1e-4))

    ref_dist_seq, _ = _reference_forward(params, x, IN_REC, HIDDEN, NUM_PEAKS,
                                         return_sequences=True)
    assert bool(jnp.allclose(dist_seq["beta_alphas"],
                             ref_dist_seq["beta_alphas"],
                             atol=5e-3, rtol=5e-3))
    assert bool(jnp.allclose(dist_seq["beta_weights"],
                             ref_dist_seq["beta_weights"],
                             atol=1e-2, rtol=1e-2))
    assert bool(jnp.allclose(dist_seq["beta_alphas"][:, -1, :],
                             dist["beta_alphas"], atol=1e-3, rtol=1e-3))

    print("KERNEL_OK")
</pallas_src>

<mosaic_0001>
module attributes {stable_mosaic.version = 11 : i64} {
  func.func @kernel(%arg0: i32, %arg1: memref<8x8x24xf32, #tpu.memory_space<vmem>>, %arg2: memref<2x8x128xf32, #tpu.memory_space<vmem>>, %arg3: memref<24x384xf32, #tpu.memory_space<vmem>>, %arg4: memref<128x384xf32, #tpu.memory_space<vmem>>, %arg5: memref<1x384xf32, #tpu.memory_space<vmem>>, %arg6: memref<1x128xf32, #tpu.memory_space<vmem>>, %arg7: memref<128x384xf32, #tpu.memory_space<vmem>>, %arg8: memref<128x384xf32, #tpu.memory_space<vmem>>, %arg9: memref<1x384xf32, #tpu.memory_space<vmem>>, %arg10: memref<1x128xf32, #tpu.memory_space<vmem>>, %arg11: memref<128x64xf32, #tpu.memory_space<vmem>>, %arg12: memref<24x64xf32, #tpu.memory_space<vmem>>, %arg13: memref<1x64xf32, #tpu.memory_space<vmem>>, %arg14: memref<64x32xf32, #tpu.memory_space<vmem>>, %arg15: memref<1x32xf32, #tpu.memory_space<vmem>>, %arg16: memref<32x384xf32, #tpu.memory_space<vmem>>, %arg17: memref<1x384xf32, #tpu.memory_space<vmem>>, %arg18: memref<2x8x128xf32, #tpu.memory_space<vmem>>, %arg19: memref<8x384xf32, #tpu.memory_space<vmem>>, %arg20: memref<8x8x128xf32, #tpu.memory_space<vmem>>, %arg21: memref<8x8x384xf32, #tpu.memory_space<vmem>>) attributes {dimension_semantics = [#tpu.dimension_semantics<parallel>], iteration_bounds = array<i64: 1>, scalar_prefetch = 0 : i64, scratch_operands = 2 : i64, tpu.core_type = #tpu.core_type<tc>, window_params = [{transform_indices = @transform_0, window_bounds = array<i64: 8, 8, 24>}, {transform_indices = @transform_1, window_bounds = array<i64: 2, 8, 128>}, {pipeline_mode = #tpu.pipeline_mode<synchronous>, transform_indices = @transform_2, window_bounds = array<i64: 24, 384>}, {pipeline_mode = #tpu.pipeline_mode<synchronous>, transform_indices = @transform_3, window_bounds = array<i64: 128, 384>}, {pipeline_mode = #tpu.pipeline_mode<synchronous>, transform_indices = @transform_4, window_bounds = array<i64: 1, 384>}, {pipeline_mode = #tpu.pipeline_mode<synchronous>, transform_indices = @transform_5, window_bounds = array<i64: 1, 128>}, {pipeline_mode = #tpu.pipeline_mode<synchronous>, transform_indices = @transform_6, window_bounds = array<i64: 128, 384>}, {pipeline_mode = #tpu.pipeline_mode<synchronous>, transform_indices = @transform_7, window_bounds = array<i64: 128, 384>}, {pipeline_mode = #tpu.pipeline_mode<synchronous>, transform_indices = @transform_8, window_bounds = array<i64: 1, 384>}, {pipeline_mode = #tpu.pipeline_mode<synchronous>, transform_indices = @transform_9, window_bounds = array<i64: 1, 128>}, {pipeline_mode = #tpu.pipeline_mode<synchronous>, transform_indices = @transform_10, window_bounds = array<i64: 128, 64>}, {pipeline_mode = #tpu.pipeline_mode<synchronous>, transform_indices = @transform_11, window_bounds = array<i64: 24, 64>}, {pipeline_mode = #tpu.pipeline_mode<synchronous>, transform_indices = @transform_12, window_bounds = array<i64: 1, 64>}, {pipeline_mode = #tpu.pipeline_mode<synchronous>, transform_indices = @transform_13, window_bounds = array<i64: 64, 32>}, {pipeline_mode = #tpu.pipeline_mode<synchronous>, transform_indices = @transform_14, window_bounds = array<i64: 1, 32>}, {pipeline_mode = #tpu.pipeline_mode<synchronous>, transform_indices = @transform_15, window_bounds = array<i64: 32, 384>}, {pipeline_mode = #tpu.pipeline_mode<synchronous>, transform_indices = @transform_16, window_bounds = array<i64: 1, 384>}, {transform_indices = @transform_17, window_bounds = array<i64: 2, 8, 128>}, {transform_indices = @transform_18, window_bounds = array<i64: 8, 384>}]} {
    %c0 = arith.constant 0 : index
    %c0_0 = arith.constant 0 : index
    %0 = vector.load %arg3[%c0, %c0_0] : memref<24x384xf32, #tpu.memory_space<vmem>>, vector<24x384xf32>
    %c0_1 = arith.constant 0 : index
    %c0_2 = arith.constant 0 : index
    %1 = vector.load %arg4[%c0_1, %c0_2] : memref<128x384xf32, #tpu.memory_space<vmem>>, vector<128x384xf32>
    %c0_3 = arith.constant 0 : index
    %c0_4 = arith.constant 0 : index
    %2 = vector.load %arg5[%c0_3, %c0_4] : memref<1x384xf32, #tpu.memory_space<vmem>>, vector<1x384xf32>
    %c0_5 = arith.constant 0 : index
    %c0_6 = arith.constant 0 : index
    %3 = vector.load %arg6[%c0_5, %c0_6] : memref<1x128xf32, #tpu.memory_space<vmem>>, vector<1x128xf32>
    %c0_7 = arith.constant 0 : index
    %c0_8 = arith.constant 0 : index
    %c0_9 = arith.constant 0 : index
    %4 = vector.load %arg1[%c0_7, %c0_8, %c0_9] : memref<8x8x24xf32, #tpu.memory_space<vmem>>, vector<8x8x24xf32>
    %5 = vector.shape_cast %4 : vector<8x8x24xf32> to vector<64x24xf32>
    %cst = arith.constant dense<0.000000e+00> : vector<64x384xf32>
    %6 = tpu.matmul %5, %0, %cst {dimension_numbers = #tpu.dot_dimension_numbers<[1], [0], [0], [1], [0, 0, 1, 1], [], []>} : vector<64x24xf32>, vector<24x384xf32>, vector<64x384xf32> -> vector<64x384xf32>
    %7 = vector.broadcast %2 : vector<1x384xf32> to vector<64x384xf32>
    %8 = arith.addf %6, %7 : vector<64x384xf32>
    %9 = vector.shape_cast %8 : vector<64x384xf32> to vector<8x8x384xf32>
    %c0_10 = arith.constant 0 : index
    %c0_11 = arith.constant 0 : index
    %c0_12 = arith.constant 0 : index
    %10 = vector.load %arg21[%c0_10, %c0_11, %c0_12] : memref<8x8x384xf32, #tpu.memory_space<vmem>>, vector<8x8x384xf32>
    tpu.vector_store %arg21[%c0_10, %c0_11, %c0_12], %9 {strides = array<i32>} : memref<8x8x384xf32, #tpu.memory_space<vmem>>, vector<8x8x384xf32>,
    %11 = vector.shape_cast %3 : vector<1x128xf32> to vector<1x128xf32>
    %12 = vector.broadcast %11 : vector<1x128xf32> to vector<8x128xf32>
    %c0_13 = arith.constant 0 : index
    %c0_14 = arith.constant 0 : index
    %c0_15 = arith.constant 0 : index
    %13 = vector.load %arg2[%c0_13, %c0_14, %c0_15] : memref<2x8x128xf32, #tpu.memory_space<vmem>>, vector<1x8x128xf32>
    %14 = vector.shape_cast %13 : vector<1x8x128xf32> to vector<8x128xf32>
    %c0_i32 = arith.constant 0 : i32
    %15 = arith.index_cast %c0_i32 : i32 to index
    %c0_16 = arith.constant 0 : index
    %c0_17 = arith.constant 0 : index
    %16 = vector.load %arg21[%15, %c0_16, %c0_17] : memref<8x8x384xf32, #tpu.memory_space<vmem>>, vector<1x8x384xf32>
    %17 = vector.shape_cast %16 : vector<1x8x384xf32> to vector<8x384xf32>
    %cst_18 = arith.constant dense<0.000000e+00> : vector<8x384xf32>
    %18 = tpu.matmul %14, %1, %cst_18 {dimension_numbers = #tpu.dot_dimension_numbers<[1], [0], [0], [1], [0, 0, 1, 1], [], []>} : vector<8x128xf32>, vector<128x384xf32>, vector<8x384xf32> -> vector<8x384xf32>
    %19 = vector.extract_strided_slice %17 {offsets = [0, 0], sizes = [8, 128], strides = [1, 1]} : vector<8x384xf32> to vector<8x128xf32>
    %20 = vector.extract_strided_slice %18 {offsets = [0, 0], sizes = [8, 128], strides = [1, 1]} : vector<8x384xf32> to vector<8x128xf32>
    %21 = arith.addf %19, %20 : vector<8x128xf32>
    %22 = arith.negf %21 : vector<8x128xf32>
    %23 = math.exp %22 : vector<8x128xf32>
    %cst_19 = arith.constant 1.000000e+00 : f32
    %24 = vector.broadcast %cst_19 : f32 to vector<8x128xf32>
    %25 = arith.addf %24, %23 : vector<8x128xf32>
    %26 = arith.divf %24, %25 : vector<8x128xf32>
    %27 = vector.extract_strided_slice %17 {offsets = [0, 128], sizes = [8, 128], strides = [1, 1]} : vector<8x384xf32> to vector<8x128xf32>
    %28 = vector.extract_strided_slice %18 {offsets = [0, 128], sizes = [8, 128], strides = [1, 1]} : vector<8x384xf32> to vector<8x128xf32>
    %29 = arith.addf %27, %28 : vector<8x128xf32>
    %30 = arith.negf %29 : vector<8x128xf32>
    %31 = math.exp %30 : vector<8x128xf32>
    %cst_20 = arith.constant 1.000000e+00 : f32
    %32 = vector.broadcast %cst_20 : f32 to vector<8x128xf32>
    %33 = arith.addf %32, %31 : vector<8x128xf32>
    %34 = arith.divf %32, %33 : vector<8x128xf32>
    %35 = vector.extract_strided_slice %17 {offsets = [0, 256], sizes = [8, 128], strides = [1, 1]} : vector<8x384xf32> to vector<8x128xf32>
    %36 = vector.extract_strided_slice %18 {offsets = [0, 256], sizes = [8, 128], strides = [1, 1]} : vector<8x384xf32> to vector<8x128xf32>
    %37 = arith.addf %36, %12 : vector<8x128xf32>
    %38 = arith.mulf %26, %37 : vector<8x128xf32>
    %39 = arith.addf %35, %38 : vector<8x128xf32>
    %40 = math.tanh %39 : vector<8x128xf32>
    %cst_21 = arith.constant 1.000000e+00 : f32
    %41 = vector.broadcast %cst_21 : f32 to vector<8x128xf32>
    %42 = arith.subf %41, %34 : vector<8x128xf32>
    %43 = arith.mulf %42, %40 : vector<8x128xf32>
    %44 = arith.mulf %34, %14 : vector<8x128xf32>
    %45 = arith.addf %43, %44 : vector<8x128xf32>
    %46 = arith.index_cast %c0_i32 : i32 to index
    %c0_22 = arith.constant 0 : index
    %c0_23 = arith.constant 0 : index
    %47 = vector.load %arg20[%46, %c0_22, %c0_23] : memref<8x8x128xf32, #tpu.memory_space<vmem>>, vector<1x8x128xf32>
    %48 = vector.shape_cast %47 : vector<1x8x128xf32> to vector<8x128xf32>
    %49 = vector.shape_cast %45 : vector<8x128xf32> to vector<1x8x128xf32>
    tpu.vector_store %arg20[%46, %c0_22, %c0_23], %49 {strides = array<i32>} : memref<8x8x128xf32, #tpu.memory_space<vmem>>, vector<1x8x128xf32>,
    %c1_i32 = arith.constant 1 : i32
    %50 = arith.index_cast %c1_i32 : i32 to index
    %c0_24 = arith.constant 0 : index
    %c0_25 = arith.constant 0 : index
    %51 = vector.load %arg21[%50, %c0_24, %c0_25] : memref<8x8x384xf32, #tpu.memory_space<vmem>>, vector<1x8x384xf32>
    %52 = vector.shape_cast %51 : vector<1x8x384xf32> to vector<8x384xf32>
    %cst_26 = arith.constant dense<0.000000e+00> : vector<8x384xf32>
    %53 = tpu.matmul %45, %1, %cst_26 {dimension_numbers = #tpu.dot_dimension_numbers<[1], [0], [0], [1], [0, 0, 1, 1], [], []>} : vector<8x128xf32>, vector<128x384xf32>, vector<8x384xf32> -> vector<8x384xf32>
    %54 = vector.extract_strided_slice %52 {offsets = [0, 0], sizes = [8, 128], strides = [1, 1]} : vector<8x384xf32> to vector<8x128xf32>
    %55 = vector.extract_strided_slice %53 {offsets = [0, 0], sizes = [8, 128], strides = [1, 1]} : vector<8x384xf32> to vector<8x128xf32>
    %56 = arith.addf %54, %55 : vector<8x128xf32>
    %57 = arith.negf %56 : vector<8x128xf32>
    %58 = math.exp %57 : vector<8x128xf32>
    %cst_27 = arith.constant 1.000000e+00 : f32
    %59 = vector.broadcast %cst_27 : f32 to vector<8x128xf32>
    %60 = arith.addf %59, %58 : vector<8x128xf32>
    %61 = arith.divf %59, %60 : vector<8x128xf32>
    %62 = vector.extract_strided_slice %52 {offsets = [0, 128], sizes = [8, 128], strides = [1, 1]} : vector<8x384xf32> to vector<8x128xf32>
    %63 = vector.extract_strided_slice %53 {offsets = [0, 128], sizes = [8, 128], strides = [1, 1]} : vector<8x384xf32> to vector<8x128xf32>
    %64 = arith.addf %62, %63 : vector<8x128xf32>
    %65 = arith.negf %64 : vector<8x128xf32>
    %66 = math.exp %65 : vector<8x128xf32>
    %cst_28 = arith.constant 1.000000e+00 : f32
    %67 = vector.broadcast %cst_28 : f32 to vector<8x128xf32>
    %68 = arith.addf %67, %66 : vector<8x128xf32>
    %69 = arith.divf %67, %68 : vector<8x128xf32>
    %70 = vector.extract_strided_slice %52 {offsets = [0, 256], sizes = [8, 128], strides = [1, 1]} : vector<8x384xf32> to vector<8x128xf32>
    %71 = vector.extract_strided_slice %53 {offsets = [0, 256], sizes = [8, 128], strides = [1, 1]} : vector<8x384xf32> to vector<8x128xf32>
    %72 = arith.addf %71, %12 : vector<8x128xf32>
    %73 = arith.mulf %61, %72 : vector<8x128xf32>
    %74 = arith.addf %70, %73 : vector<8x128xf32>
    %75 = math.tanh %74 : vector<8x128xf32>
    %cst_29 = arith.constant 1.000000e+00 : f32
    %76 = vector.broadcast %cst_29 : f32 to vector<8x128xf32>
    %77 = arith.subf %76, %69 : vector<8x128xf32>
    %78 = arith.mulf %77, %75 : vector<8x128xf32>
    %79 = arith.mulf %69, %45 : vector<8x128xf32>
    %80 = arith.addf %78, %79 : vector<8x128xf32>
    %81 = arith.index_cast %c1_i32 : i32 to index
    %c0_30 = arith.constant 0 : index
    %c0_31 = arith.constant 0 : index
    %82 = vector.load %arg20[%81, %c0_30, %c0_31] : memref<8x8x128xf32, #tpu.memory_space<vmem>>, vector<1x8x128xf32>
    %83 = vector.shape_cast %82 : vector<1x8x128xf32> to vector<8x128xf32>
    %84 = vector.shape_cast %80 : vector<8x128xf32> to vector<1x8x128xf32>
    tpu.vector_store %arg20[%81, %c0_30, %c0_31], %84 {strides = array<i32>} : memref<8x8x128xf32, #tpu.memory_space<vmem>>, vector<1x8x128xf32>,
    %c2_i32 = arith.constant 2 : i32
    %85 = arith.index_cast %c2_i32 : i32 to index
    %c0_32 = arith.constant 0 : index
    %c0_33 = arith.constant 0 : index
    %86 = vector.load %arg21[%85, %c0_32, %c0_33] : memref<8x8x384xf32, #tpu.memory_space<vmem>>, vector<1x8x384xf32>
    %87 = vector.shape_cast %86 : vector<1x8x384xf32> to vector<8x384xf32>
    %cst_34 = arith.constant dense<0.000000e+00> : vector<8x384xf32>
    %88 = tpu.matmul %80, %1, %cst_34 {dimension_numbers = #tpu.dot_dimension_numbers<[1], [0], [0], [1], [0, 0, 1, 1], [], []>} : vector<8x128xf32>, vector<128x384xf32>, vector<8x384xf32> -> vector<8x384xf32>
    %89 = vector.extract_strided_slice %87 {offsets = [0, 0], sizes = [8, 128], strides = [1, 1]} : vector<8x384xf32> to vector<8x128xf32>
    %90 = vector.extract_strided_slice %88 {offsets = [0, 0], sizes = [8, 128], strides = [1, 1]} : vector<8x384xf32> to vector<8x128xf32>
    %91 = arith.addf %89, %90 : vector<8x128xf32>
    %92 = arith.negf %91 : vector<8x128xf32>
    %93 = math.exp %92 : vector<8x128xf32>
    %cst_35 = arith.constant 1.000000e+00 : f32
    %94 = vector.broadcast %cst_35 : f32 to vector<8x128xf32>
    %95 = arith.addf %94, %93 : vector<8x128xf32>
    %96 = arith.divf %94, %95 : vector<8x128xf32>
    %97 = vector.extract_strided_slice %87 {offsets = [0, 128], sizes = [8, 128], strides = [1, 1]} : vector<8x384xf32> to vector<8x128xf32>
    %98 = vector.extract_strided_slice %88 {offsets = [0, 128], sizes = [8, 128], strides = [1, 1]} : vector<8x384xf32> to vector<8x128xf32>
    %99 = arith.addf %97, %98 : vector<8x128xf32>
    %100 = arith.negf %99 : vector<8x128xf32>
    %101 = math.exp %100 : vector<8x128xf32>
    %cst_36 = arith.constant 1.000000e+00 : f32
    %102 = vector.broadcast %cst_36 : f32 to vector<8x128xf32>
    %103 = arith.addf %102, %101 : vector<8x128xf32>
    %104 = arith.divf %102, %103 : vector<8x128xf32>
    %105 = vector.extract_strided_slice %87 {offsets = [0, 256], sizes = [8, 128], strides = [1, 1]} : vector<8x384xf32> to vector<8x128xf32>
    %106 = vector.extract_strided_slice %88 {offsets = [0, 256], sizes = [8, 128], strides = [1, 1]} : vector<8x384xf32> to vector<8x128xf32>
    %107 = arith.addf %106, %12 : vector<8x128xf32>
    %108 = arith.mulf %96, %107 : vector<8x128xf32>
    %109 = arith.addf %105, %108 : vector<8x128xf32>
    %110 = math.tanh %109 : vector<8x128xf32>
    %cst_37 = arith.constant 1.000000e+00 : f32
    %111 = vector.broadcast %cst_37 : f32 to vector<8x128xf32>
    %112 = arith.subf %111, %104 : vector<8x128xf32>
    %113 = arith.mulf %112, %110 : vector<8x128xf32>
    %114 = arith.mulf %104, %80 : vector<8x128xf32>
    %115 = arith.addf %113, %114 : vector<8x128xf32>
    %116 = arith.index_cast %c2_i32 : i32 to index
    %c0_38 = arith.constant 0 : index
    %c0_39 = arith.constant 0 : index
    %117 = vector.load %arg20[%116, %c0_38, %c0_39] : memref<8x8x128xf32, #tpu.memory_space<vmem>>, vector<1x8x128xf32>
    %118 = vector.shape_cast %117 : vector<1x8x128xf32> to vector<8x128xf32>
    %119 = vector.shape_cast %115 : vector<8x128xf32> to vector<1x8x128xf32>
    tpu.vector_store %arg20[%116, %c0_38, %c0_39], %119 {strides = array<i32>} : memref<8x8x128xf32, #tpu.memory_space<vmem>>, vector<1x8x128xf32>,
    %c3_i32 = arith.constant 3 : i32
    %120 = arith.index_cast %c3_i32 : i32 to index
    %c0_40 = arith.constant 0 : index
    %c0_41 = arith.constant 0 : index
    %121 = vector.load %arg21[%120, %c0_40, %c0_41] : memref<8x8x384xf32, #tpu.memory_space<vmem>>, vector<1x8x384xf32>
    %122 = vector.shape_cast %121 : vector<1x8x384xf32> to vector<8x384xf32>
    %cst_42 = arith.constant dense<0.000000e+00> : vector<8x384xf32>
    %123 = tpu.matmul %115, %1, %cst_42 {dimension_numbers = #tpu.dot_dimension_numbers<[1], [0], [0], [1], [0, 0, 1, 1], [], []>} : vector<8x128xf32>, vector<128x384xf32>, vector<8x384xf32> -> vector<8x384xf32>
    %124 = vector.extract_strided_slice %122 {offsets = [0, 0], sizes = [8, 128], strides = [1, 1]} : vector<8x384xf32> to vector<8x128xf32>
    %125 = vector.extract_strided_slice %123 {offsets = [0, 0], sizes = [8, 128], strides = [1, 1]} : vector<8x384xf32> to vector<8x128xf32>
    %126 = arith.addf %124, %125 : vector<8x128xf32>
    %127 = arith.negf %126 : vector<8x128xf32>
    %128 = math.exp %127 : vector<8x128xf32>
    %cst_43 = arith.constant 1.000000e+00 : f32
    %129 = vector.broadcast %cst_43 : f32 to vector<8x128xf32>
    %130 = arith.addf %129, %128 : vector<8x128xf32>
    %131 = arith.divf %129, %130 : vector<8x128xf32>
    %132 = vector.extract_strided_slice %122 {offsets = [0, 128], sizes = [8, 128], strides = [1, 1]} : vector<8x384xf32> to vector<8x128xf32>
    %133 = vector.extract_strided_slice %123 {offsets = [0, 128], sizes = [8, 128], strides = [1, 1]} : vector<8x384xf32> to vector<8x128xf32>
    %134 = arith.addf %132, %133 : vector<8x128xf32>
    %135 = arith.negf %134 : vector<8x128xf32>
    %136 = math.exp %135 : vector<8x128xf32>
    %cst_44 = arith.constant 1.000000e+00 : f32
    %137 = vector.broadcast %cst_44 : f32 to vector<8x128xf32>
    %138 = arith.addf %137, %136 : vector<8x128xf32>
    %139 = arith.divf %137, %138 : vector<8x128xf32>
    %140 = vector.extract_strided_slice %122 {offsets = [0, 256], sizes = [8, 128], strides = [1, 1]} : vector<8x384xf32> to vector<8x128xf32>
    %141 = vector.extract_strided_slice %123 {offsets = [0, 256], sizes = [8, 128], strides = [1, 1]} : vector<8x384xf32> to vector<8x128xf32>
    %142 = arith.addf %141, %12 : vector<8x128xf32>
    %143 = arith.mulf %131, %142 : vector<8x128xf32>
    %144 = arith.addf %140, %143 : vector<8x128xf32>
    %145 = math.tanh %144 : vector<8x128xf32>
    %cst_45 = arith.constant 1.000000e+00 : f32
    %146 = vector.broadcast %cst_45 : f32 to vector<8x128xf32>
    %147 = arith.subf %146, %139 : vector<8x128xf32>
    %148 = arith.mulf %147, %145 : vector<8x128xf32>
    %149 = arith.mulf %139, %115 : vector<8x128xf32>
    %150 = arith.addf %148, %149 : vector<8x128xf32>
    %151 = arith.index_cast %c3_i32 : i32 to index
    %c0_46 = arith.constant 0 : index
    %c0_47 = arith.constant 0 : index
    %152 = vector.load %arg20[%151, %c0_46, %c0_47] : memref<8x8x128xf32, #tpu.memory_space<vmem>>, vector<1x8x128xf32>
    %153 = vector.shape_cast %152 : vector<1x8x128xf32> to vector<8x128xf32>
    %154 = vector.shape_cast %150 : vector<8x128xf32> to vector<1x8x128xf32>
    tpu.vector_store %arg20[%151, %c0_46, %c0_47], %154 {strides = array<i32>} : memref<8x8x128xf32, #tpu.memory_space<vmem>>, vector<1x8x128xf32>,
    %c4_i32 = arith.constant 4 : i32
    %155 = arith.index_cast %c4_i32 : i32 to index
    %c0_48 = arith.constant 0 : index
    %c0_49 = arith.constant 0 : index
    %156 = vector.load %arg21[%155, %c0_48, %c0_49] : memref<8x8x384xf32, #tpu.memory_space<vmem>>, vector<1x8x384xf32>
    %157 = vector.shape_cast %156 : vector<1x8x384xf32> to vector<8x384xf32>
    %cst_50 = arith.constant dense<0.000000e+00> : vector<8x384xf32>
    %158 = tpu.matmul %150, %1, %cst_50 {dimension_numbers = #tpu.dot_dimension_numbers<[1], [0], [0], [1], [0, 0, 1, 1], [], []>} : vector<8x128xf32>, vector<128x384xf32>, vector<8x384xf32> -> vector<8x384xf32>
    %159 = vector.extract_strided_slice %157 {offsets = [0, 0], sizes = [8, 128], strides = [1, 1]} : vector<8x384xf32> to vector<8x128xf32>
    %160 = vector.extract_strided_slice %158 {offsets = [0, 0], sizes = [8, 128], strides = [1, 1]} : vector<8x384xf32> to vector<8x128xf32>
    %161 = arith.addf %159, %160 : vector<8x128xf32>
    %162 = arith.negf %161 : vector<8x128xf32>
    %163 = math.exp %162 : vector<8x128xf32>
    %cst_51 = arith.constant 1.000000e+00 : f32
    %164 = vector.broadcast %cst_51 : f32 to vector<8x128xf32>
    %165 = arith.addf %164, %163 : vector<8x128xf32>
    %166 = arith.divf %164, %165 : vector<8x128xf32>
    %167 = vector.extract_strided_slice %157 {offsets = [0, 128], sizes = [8, 128], strides = [1, 1]} : vector<8x384xf32> to vector<8x128xf32>
    %168 = vector.extract_strided_slice %158 {offsets = [0, 128], sizes = [8, 128], strides = [1, 1]} : vector<8x384xf32> to vector<8x128xf32>
    %169 = arith.addf %167, %168 : vector<8x128xf32>
    %170 = arith.negf %169 : vector<8x128xf32>
    %171 = math.exp %170 : vector<8x128xf32>
    %cst_52 = arith.constant 1.000000e+00 : f32
    %172 = vector.broadcast %cst_52 : f32 to vector<8x128xf32>
    %173 = arith.addf %172, %171 : vector<8x128xf32>
    %174 = arith.divf %172, %173 : vector<8x128xf32>
    %175 = vector.extract_strided_slice %157 {offsets = [0, 256], sizes = [8, 128], strides = [1, 1]} : vector<8x384xf32> to vector<8x128xf32>
    %176 = vector.extract_strided_slice %158 {offsets = [0, 256], sizes = [8, 128], strides = [1, 1]} : vector<8x384xf32> to vector<8x128xf32>
    %177 = arith.addf %176, %12 : vector<8x128xf32>
    %178 = arith.mulf %166, %177 : vector<8x128xf32>
    %179 = arith.addf %175, %178 : vector<8x128xf32>
    %180 = math.tanh %179 : vector<8x128xf32>
    %cst_53 = arith.constant 1.000000e+00 : f32
    %181 = vector.broadcast %cst_53 : f32 to vector<8x128xf32>
    %182 = arith.subf %181, %174 : vector<8x128xf32>
    %183 = arith.mulf %182, %180 : vector<8x128xf32>
    %184 = arith.mulf %174, %150 : vector<8x128xf32>
    %185 = arith.addf %183, %184 : vector<8x128xf32>
    %186 = arith.index_cast %c4_i32 : i32 to index
    %c0_54 = arith.constant 0 : index
    %c0_55 = arith.constant 0 : index
    %187 = vector.load %arg20[%186, %c0_54, %c0_55] : memref<8x8x128xf32, #tpu.memory_space<vmem>>, vector<1x8x128xf32>
    %188 = vector.shape_cast %187 : vector<1x8x128xf32> to vector<8x128xf32>
    %189 = vector.shape_cast %185 : vector<8x128xf32> to vector<1x8x128xf32>
    tpu.vector_store %arg20[%186, %c0_54, %c0_55], %189 {strides = array<i32>} : memref<8x8x128xf32, #tpu.memory_space<vmem>>, vector<1x8x128xf32>,
    %c5_i32 = arith.constant 5 : i32
    %190 = arith.index_cast %c5_i32 : i32 to index
    %c0_56 = arith.constant 0 : index
    %c0_57 = arith.constant 0 : index
    %191 = vector.load %arg21[%190, %c0_56, %c0_57] : memref<8x8x384xf32, #tpu.memory_space<vmem>>, vector<1x8x384xf32>
    %192 = vector.shape_cast %191 : vector<1x8x384xf32> to vector<8x384xf32>
    %cst_58 = arith.constant dense<0.000000e+00> : vector<8x384xf32>
    %193 = tpu.matmul %185, %1, %cst_58 {dimension_numbers = #tpu.dot_dimension_numbers<[1], [0], [0], [1], [0, 0, 1, 1], [], []>} : vector<8x128xf32>, vector<128x384xf32>, vector<8x384xf32> -> vector<8x384xf32>
    %194 = vector.extract_strided_slice %192 {offsets = [0, 0], sizes = [8, 128], strides = [1, 1]} : vector<8x384xf32> to vector<8x128xf32>
    %195 = vector.extract_strided_slice %193 {offsets = [0, 0], sizes = [8, 128], strides = [1, 1]} : vector<8x384xf32> to vector<8x128xf32>
    %196 = arith.addf %194, %195 : vector<8x128xf32>
    %197 = arith.negf %196 : vector<8x128xf32>
    %198 = math.exp %197 : vector<8x128xf32>
    %cst_59 = arith.constant 1.000000e+00 : f32
    %199 = vector.broadcast %cst_59 : f32 to vector<8x128xf32>
    %200 = arith.addf %199, %198 : vector<8x128xf32>
    %201 = arith.divf %199, %200 : vector<8x128xf32>
    %202 = vector.extract_strided_slice %192 {offsets = [0, 128], sizes = [8, 128], strides = [1, 1]} : vector<8x384xf32> to vector<8x128xf32>
    %203 = vector.extract_strided_slice %193 {offsets = [0, 128], sizes = [8, 128], strides = [1, 1]} : vector<8x384xf32> to vector<8x128xf32>
    %204 = arith.addf %202, %203 : vector<8x128xf32>
    %205 = arith.negf %204 : vector<8x128xf32>
    %206 = math.exp %205 : vector<8x128xf32>
    %cst_60 = arith.constant 1.000000e+00 : f32
    %207 = vector.broadcast %cst_60 : f32 to vector<8x128xf32>
    %208 = arith.addf %207, %206 : vector<8x128xf32>
    %209 = arith.divf %207, %208 : vector<8x128xf32>
    %210 = vector.extract_strided_slice %192 {offsets = [0, 256], sizes = [8, 128], strides = [1, 1]} : vector<8x384xf32> to vector<8x128xf32>
    %211 = vector.extract_strided_slice %193 {offsets = [0, 256], sizes = [8, 128], strides = [1, 1]} : vector<8x384xf32> to vector<8x128xf32>
    %212 = arith.addf %211, %12 : vector<8x128xf32>
    %213 = arith.mulf %201, %212 : vector<8x128xf32>
    %214 = arith.addf %210, %213 : vector<8x128xf32>
    %215 = math.tanh %214 : vector<8x128xf32>
    %cst_61 = arith.constant 1.000000e+00 : f32
    %216 = vector.broadcast %cst_61 : f32 to vector<8x128xf32>
    %217 = arith.subf %216, %209 : vector<8x128xf32>
    %218 = arith.mulf %217, %215 : vector<8x128xf32>
    %219 = arith.mulf %209, %185 : vector<8x128xf32>
    %220 = arith.addf %218, %219 : vector<8x128xf32>
    %221 = arith.index_cast %c5_i32 : i32 to index
    %c0_62 = arith.constant 0 : index
    %c0_63 = arith.constant 0 : index
    %222 = vector.load %arg20[%221, %c0_62, %c0_63] : memref<8x8x128xf32, #tpu.memory_space<vmem>>, vector<1x8x128xf32>
    %223 = vector.shape_cast %222 : vector<1x8x128xf32> to vector<8x128xf32>
    %224 = vector.shape_cast %220 : vector<8x128xf32> to vector<1x8x128xf32>
    tpu.vector_store %arg20[%221, %c0_62, %c0_63], %224 {strides = array<i32>} : memref<8x8x128xf32, #tpu.memory_space<vmem>>, vector<1x8x128xf32>,
    %c6_i32 = arith.constant 6 : i32
    %225 = arith.index_cast %c6_i32 : i32 to index
    %c0_64 = arith.constant 0 : index
    %c0_65 = arith.constant 0 : index
    %226 = vector.load %arg21[%225, %c0_64, %c0_65] : memref<8x8x384xf32, #tpu.memory_space<vmem>>, vector<1x8x384xf32>
    %227 = vector.shape_cast %226 : vector<1x8x384xf32> to vector<8x384xf32>
    %cst_66 = arith.constant dense<0.000000e+00> : vector<8x384xf32>
    %228 = tpu.matmul %220, %1, %cst_66 {dimension_numbers = #tpu.dot_dimension_numbers<[1], [0], [0], [1], [0, 0, 1, 1], [], []>} : vector<8x128xf32>, vector<128x384xf32>, vector<8x384xf32> -> vector<8x384xf32>
    %229 = vector.extract_strided_slice %227 {offsets = [0, 0], sizes = [8, 128], strides = [1, 1]} : vector<8x384xf32> to vector<8x128xf32>
    %230 = vector.extract_strided_slice %228 {offsets = [0, 0], sizes = [8, 128], strides = [1, 1]} : vector<8x384xf32> to vector<8x128xf32>
    %231 = arith.addf %229, %230 : vector<8x128xf32>
    %232 = arith.negf %231 : vector<8x128xf32>
    %233 = math.exp %232 : vector<8x128xf32>
    %cst_67 = arith.constant 1.000000e+00 : f32
    %234 = vector.broadcast %cst_67 : f32 to vector<8x128xf32>
    %235 = arith.addf %234, %233 : vector<8x128xf32>
    %236 = arith.divf %234, %235 : vector<8x128xf32>
    %237 = vector.extract_strided_slice %227 {offsets = [0, 128], sizes = [8, 128], strides = [1, 1]} : vector<8x384xf32> to vector<8x128xf32>
    %238 = vector.extract_strided_slice %228 {offsets = [0, 128], sizes = [8, 128], strides = [1, 1]} : vector<8x384xf32> to vector<8x128xf32>
    %239 = arith.addf %237, %238 : vector<8x128xf32>
    %240 = arith.negf %239 : vector<8x128xf32>
    %241 = math.exp %240 : vector<8x128xf32>
    %cst_68 = arith.constant 1.000000e+00 : f32
    %242 = vector.broadcast %cst_68 : f32 to vector<8x128xf32>
    %243 = arith.addf %242, %241 : vector<8x128xf32>
    %244 = arith.divf %242, %243 : vector<8x128xf32>
    %245 = vector.extract_strided_slice %227 {offsets = [0, 256], sizes = [8, 128], strides = [1, 1]} : vector<8x384xf32> to vector<8x128xf32>
    %246 = vector.extract_strided_slice %228 {offsets = [0, 256], sizes = [8, 128], strides = [1, 1]} : vector<8x384xf32> to vector<8x128xf32>
    %247 = arith.addf %246, %12 : vector<8x128xf32>
    %248 = arith.mulf %236, %247 : vector<8x128xf32>
    %249 = arith.addf %245, %248 : vector<8x128xf32>
    %250 = math.tanh %249 : vector<8x128xf32>
    %cst_69 = arith.constant 1.000000e+00 : f32
    %251 = vector.broadcast %cst_69 : f32 to vector<8x128xf32>
    %252 = arith.subf %251, %244 : vector<8x128xf32>
    %253 = arith.mulf %252, %250 : vector<8x128xf32>
    %254 = arith.mulf %244, %220 : vector<8x128xf32>
    %255 = arith.addf %253, %254 : vector<8x128xf32>
    %256 = arith.index_cast %c6_i32 : i32 to index
    %c0_70 = arith.constant 0 : index
    %c0_71 = arith.constant 0 : index
    %257 = vector.load %arg20[%256, %c0_70, %c0_71] : memref<8x8x128xf32, #tpu.memory_space<vmem>>, vector<1x8x128xf32>
    %258 = vector.shape_cast %257 : vector<1x8x128xf32> to vector<8x128xf32>
    %259 = vector.shape_cast %255 : vector<8x128xf32> to vector<1x8x128xf32>
    tpu.vector_store %arg20[%256, %c0_70, %c0_71], %259 {strides = array<i32>} : memref<8x8x128xf32, #tpu.memory_space<vmem>>, vector<1x8x128xf32>,
    %c7_i32 = arith.constant 7 : i32
    %260 = arith.index_cast %c7_i32 : i32 to index
    %c0_72 = arith.constant 0 : index
    %c0_73 = arith.constant 0 : index
    %261 = vector.load %arg21[%260, %c0_72, %c0_73] : memref<8x8x384xf32, #tpu.memory_space<vmem>>, vector<1x8x384xf32>
    %262 = vector.shape_cast %261 : vector<1x8x384xf32> to vector<8x384xf32>
    %cst_74 = arith.constant dense<0.000000e+00> : vector<8x384xf32>
    %263 = tpu.matmul %255, %1, %cst_74 {dimension_numbers = #tpu.dot_dimension_numbers<[1], [0], [0], [1], [0, 0, 1, 1], [], []>} : vector<8x128xf32>, vector<128x384xf32>, vector<8x384xf32> -> vector<8x384xf32>
    %264 = vector.extract_strided_slice %262 {offsets = [0, 0], sizes = [8, 128], strides = [1, 1]} : vector<8x384xf32> to vector<8x128xf32>
    %265 = vector.extract_strided_slice %263 {offsets = [0, 0], sizes = [8, 128], strides = [1, 1]} : vector<8x384xf32> to vector<8x128xf32>
    %266 = arith.addf %264, %265 : vector<8x128xf32>
    %267 = arith.negf %266 : vector<8x128xf32>
    %268 = math.exp %267 : vector<8x128xf32>
    %cst_75 = arith.constant 1.000000e+00 : f32
    %269 = vector.broadcast %cst_75 : f32 to vector<8x128xf32>
    %270 = arith.addf %269, %268 : vector<8x128xf32>
    %271 = arith.divf %269, %270 : vector<8x128xf32>
    %272 = vector.extract_strided_slice %262 {offsets = [0, 128], sizes = [8, 128], strides = [1, 1]} : vector<8x384xf32> to vector<8x128xf32>
    %273 = vector.extract_strided_slice %263 {offsets = [0, 128], sizes = [8, 128], strides = [1, 1]} : vector<8x384xf32> to vector<8x128xf32>
    %274 = arith.addf %272, %273 : vector<8x128xf32>
    %275 = arith.negf %274 : vector<8x128xf32>
    %276 = math.exp %275 : vector<8x128xf32>
    %cst_76 = arith.constant 1.000000e+00 : f32
    %277 = vector.broadcast %cst_76 : f32 to vector<8x128xf32>
    %278 = arith.addf %277, %276 : vector<8x128xf32>
    %279 = arith.divf %277, %278 : vector<8x128xf32>
    %280 = vector.extract_strided_slice %262 {offsets = [0, 256], sizes = [8, 128], strides = [1, 1]} : vector<8x384xf32> to vector<8x128xf32>
    %281 = vector.extract_strided_slice %263 {offsets = [0, 256], sizes = [8, 128], strides = [1, 1]} : vector<8x384xf32> to vector<8x128xf32>
    %282 = arith.addf %281, %12 : vector<8x128xf32>
    %283 = arith.mulf %271, %282 : vector<8x128xf32>
    %284 = arith.addf %280, %283 : vector<8x128xf32>
    %285 = math.tanh %284 : vector<8x128xf32>
    %cst_77 = arith.constant 1.000000e+00 : f32
    %286 = vector.broadcast %cst_77 : f32 to vector<8x128xf32>
    %287 = arith.subf %286, %279 : vector<8x128xf32>
    %288 = arith.mulf %287, %285 : vector<8x128xf32>
    %289 = arith.mulf %279, %255 : vector<8x128xf32>
    %290 = arith.addf %288, %289 : vector<8x128xf32>
    %291 = arith.index_cast %c7_i32 : i32 to index
    %c0_78 = arith.constant 0 : index
    %c0_79 = arith.constant 0 : index
    %292 = vector.load %arg20[%291, %c0_78, %c0_79] : memref<8x8x128xf32, #tpu.memory_space<vmem>>, vector<1x8x128xf32>
    %293 = vector.shape_cast %292 : vector<1x8x128xf32> to vector<8x128xf32>
    %294 = vector.shape_cast %290 : vector<8x128xf32> to vector<1x8x128xf32>
    tpu.vector_store %arg20[%291, %c0_78, %c0_79], %294 {strides = array<i32>} : memref<8x8x128xf32, #tpu.memory_space<vmem>>, vector<1x8x128xf32>,
    %c8_i32 = arith.constant 8 : i32
    %c0_80 = arith.constant 0 : index
    %c0_81 = arith.constant 0 : index
    %c0_82 = arith.constant 0 : index
    %295 = vector.load %arg18[%c0_80, %c0_81, %c0_82] : memref<2x8x128xf32, #tpu.memory_space<vmem>>, vector<1x8x128xf32>
    %296 = vector.shape_cast %295 : vector<1x8x128xf32> to vector<8x128xf32>
    %297 = vector.shape_cast %290 : vector<8x128xf32> to vector<1x8x128xf32>
    tpu.vector_store %arg18[%c0_80, %c0_81, %c0_82], %297 {strides = array<i32>} : memref<2x8x128xf32, #tpu.memory_space<vmem>>, vector<1x8x128xf32>,
    %c0_83 = arith.constant 0 : index
    %c0_84 = arith.constant 0 : index
    %298 = vector.load %arg7[%c0_83, %c0_84] : memref<128x384xf32, #tpu.memory_space<vmem>>, vector<128x384xf32>
    %c0_85 = arith.constant 0 : index
    %c0_86 = arith.constant 0 : index
    %299 = vector.load %arg8[%c0_85, %c0_86] : memref<128x384xf32, #tpu.memory_space<vmem>>, vector<128x384xf32>
    %c0_87 = arith.constant 0 : index
    %c0_88 = arith.constant 0 : index
    %300 = vector.load %arg9[%c0_87, %c0_88] : memref<1x384xf32, #tpu.memory_space<vmem>>, vector<1x384xf32>
    %c0_89 = arith.constant 0 : index
    %c0_90 = arith.constant 0 : index
    %301 = vector.load %arg10[%c0_89, %c0_90] : memref<1x128xf32, #tpu.memory_space<vmem>>, vector<1x128xf32>
    %c0_91 = arith.constant 0 : index
    %c0_92 = arith.constant 0 : index
    %c0_93 = arith.constant 0 : index
    %302 = vector.load %arg20[%c0_91, %c0_92, %c0_93] : memref<8x8x128xf32, #tpu.memory_space<vmem>>, vector<8x8x128xf32>
    %303 = vector.shape_cast %302 : vector<8x8x128xf32> to vector<64x128xf32>
    %cst_94 = arith.constant dense<0.000000e+00> : vector<64x384xf32>
    %304 = tpu.matmul %303, %298, %cst_94 {dimension_numbers = #tpu.dot_dimension_numbers<[1], [0], [0], [1], [0, 0, 1, 1], [], []>} : vector<64x128xf32>, vector<128x384xf32>, vector<64x384xf32> -> vector<64x384xf32>
    %305 = vector.broadcast %300 : vector<1x384xf32> to vector<64x384xf32>
    %306 = arith.addf %304, %305 : vector<64x384xf32>
    %307 = vector.shape_cast %306 : vector<64x384xf32> to vector<8x8x384xf32>
    %c0_95 = arith.constant 0 : index
    %c0_96 = arith.constant 0 : index
    %c0_97 = arith.constant 0 : index
    %308 = vector.load %arg21[%c0_95, %c0_96, %c0_97] : memref<8x8x384xf32, #tpu.memory_space<vmem>>, vector<8x8x384xf32>
    tpu.vector_store %arg21[%c0_95, %c0_96, %c0_97], %307 {strides = array<i32>} : memref<8x8x384xf32, #tpu.memory_space<vmem>>, vector<8x8x384xf32>,
    %309 = vector.shape_cast %301 : vector<1x128xf32> to vector<1x128xf32>
    %310 = vector.broadcast %309 : vector<1x128xf32> to vector<8x128xf32>
    %c1 = arith.constant 1 : index
    %c0_98 = arith.constant 0 : index
    %c0_99 = arith.constant 0 : index
    %311 = vector.load %arg2[%c1, %c0_98, %c0_99] : memref<2x8x128xf32, #tpu.memory_space<vmem>>, vector<1x8x128xf32>
    %312 = vector.shape_cast %311 : vector<1x8x128xf32> to vector<8x128xf32>
    %c0_i32_100 = arith.constant 0 : i32
    %313 = arith.index_cast %c0_i32_100 : i32 to index
    %c0_101 = arith.constant 0 : index
    %c0_102 = arith.constant 0 : index
    %314 = vector.load %arg21[%313, %c0_101, %c0_102] : memref<8x8x384xf32, #tpu.memory_space<vmem>>, vector<1x8x384xf32>
    %315 = vector.shape_cast %314 : vector<1x8x384xf32> to vector<8x384xf32>
    %cst_103 = arith.constant dense<0.000000e+00> : vector<8x384xf32>
    %316 = tpu.matmul %312, %299, %cst_103 {dimension_numbers = #tpu.dot_dimension_numbers<[1], [0], [0], [1], [0, 0, 1, 1], [], []>} : vector<8x128xf32>, vector<128x384xf32>, vector<8x384xf32> -> vector<8x384xf32>
    %317 = vector.extract_strided_slice %315 {offsets = [0, 0], sizes = [8, 128], strides = [1, 1]} : vector<8x384xf32> to vector<8x128xf32>
    %318 = vector.extract_strided_slice %316 {offsets = [0, 0], sizes = [8, 128], strides = [1, 1]} : vector<8x384xf32> to vector<8x128xf32>
    %319 = arith.addf %317, %318 : vector<8x128xf32>
    %320 = arith.negf %319 : vector<8x128xf32>
    %321 = math.exp %320 : vector<8x128xf32>
    %cst_104 = arith.constant 1.000000e+00 : f32
    %322 = vector.broadcast %cst_104 : f32 to vector<8x128xf32>
    %323 = arith.addf %322, %321 : vector<8x128xf32>
    %324 = arith.divf %322, %323 : vector<8x128xf32>
    %325 = vector.extract_strided_slice %315 {offsets = [0, 128], sizes = [8, 128], strides = [1, 1]} : vector<8x384xf32> to vector<8x128xf32>
    %326 = vector.extract_strided_slice %316 {offsets = [0, 128], sizes = [8, 128], strides = [1, 1]} : vector<8x384xf32> to vector<8x128xf32>
    %327 = arith.addf %325, %326 : vector<8x128xf32>
    %328 = arith.negf %327 : vector<8x128xf32>
    %329 = math.exp %328 : vector<8x128xf32>
    %cst_105 = arith.constant 1.000000e+00 : f32
    %330 = vector.broadcast %cst_105 : f32 to vector<8x128xf32>
    %331 = arith.addf %330, %329 : vector<8x128xf32>
    %332 = arith.divf %330, %331 : vector<8x128xf32>
    %333 = vector.extract_strided_slice %315 {offsets = [0, 256], sizes = [8, 128], strides = [1, 1]} : vector<8x384xf32> to vector<8x128xf32>
    %334 = vector.extract_strided_slice %316 {offsets = [0, 256], sizes = [8, 128], strides = [1, 1]} : vector<8x384xf32> to vector<8x128xf32>
    %335 = arith.addf %334, %310 : vector<8x128xf32>
    %336 = arith.mulf %324, %335 : vector<8x128xf32>
    %337 = arith.addf %333, %336 : vector<8x128xf32>
    %338 = math.tanh %337 : vector<8x128xf32>
    %cst_106 = arith.constant 1.000000e+00 : f32
    %339 = vector.broadcast %cst_106 : f32 to vector<8x128xf32>
    %340 = arith.subf %339, %332 : vector<8x128xf32>
    %341 = arith.mulf %340, %338 : vector<8x128xf32>
    %342 = arith.mulf %332, %312 : vector<8x128xf32>
    %343 = arith.addf %341, %342 : vector<8x128xf32>
    %344 = arith.index_cast %c0_i32_100 : i32 to index
    %c0_107 = arith.constant 0 : index
    %c0_108 = arith.constant 0 : index
    %345 = vector.load %arg20[%344, %c0_107, %c0_108] : memref<8x8x128xf32, #tpu.memory_space<vmem>>, vector<1x8x128xf32>
    %346 = vector.shape_cast %345 : vector<1x8x128xf32> to vector<8x128xf32>
    %347 = vector.shape_cast %343 : vector<8x128xf32> to vector<1x8x128xf32>
    tpu.vector_store %arg20[%344, %c0_107, %c0_108], %347 {strides = array<i32>} : memref<8x8x128xf32, #tpu.memory_space<vmem>>, vector<1x8x128xf32>,
    %c1_i32_109 = arith.constant 1 : i32
    %348 = arith.index_cast %c1_i32_109 : i32 to index
    %c0_110 = arith.constant 0 : index
    %c0_111 = arith.constant 0 : index
    %349 = vector.load %arg21[%348, %c0_110, %c0_111] : memref<8x8x384xf32, #tpu.memory_space<vmem>>, vector<1x8x384xf32>
    %350 = vector.shape_cast %349 : vector<1x8x384xf32> to vector<8x384xf32>
    %cst_112 = arith.constant dense<0.000000e+00> : vector<8x384xf32>
    %351 = tpu.matmul %343, %299, %cst_112 {dimension_numbers = #tpu.dot_dimension_numbers<[1], [0], [0], [1], [0, 0, 1, 1], [], []>} : vector<8x128xf32>, vector<128x384xf32>, vector<8x384xf32> -> vector<8x384xf32>
    %352 = vector.extract_strided_slice %350 {offsets = [0, 0], sizes = [8, 128], strides = [1, 1]} : vector<8x384xf32> to vector<8x128xf32>
    %353 = vector.extract_strided_slice %351 {offsets = [0, 0], sizes = [8, 128], strides = [1, 1]} : vector<8x384xf32> to vector<8x128xf32>
    %354 = arith.addf %352, %353 : vector<8x128xf32>
    %355 = arith.negf %354 : vector<8x128xf32>
    %356 = math.exp %355 : vector<8x128xf32>
    %cst_113 = arith.constant 1.000000e+00 : f32
    %357 = vector.broadcast %cst_113 : f32 to vector<8x128xf32>
    %358 = arith.addf %357, %356 : vector<8x128xf32>
    %359 = arith.divf %357, %358 : vector<8x128xf32>
    %360 = vector.extract_strided_slice %350 {offsets = [0, 128], sizes = [8, 128], strides = [1, 1]} : vector<8x384xf32> to vector<8x128xf32>
    %361 = vector.extract_strided_slice %351 {offsets = [0, 128], sizes = [8, 128], strides = [1, 1]} : vector<8x384xf32> to vector<8x128xf32>
    %362 = arith.addf %360, %361 : vector<8x128xf32>
    %363 = arith.negf %362 : vector<8x128xf32>
    %364 = math.exp %363 : vector<8x128xf32>
    %cst_114 = arith.constant 1.000000e+00 : f32
    %365 = vector.broadcast %cst_114 : f32 to vector<8x128xf32>
    %366 = arith.addf %365, %364 : vector<8x128xf32>
    %367 = arith.divf %365, %366 : vector<8x128xf32>
    %368 = vector.extract_strided_slice %350 {offsets = [0, 256], sizes = [8, 128], strides = [1, 1]} : vector<8x384xf32> to vector<8x128xf32>
    %369 = vector.extract_strided_slice %351 {offsets = [0, 256], sizes = [8, 128], strides = [1, 1]} : vector<8x384xf32> to vector<8x128xf32>
    %370 = arith.addf %369, %310 : vector<8x128xf32>
    %371 = arith.mulf %359, %370 : vector<8x128xf32>
    %372 = arith.addf %368, %371 : vector<8x128xf32>
    %373 = math.tanh %372 : vector<8x128xf32>
    %cst_115 = arith.constant 1.000000e+00 : f32
    %374 = vector.broadcast %cst_115 : f32 to vector<8x128xf32>
    %375 = arith.subf %374, %367 : vector<8x128xf32>
    %376 = arith.mulf %375, %373 : vector<8x128xf32>
    %377 = arith.mulf %367, %343 : vector<8x128xf32>
    %378 = arith.addf %376, %377 : vector<8x128xf32>
    %379 = arith.index_cast %c1_i32_109 : i32 to index
    %c0_116 = arith.constant 0 : index
    %c0_117 = arith.constant 0 : index
    %380 = vector.load %arg20[%379, %c0_116, %c0_117] : memref<8x8x128xf32, #tpu.memory_space<vmem>>, vector<1x8x128xf32>
    %381 = vector.shape_cast %380 : vector<1x8x128xf32> to vector<8x128xf32>
    %382 = vector.shape_cast %378 : vector<8x128xf32> to vector<1x8x128xf32>
    tpu.vector_store %arg20[%379, %c0_116, %c0_117], %382 {strides = array<i32>} : memref<8x8x128xf32, #tpu.memory_space<vmem>>, vector<1x8x128xf32>,
    %c2_i32_118 = arith.constant 2 : i32
    %383 = arith.index_cast %c2_i32_118 : i32 to index
    %c0_119 = arith.constant 0 : index
    %c0_120 = arith.constant 0 : index
    %384 = vector.load %arg21[%383, %c0_119, %c0_120] : memref<8x8x384xf32, #tpu.memory_space<vmem>>, vector<1x8x384xf32>
    %385 = vector.shape_cast %384 : vector<1x8x384xf32> to vector<8x384xf32>
    %cst_121 = arith.constant dense<0.000000e+00> : vector<8x384xf32>
    %386 = tpu.matmul %378, %299, %cst_121 {dimension_numbers = #tpu.dot_dimension_numbers<[1], [0], [0], [1], [0, 0, 1, 1], [], []>} : vector<8x128xf32>, vector<128x384xf32>, vector<8x384xf32> -> vector<8x384xf32>
    %387 = vector.extract_strided_slice %385 {offsets = [0, 0], sizes = [8, 128], strides = [1, 1]} : vector<8x384xf32> to vector<8x128xf32>
    %388 = vector.extract_strided_slice %386 {offsets = [0, 0], sizes = [8, 128], strides = [1, 1]} : vector<8x384xf32> to vector<8x128xf32>
    %389 = arith.addf %387, %388 : vector<8x128xf32>
    %390 = arith.negf %389 : vector<8x128xf32>
    %391 = math.exp %390 : vector<8x128xf32>
    %cst_122 = arith.constant 1.000000e+00 : f32
    %392 = vector.broadcast %cst_122 : f32 to vector<8x128xf32>
    %393 = arith.addf %392, %391 : vector<8x128xf32>
    %394 = arith.divf %392, %393 : vector<8x128xf32>
    %395 = vector.extract_strided_slice %385 {offsets = [0, 128], sizes = [8, 128], strides = [1, 1]} : vector<8x384xf32> to vector<8x128xf32>
    %396 = vector.extract_strided_slice %386 {offsets = [0, 128], sizes = [8, 128], strides = [1, 1]} : vector<8x384xf32> to vector<8x128xf32>
    %397 = arith.addf %395, %396 : vector<8x128xf32>
    %398 = arith.negf %397 : vector<8x128xf32>
    %399 = math.exp %398 : vector<8x128xf32>
    %cst_123 = arith.constant 1.000000e+00 : f32
    %400 = vector.broadcast %cst_123 : f32 to vector<8x128xf32>
    %401 = arith.addf %400, %399 : vector<8x128xf32>
    %402 = arith.divf %400, %401 : vector<8x128xf32>
    %403 = vector.extract_strided_slice %385 {offsets = [0, 256], sizes = [8, 128], strides = [1, 1]} : vector<8x384xf32> to vector<8x128xf32>
    %404 = vector.extract_strided_slice %386 {offsets = [0, 256], sizes = [8, 128], strides = [1, 1]} : vector<8x384xf32> to vector<8x128xf32>
    %405 = arith.addf %404, %310 : vector<8x128xf32>
    %406 = arith.mulf %394, %405 : vector<8x128xf32>
    %407 = arith.addf %403, %406 : vector<8x128xf32>
    %408 = math.tanh %407 : vector<8x128xf32>
    %cst_124 = arith.constant 1.000000e+00 : f32
    %409 = vector.broadcast %cst_124 : f32 to vector<8x128xf32>
    %410 = arith.subf %409, %402 : vector<8x128xf32>
    %411 = arith.mulf %410, %408 : vector<8x128xf32>
    %412 = arith.mulf %402, %378 : vector<8x128xf32>
    %413 = arith.addf %411, %412 : vector<8x128xf32>
    %414 = arith.index_cast %c2_i32_118 : i32 to index
    %c0_125 = arith.constant 0 : index
    %c0_126 = arith.constant 0 : index
    %415 = vector.load %arg20[%414, %c0_125, %c0_126] : memref<8x8x128xf32, #tpu.memory_space<vmem>>, vector<1x8x128xf32>
    %416 = vector.shape_cast %415 : vector<1x8x128xf32> to vector<8x128xf32>
    %417 = vector.shape_cast %413 : vector<8x128xf32> to vector<1x8x128xf32>
    tpu.vector_store %arg20[%414, %c0_125, %c0_126], %417 {strides = array<i32>} : memref<8x8x128xf32, #tpu.memory_space<vmem>>, vector<1x8x128xf32>,
    %c3_i32_127 = arith.constant 3 : i32
    %418 = arith.index_cast %c3_i32_127 : i32 to index
    %c0_128 = arith.constant 0 : index
    %c0_129 = arith.constant 0 : index
    %419 = vector.load %arg21[%418, %c0_128, %c0_129] : memref<8x8x384xf32, #tpu.memory_space<vmem>>, vector<1x8x384xf32>
    %420 = vector.shape_cast %419 : vector<1x8x384xf32> to vector<8x384xf32>
    %cst_130 = arith.constant dense<0.000000e+00> : vector<8x384xf32>
    %421 = tpu.matmul %413, %299, %cst_130 {dimension_numbers = #tpu.dot_dimension_numbers<[1], [0], [0], [1], [0, 0, 1, 1], [], []>} : vector<8x128xf32>, vector<128x384xf32>, vector<8x384xf32> -> vector<8x384xf32>
    %422 = vector.extract_strided_slice %420 {offsets = [0, 0], sizes = [8, 128], strides = [1, 1]} : vector<8x384xf32> to vector<8x128xf32>
    %423 = vector.extract_strided_slice %421 {offsets = [0, 0], sizes = [8, 128], strides = [1, 1]} : vector<8x384xf32> to vector<8x128xf32>
    %424 = arith.addf %422, %423 : vector<8x128xf32>
    %425 = arith.negf %424 : vector<8x128xf32>
    %426 = math.exp %425 : vector<8x128xf32>
    %cst_131 = arith.constant 1.000000e+00 : f32
    %427 = vector.broadcast %cst_131 : f32 to vector<8x128xf32>
    %428 = arith.addf %427, %426 : vector<8x128xf32>
    %429 = arith.divf %427, %428 : vector<8x128xf32>
    %430 = vector.extract_strided_slice %420 {offsets = [0, 128], sizes = [8, 128], strides = [1, 1]} : vector<8x384xf32> to vector<8x128xf32>
    %431 = vector.extract_strided_slice %421 {offsets = [0, 128], sizes = [8, 128], strides = [1, 1]} : vector<8x384xf32> to vector<8x128xf32>
    %432 = arith.addf %430, %431 : vector<8x128xf32>
    %433 = arith.negf %432 : vector<8x128xf32>
    %434 = math.exp %433 : vector<8x128xf32>
    %cst_132 = arith.constant 1.000000e+00 : f32
    %435 = vector.broadcast %cst_132 : f32 to vector<8x128xf32>
    %436 = arith.addf %435, %434 : vector<8x128xf32>
    %437 = arith.divf %435, %436 : vector<8x128xf32>
    %438 = vector.extract_strided_slice %420 {offsets = [0, 256], sizes = [8, 128], strides = [1, 1]} : vector<8x384xf32> to vector<8x128xf32>
    %439 = vector.extract_strided_slice %421 {offsets = [0, 256], sizes = [8, 128], strides = [1, 1]} : vector<8x384xf32> to vector<8x128xf32>
    %440 = arith.addf %439, %310 : vector<8x128xf32>
    %441 = arith.mulf %429, %440 : vector<8x128xf32>
    %442 = arith.addf %438, %441 : vector<8x128xf32>
    %443 = math.tanh %442 : vector<8x128xf32>
    %cst_133 = arith.constant 1.000000e+00 : f32
    %444 = vector.broadcast %cst_133 : f32 to vector<8x128xf32>
    %445 = arith.subf %444, %437 : vector<8x128xf32>
    %446 = arith.mulf %445, %443 : vector<8x128xf32>
    %447 = arith.mulf %437, %413 : vector<8x128xf32>
    %448 = arith.addf %446, %447 : vector<8x128xf32>
    %449 = arith.index_cast %c3_i32_127 : i32 to index
    %c0_134 = arith.constant 0 : index
    %c0_135 = arith.constant 0 : index
    %450 = vector.load %arg20[%449, %c0_134, %c0_135] : memref<8x8x128xf32, #tpu.memory_space<vmem>>, vector<1x8x128xf32>
    %451 = vector.shape_cast %450 : vector<1x8x128xf32> to vector<8x128xf32>
    %452 = vector.shape_cast %448 : vector<8x128xf32> to vector<1x8x128xf32>
    tpu.vector_store %arg20[%449, %c0_134, %c0_135], %452 {strides = array<i32>} : memref<8x8x128xf32, #tpu.memory_space<vmem>>, vector<1x8x128xf32>,
    %c4_i32_136 = arith.constant 4 : i32
    %453 = arith.index_cast %c4_i32_136 : i32 to index
    %c0_137 = arith.constant 0 : index
    %c0_138 = arith.constant 0 : index
    %454 = vector.load %arg21[%453, %c0_137, %c0_138] : memref<8x8x384xf32, #tpu.memory_space<vmem>>, vector<1x8x384xf32>
    %455 = vector.shape_cast %454 : vector<1x8x384xf32> to vector<8x384xf32>
    %cst_139 = arith.constant dense<0.000000e+00> : vector<8x384xf32>
    %456 = tpu.matmul %448, %299, %cst_139 {dimension_numbers = #tpu.dot_dimension_numbers<[1], [0], [0], [1], [0, 0, 1, 1], [], []>} : vector<8x128xf32>, vector<128x384xf32>, vector<8x384xf32> -> vector<8x384xf32>
    %457 = vector.extract_strided_slice %455 {offsets = [0, 0], sizes = [8, 128], strides = [1, 1]} : vector<8x384xf32> to vector<8x128xf32>
    %458 = vector.extract_strided_slice %456 {offsets = [0, 0], sizes = [8, 128], strides = [1, 1]} : vector<8x384xf32> to vector<8x128xf32>
    %459 = arith.addf %457, %458 : vector<8x128xf32>
    %460 = arith.negf %459 : vector<8x128xf32>
    %461 = math.exp %460 : vector<8x128xf32>
    %cst_140 = arith.constant 1.000000e+00 : f32
    %462 = vector.broadcast %cst_140 : f32 to vector<8x128xf32>
    %463 = arith.addf %462, %461 : vector<8x128xf32>
    %464 = arith.divf %462, %463 : vector<8x128xf32>
    %465 = vector.extract_strided_slice %455 {offsets = [0, 128], sizes = [8, 128], strides = [1, 1]} : vector<8x384xf32> to vector<8x128xf32>
    %466 = vector.extract_strided_slice %456 {offsets = [0, 128], sizes = [8, 128], strides = [1, 1]} : vector<8x384xf32> to vector<8x128xf32>
    %467 = arith.addf %465, %466 : vector<8x128xf32>
    %468 = arith.negf %467 : vector<8x128xf32>
    %469 = math.exp %468 : vector<8x128xf32>
    %cst_141 = arith.constant 1.000000e+00 : f32
    %470 = vector.broadcast %cst_141 : f32 to vector<8x128xf32>
    %471 = arith.addf %470, %469 : vector<8x128xf32>
    %472 = arith.divf %470, %471 : vector<8x128xf32>
    %473 = vector.extract_strided_slice %455 {offsets = [0, 256], sizes = [8, 128], strides = [1, 1]} : vector<8x384xf32> to vector<8x128xf32>
    %474 = vector.extract_strided_slice %456 {offsets = [0, 256], sizes = [8, 128], strides = [1, 1]} : vector<8x384xf32> to vector<8x128xf32>
    %475 = arith.addf %474, %310 : vector<8x128xf32>
    %476 = arith.mulf %464, %475 : vector<8x128xf32>
    %477 = arith.addf %473, %476 : vector<8x128xf32>
    %478 = math.tanh %477 : vector<8x128xf32>
    %cst_142 = arith.constant 1.000000e+00 : f32
    %479 = vector.broadcast %cst_142 : f32 to vector<8x128xf32>
    %480 = arith.subf %479, %472 : vector<8x128xf32>
    %481 = arith.mulf %480, %478 : vector<8x128xf32>
    %482 = arith.mulf %472, %448 : vector<8x128xf32>
    %483 = arith.addf %481, %482 : vector<8x128xf32>
    %484 = arith.index_cast %c4_i32_136 : i32 to index
    %c0_143 = arith.constant 0 : index
    %c0_144 = arith.constant 0 : index
    %485 = vector.load %arg20[%484, %c0_143, %c0_144] : memref<8x8x128xf32, #tpu.memory_space<vmem>>, vector<1x8x128xf32>
    %486 = vector.shape_cast %485 : vector<1x8x128xf32> to vector<8x128xf32>
    %487 = vector.shape_cast %483 : vector<8x128xf32> to vector<1x8x128xf32>
    tpu.vector_store %arg20[%484, %c0_143, %c0_144], %487 {strides = array<i32>} : memref<8x8x128xf32, #tpu.memory_space<vmem>>, vector<1x8x128xf32>,
    %c5_i32_145 = arith.constant 5 : i32
    %488 = arith.index_cast %c5_i32_145 : i32 to index
    %c0_146 = arith.constant 0 : index
    %c0_147 = arith.constant 0 : index
    %489 = vector.load %arg21[%488, %c0_146, %c0_147] : memref<8x8x384xf32, #tpu.memory_space<vmem>>, vector<1x8x384xf32>
    %490 = vector.shape_cast %489 : vector<1x8x384xf32> to vector<8x384xf32>
    %cst_148 = arith.constant dense<0.000000e+00> : vector<8x384xf32>
    %491 = tpu.matmul %483, %299, %cst_148 {dimension_numbers = #tpu.dot_dimension_numbers<[1], [0], [0], [1], [0, 0, 1, 1], [], []>} : vector<8x128xf32>, vector<128x384xf32>, vector<8x384xf32> -> vector<8x384xf32>
    %492 = vector.extract_strided_slice %490 {offsets = [0, 0], sizes = [8, 128], strides = [1, 1]} : vector<8x384xf32> to vector<8x128xf32>
    %493 = vector.extract_strided_slice %491 {offsets = [0, 0], sizes = [8, 128], strides = [1, 1]} : vector<8x384xf32> to vector<8x128xf32>
    %494 = arith.addf %492, %493 : vector<8x128xf32>
    %495 = arith.negf %494 : vector<8x128xf32>
    %496 = math.exp %495 : vector<8x128xf32>
    %cst_149 = arith.constant 1.000000e+00 : f32
    %497 = vector.broadcast %cst_149 : f32 to vector<8x128xf32>
    %498 = arith.addf %497, %496 : vector<8x128xf32>
    %499 = arith.divf %497, %498 : vector<8x128xf32>
    %500 = vector.extract_strided_slice %490 {offsets = [0, 128], sizes = [8, 128], strides = [1, 1]} : vector<8x384xf32> to vector<8x128xf32>
    %501 = vector.extract_strided_slice %491 {offsets = [0, 128], sizes = [8, 128], strides = [1, 1]} : vector<8x384xf32> to vector<8x128xf32>
    %502 = arith.addf %500, %501 : vector<8x128xf32>
    %503 = arith.negf %502 : vector<8x128xf32>
    %504 = math.exp %503 : vector<8x128xf32>
    %cst_150 = arith.constant 1.000000e+00 : f32
    %505 = vector.broadcast %cst_150 : f32 to vector<8x128xf32>
    %506 = arith.addf %505, %504 : vector<8x128xf32>
    %507 = arith.divf %505, %506 : vector<8x128xf32>
    %508 = vector.extract_strided_slice %490 {offsets = [0, 256], sizes = [8, 128], strides = [1, 1]} : vector<8x384xf32> to vector<8x128xf32>
    %509 = vector.extract_strided_slice %491 {offsets = [0, 256], sizes = [8, 128], strides = [1, 1]} : vector<8x384xf32> to vector<8x128xf32>
    %510 = arith.addf %509, %310 : vector<8x128xf32>
    %511 = arith.mulf %499, %510 : vector<8x128xf32>
    %512 = arith.addf %508, %511 : vector<8x128xf32>
    %513 = math.tanh %512 : vector<8x128xf32>
    %cst_151 = arith.constant 1.000000e+00 : f32
    %514 = vector.broadcast %cst_151 : f32 to vector<8x128xf32>
    %515 = arith.subf %514, %507 : vector<8x128xf32>
    %516 = arith.mulf %515, %513 : vector<8x128xf32>
    %517 = arith.mulf %507, %483 : vector<8x128xf32>
    %518 = arith.addf %516, %517 : vector<8x128xf32>
    %519 = arith.index_cast %c5_i32_145 : i32 to index
    %c0_152 = arith.constant 0 : index
    %c0_153 = arith.constant 0 : index
    %520 = vector.load %arg20[%519, %c0_152, %c0_153] : memref<8x8x128xf32, #tpu.memory_space<vmem>>, vector<1x8x128xf32>
    %521 = vector.shape_cast %520 : vector<1x8x128xf32> to vector<8x128xf32>
    %522 = vector.shape_cast %518 : vector<8x128xf32> to vector<1x8x128xf32>
    tpu.vector_store %arg20[%519, %c0_152, %c0_153], %522 {strides = array<i32>} : memref<8x8x128xf32, #tpu.memory_space<vmem>>, vector<1x8x128xf32>,
    %c6_i32_154 = arith.constant 6 : i32
    %523 = arith.index_cast %c6_i32_154 : i32 to index
    %c0_155 = arith.constant 0 : index
    %c0_156 = arith.constant 0 : index
    %524 = vector.load %arg21[%523, %c0_155, %c0_156] : memref<8x8x384xf32, #tpu.memory_space<vmem>>, vector<1x8x384xf32>
    %525 = vector.shape_cast %524 : vector<1x8x384xf32> to vector<8x384xf32>
    %cst_157 = arith.constant dense<0.000000e+00> : vector<8x384xf32>
    %526 = tpu.matmul %518, %299, %cst_157 {dimension_numbers = #tpu.dot_dimension_numbers<[1], [0], [0], [1], [0, 0, 1, 1], [], []>} : vector<8x128xf32>, vector<128x384xf32>, vector<8x384xf32> -> vector<8x384xf32>
    %527 = vector.extract_strided_slice %525 {offsets = [0, 0], sizes = [8, 128], strides = [1, 1]} : vector<8x384xf32> to vector<8x128xf32>
    %528 = vector.extract_strided_slice %526 {offsets = [0, 0], sizes = [8, 128], strides = [1, 1]} : vector<8x384xf32> to vector<8x128xf32>
    %529 = arith.addf %527, %528 : vector<8x128xf32>
    %530 = arith.negf %529 : vector<8x128xf32>
    %531 = math.exp %530 : vector<8x128xf32>
    %cst_158 = arith.constant 1.000000e+00 : f32
    %532 = vector.broadcast %cst_158 : f32 to vector<8x128xf32>
    %533 = arith.addf %532, %531 : vector<8x128xf32>
    %534 = arith.divf %532, %533 : vector<8x128xf32>
    %535 = vector.extract_strided_slice %525 {offsets = [0, 128], sizes = [8, 128], strides = [1, 1]} : vector<8x384xf32> to vector<8x128xf32>
    %536 = vector.extract_strided_slice %526 {offsets = [0, 128], sizes = [8, 128], strides = [1, 1]} : vector<8x384xf32> to vector<8x128xf32>
    %537 = arith.addf %535, %536 : vector<8x128xf32>
    %538 = arith.negf %537 : vector<8x128xf32>
    %539 = math.exp %538 : vector<8x128xf32>
    %cst_159 = arith.constant 1.000000e+00 : f32
    %540 = vector.broadcast %cst_159 : f32 to vector<8x128xf32>
    %541 = arith.addf %540, %539 : vector<8x128xf32>
    %542 = arith.divf %540, %541 : vector<8x128xf32>
    %543 = vector.extract_strided_slice %525 {offsets = [0, 256], sizes = [8, 128], strides = [1, 1]} : vector<8x384xf32> to vector<8x128xf32>
    %544 = vector.extract_strided_slice %526 {offsets = [0, 256], sizes = [8, 128], strides = [1, 1]} : vector<8x384xf32> to vector<8x128xf32>
    %545 = arith.addf %544, %310 : vector<8x128xf32>
    %546 = arith.mulf %534, %545 : vector<8x128xf32>
    %547 = arith.addf %543, %546 : vector<8x128xf32>
    %548 = math.tanh %547 : vector<8x128xf32>
    %cst_160 = arith.constant 1.000000e+00 : f32
    %549 = vector.broadcast %cst_160 : f32 to vector<8x128xf32>
    %550 = arith.subf %549, %542 : vector<8x128xf32>
    %551 = arith.mulf %550, %548 : vector<8x128xf32>
    %552 = arith.mulf %542, %518 : vector<8x128xf32>
    %553 = arith.addf %551, %552 : vector<8x128xf32>
    %554 = arith.index_cast %c6_i32_154 : i32 to index
    %c0_161 = arith.constant 0 : index
    %c0_162 = arith.constant 0 : index
    %555 = vector.load %arg20[%554, %c0_161, %c0_162] : memref<8x8x128xf32, #tpu.memory_space<vmem>>, vector<1x8x128xf32>
    %556 = vector.shape_cast %555 : vector<1x8x128xf32> to vector<8x128xf32>
    %557 = vector.shape_cast %553 : vector<8x128xf32> to vector<1x8x128xf32>
    tpu.vector_store %arg20[%554, %c0_161, %c0_162], %557 {strides = array<i32>} : memref<8x8x128xf32, #tpu.memory_space<vmem>>, vector<1x8x128xf32>,
    %c7_i32_163 = arith.constant 7 : i32
    %558 = arith.index_cast %c7_i32_163 : i32 to index
    %c0_164 = arith.constant 0 : index
    %c0_165 = arith.constant 0 : index
    %559 = vector.load %arg21[%558, %c0_164, %c0_165] : memref<8x8x384xf32, #tpu.memory_space<vmem>>, vector<1x8x384xf32>
    %560 = vector.shape_cast %559 : vector<1x8x384xf32> to vector<8x384xf32>
    %cst_166 = arith.constant dense<0.000000e+00> : vector<8x384xf32>
    %561 = tpu.matmul %553, %299, %cst_166 {dimension_numbers = #tpu.dot_dimension_numbers<[1], [0], [0], [1], [0, 0, 1, 1], [], []>} : vector<8x128xf32>, vector<128x384xf32>, vector<8x384xf32> -> vector<8x384xf32>
    %562 = vector.extract_strided_slice %560 {offsets = [0, 0], sizes = [8, 128], strides = [1, 1]} : vector<8x384xf32> to vector<8x128xf32>
    %563 = vector.extract_strided_slice %561 {offsets = [0, 0], sizes = [8, 128], strides = [1, 1]} : vector<8x384xf32> to vector<8x128xf32>
    %564 = arith.addf %562, %563 : vector<8x128xf32>
    %565 = arith.negf %564 : vector<8x128xf32>
    %566 = math.exp %565 : vector<8x128xf32>
    %cst_167 = arith.constant 1.000000e+00 : f32
    %567 = vector.broadcast %cst_167 : f32 to vector<8x128xf32>
    %568 = arith.addf %567, %566 : vector<8x128xf32>
    %569 = arith.divf %567, %568 : vector<8x128xf32>
    %570 = vector.extract_strided_slice %560 {offsets = [0, 128], sizes = [8, 128], strides = [1, 1]} : vector<8x384xf32> to vector<8x128xf32>
    %571 = vector.extract_strided_slice %561 {offsets = [0, 128], sizes = [8, 128], strides = [1, 1]} : vector<8x384xf32> to vector<8x128xf32>
    %572 = arith.addf %570, %571 : vector<8x128xf32>
    %573 = arith.negf %572 : vector<8x128xf32>
    %574 = math.exp %573 : vector<8x128xf32>
    %cst_168 = arith.constant 1.000000e+00 : f32
    %575 = vector.broadcast %cst_168 : f32 to vector<8x128xf32>
    %576 = arith.addf %575, %574 : vector<8x128xf32>
    %577 = arith.divf %575, %576 : vector<8x128xf32>
    %578 = vector.extract_strided_slice %560 {offsets = [0, 256], sizes = [8, 128], strides = [1, 1]} : vector<8x384xf32> to vector<8x128xf32>
    %579 = vector.extract_strided_slice %561 {offsets = [0, 256], sizes = [8, 128], strides = [1, 1]} : vector<8x384xf32> to vector<8x128xf32>
    %580 = arith.addf %579, %310 : vector<8x128xf32>
    %581 = arith.mulf %569, %580 : vector<8x128xf32>
    %582 = arith.addf %578, %581 : vector<8x128xf32>
    %583 = math.tanh %582 : vector<8x128xf32>
    %cst_169 = arith.constant 1.000000e+00 : f32
    %584 = vector.broadcast %cst_169 : f32 to vector<8x128xf32>
    %585 = arith.subf %584, %577 : vector<8x128xf32>
    %586 = arith.mulf %585, %583 : vector<8x128xf32>
    %587 = arith.mulf %577, %553 : vector<8x128xf32>
    %588 = arith.addf %586, %587 : vector<8x128xf32>
    %589 = arith.index_cast %c7_i32_163 : i32 to index
    %c0_170 = arith.constant 0 : index
    %c0_171 = arith.constant 0 : index
    %590 = vector.load %arg20[%589, %c0_170, %c0_171] : memref<8x8x128xf32, #tpu.memory_space<vmem>>, vector<1x8x128xf32>
    %591 = vector.shape_cast %590 : vector<1x8x128xf32> to vector<8x128xf32>
    %592 = vector.shape_cast %588 : vector<8x128xf32> to vector<1x8x128xf32>
    tpu.vector_store %arg20[%589, %c0_170, %c0_171], %592 {strides = array<i32>} : memref<8x8x128xf32, #tpu.memory_space<vmem>>, vector<1x8x128xf32>,
    %c8_i32_172 = arith.constant 8 : i32
    %c1_173 = arith.constant 1 : index
    %c0_174 = arith.constant 0 : index
    %c0_175 = arith.constant 0 : index
    %593 = vector.load %arg18[%c1_173, %c0_174, %c0_175] : memref<2x8x128xf32, #tpu.memory_space<vmem>>, vector<1x8x128xf32>
    %594 = vector.shape_cast %593 : vector<1x8x128xf32> to vector<8x128xf32>
    %595 = vector.shape_cast %588 : vector<8x128xf32> to vector<1x8x128xf32>
    tpu.vector_store %arg18[%c1_173, %c0_174, %c0_175], %595 {strides = array<i32>} : memref<2x8x128xf32, #tpu.memory_space<vmem>>, vector<1x8x128xf32>,
    %c0_176 = arith.constant 0 : index
    %c0_177 = arith.constant 0 : index
    %596 = vector.load %arg11[%c0_176, %c0_177] : memref<128x64xf32, #tpu.memory_space<vmem>>, vector<128x64xf32>
    %c0_178 = arith.constant 0 : index
    %c0_179 = arith.constant 0 : index
    %597 = vector.load %arg12[%c0_178, %c0_179] : memref<24x64xf32, #tpu.memory_space<vmem>>, vector<24x64xf32>
    %c0_180 = arith.constant 0 : index
    %c0_181 = arith.constant 0 : index
    %598 = vector.load %arg13[%c0_180, %c0_181] : memref<1x64xf32, #tpu.memory_space<vmem>>, vector<1x64xf32>
    %c7 = arith.constant 7 : index
    %c0_182 = arith.constant 0 : index
    %c0_183 = arith.constant 0 : index
    %599 = vector.load %arg20[%c7, %c0_182, %c0_183] : memref<8x8x128xf32, #tpu.memory_space<vmem>>, vector<1x8x128xf32>
    %600 = vector.shape_cast %599 : vector<1x8x128xf32> to vector<8x128xf32>
    %c7_184 = arith.constant 7 : index
    %c0_185 = arith.constant 0 : index
    %c0_186 = arith.constant 0 : index
    %601 = vector.load %arg1[%c7_184, %c0_185, %c0_186] : memref<8x8x24xf32, #tpu.memory_space<vmem>>, vector<1x8x24xf32>
    %602 = vector.shape_cast %601 : vector<1x8x24xf32> to vector<8x24xf32>
    %cst_187 = arith.constant dense<0.000000e+00> : vector<8x64xf32>
    %603 = tpu.matmul %600, %596, %cst_187 {dimension_numbers = #tpu.dot_dimension_numbers<[1], [0], [0], [1], [0, 0, 1, 1], [], []>} : vector<8x128xf32>, vector<128x64xf32>, vector<8x64xf32> -> vector<8x64xf32>
    %cst_188 = arith.constant dense<0.000000e+00> : vector<8x64xf32>
    %604 = tpu.matmul %602, %597, %cst_188 {dimension_numbers = #tpu.dot_dimension_numbers<[1], [0], [0], [1], [0, 0, 1, 1], [], []>} : vector<8x24xf32>, vector<24x64xf32>, vector<8x64xf32> -> vector<8x64xf32>
    %605 = arith.addf %603, %604 : vector<8x64xf32>
    %606 = vector.broadcast %598 : vector<1x64xf32> to vector<8x64xf32>
    %607 = arith.addf %605, %606 : vector<8x64xf32>
    %cst_189 = arith.constant 5.000000e-01 : f32
    %608 = vector.broadcast %cst_189 : f32 to vector<8x64xf32>
    %609 = arith.mulf %608, %607 : vector<8x64xf32>
    %cst_190 = arith.constant 4.471500e-02 : f32
    %610 = vector.broadcast %cst_190 : f32 to vector<8x64xf32>
    %611 = arith.mulf %610, %607 : vector<8x64xf32>
    %612 = arith.mulf %611, %607 : vector<8x64xf32>
    %613 = arith.mulf %612, %607 : vector<8x64xf32>
    %614 = arith.addf %607, %613 : vector<8x64xf32>
    %cst_191 = arith.constant 0.797884583 : f32
    %615 = vector.broadcast %cst_191 : f32 to vector<8x64xf32>
    %616 = arith.mulf %615, %614 : vector<8x64xf32>
    %617 = math.tanh %616 : vector<8x64xf32>
    %cst_192 = arith.constant 1.000000e+00 : f32
    %618 = vector.broadcast %cst_192 : f32 to vector<8x64xf32>
    %619 = arith.addf %618, %617 : vector<8x64xf32>
    %620 = arith.mulf %609, %619 : vector<8x64xf32>
    %c0_193 = arith.constant 0 : index
    %c0_194 = arith.constant 0 : index
    %621 = vector.load %arg14[%c0_193, %c0_194] : memref<64x32xf32, #tpu.memory_space<vmem>>, vector<64x32xf32>
    %c0_195 = arith.constant 0 : index
    %c0_196 = arith.constant 0 : index
    %622 = vector.load %arg15[%c0_195, %c0_196] : memref<1x32xf32, #tpu.memory_space<vmem>>, vector<1x32xf32>
    %cst_197 = arith.constant dense<0.000000e+00> : vector<8x32xf32>
    %623 = tpu.matmul %620, %621, %cst_197 {dimension_numbers = #tpu.dot_dimension_numbers<[1], [0], [0], [1], [0, 0, 1, 1], [], []>} : vector<8x64xf32>, vector<64x32xf32>, vector<8x32xf32> -> vector<8x32xf32>
    %624 = vector.broadcast %622 : vector<1x32xf32> to vector<8x32xf32>
    %625 = arith.addf %623, %624 : vector<8x32xf32>
    %cst_198 = arith.constant 5.000000e-01 : f32
    %626 = vector.broadcast %cst_198 : f32 to vector<8x32xf32>
    %627 = arith.mulf %626, %625 : vector<8x32xf32>
    %cst_199 = arith.constant 4.471500e-02 : f32
    %628 = vector.broadcast %cst_199 : f32 to vector<8x32xf32>
    %629 = arith.mulf %628, %625 : vector<8x32xf32>
    %630 = arith.mulf %629, %625 : vector<8x32xf32>
    %631 = arith.mulf %630, %625 : vector<8x32xf32>
    %632 = arith.addf %625, %631 : vector<8x32xf32>
    %cst_200 = arith.constant 0.797884583 : f32
    %633 = vector.broadcast %cst_200 : f32 to vector<8x32xf32>
    %634 = arith.mulf %633, %632 : vector<8x32xf32>
    %635 = math.tanh %634 : vector<8x32xf32>
    %cst_201 = arith.constant 1.000000e+00 : f32
    %636 = vector.broadcast %cst_201 : f32 to vector<8x32xf32>
    %637 = arith.addf %636, %635 : vector<8x32xf32>
    %638 = arith.mulf %627, %637 : vector<8x32xf32>
    %c0_202 = arith.constant 0 : index
    %c0_203 = arith.constant 0 : index
    %639 = vector.load %arg16[%c0_202, %c0_203] : memref<32x384xf32, #tpu.memory_space<vmem>>, vector<32x384xf32>
    %c0_204 = arith.constant 0 : index
    %c0_205 = arith.constant 0 : index
    %640 = vector.load %arg17[%c0_204, %c0_205] : memref<1x384xf32, #tpu.memory_space<vmem>>, vector<1x384xf32>
    %cst_206 = arith.constant dense<0.000000e+00> : vector<8x384xf32>
    %641 = tpu.matmul %638, %639, %cst_206 {dimension_numbers = #tpu.dot_dimension_numbers<[1], [0], [0], [1], [0, 0, 1, 1], [], []>} : vector<8x32xf32>, vector<32x384xf32>, vector<8x384xf32> -> vector<8x384xf32>
    %642 = vector.broadcast %640 : vector<1x384xf32> to vector<8x384xf32>
    %643 = arith.addf %641, %642 : vector<8x384xf32>
    %644 = vector.extract_strided_slice %643 {offsets = [0, 0], sizes = [8, 128], strides = [1, 1]} : vector<8x384xf32> to vector<8x128xf32>
    %cst_207 = arith.constant 0.000000e+00 : f32
    %645 = vector.broadcast %cst_207 : f32 to vector<8x128xf32>
    %646 = arith.maximumf %644, %645 : vector<8x128xf32>
    %647 = math.absf %644 : vector<8x128xf32>
    %cst_208 = arith.constant 0.000000e+00 : f32
    %648 = vector.broadcast %cst_208 : f32 to vector<8x128xf32>
    %649 = arith.subf %648, %647 : vector<8x128xf32>
    %650 = math.exp %649 : vector<8x128xf32>
    %cst_209 = arith.constant 1.000000e+00 : f32
    %651 = vector.broadcast %cst_209 : f32 to vector<8x128xf32>
    %652 = arith.addf %651, %650 : vector<8x128xf32>
    %653 = math.log %652 : vector<8x128xf32>
    %654 = arith.addf %646, %653 : vector<8x128xf32>
    %cst_210 = arith.constant 1.000000e+00 : f32
    %655 = vector.broadcast %cst_210 : f32 to vector<8x128xf32>
    %656 = arith.addf %654, %655 : vector<8x128xf32>
    %657 = vector.extract_strided_slice %643 {offsets = [0, 128], sizes = [8, 128], strides = [1, 1]} : vector<8x384xf32> to vector<8x128xf32>
    %cst_211 = arith.constant 0.000000e+00 : f32
    %658 = vector.broadcast %cst_211 : f32 to vector<8x128xf32>
    %659 = arith.maximumf %657, %658 : vector<8x128xf32>
    %660 = math.absf %657 : vector<8x128xf32>
    %cst_212 = arith.constant 0.000000e+00 : f32
    %661 = vector.broadcast %cst_212 : f32 to vector<8x128xf32>
    %662 = arith.subf %661, %660 : vector<8x128xf32>
    %663 = math.exp %662 : vector<8x128xf32>
    %cst_213 = arith.constant 1.000000e+00 : f32
    %664 = vector.broadcast %cst_213 : f32 to vector<8x128xf32>
    %665 = arith.addf %664, %663 : vector<8x128xf32>
    %666 = math.log %665 : vector<8x128xf32>
    %667 = arith.addf %659, %666 : vector<8x128xf32>
    %cst_214 = arith.constant 1.000000e+00 : f32
    %668 = vector.broadcast %cst_214 : f32 to vector<8x128xf32>
    %669 = arith.addf %667, %668 : vector<8x128xf32>
    %670 = vector.extract_strided_slice %643 {offsets = [0, 256], sizes = [8, 128], strides = [1, 1]} : vector<8x384xf32> to vector<8x128xf32>
    %cst_215 = arith.constant dense<0xFF800000> : vector<8xf32>
    %671 = vector.multi_reduction <maximumf>, %670, %cst_215 [1] : vector<8x128xf32> to vector<8xf32>
    %672 = vector.shape_cast %671 : vector<8xf32> to vector<8x1xf32>
    %673 = vector.broadcast %672 : vector<8x1xf32> to vector<8x128xf32>
    %674 = arith.subf %670, %673 : vector<8x128xf32>
    %675 = math.exp %674 : vector<8x128xf32>
    %cst_216 = arith.constant dense<0.000000e+00> : vector<8xf32>
    %676 = vector.multi_reduction <add>, %675, %cst_216 [1] : vector<8x128xf32> to vector<8xf32>
    %677 = vector.shape_cast %676 : vector<8xf32> to vector<8x1xf32>
    %678 = tpu.reciprocal %677 {approx = true} : vector<8x1xf32> -> vector<8x1xf32>
    %679 = vector.broadcast %678 : vector<8x1xf32> to vector<8x128xf32>
    %680 = arith.mulf %675, %679 : vector<8x128xf32>
    %681 = tpu.concatenate %656, %669, %680 in 1 : vector<8x128xf32>, vector<8x128xf32>, vector<8x128xf32> -> vector<8x384xf32>
    %c0_217 = arith.constant 0 : index
    %c0_218 = arith.constant 0 : index
    %682 = vector.load %arg19[%c0_217, %c0_218] : memref<8x384xf32, #tpu.memory_space<vmem>>, vector<8x384xf32>
    tpu.vector_store %arg19[%c0_217, %c0_218], %681 {strides = array<i32>} : memref<8x384xf32, #tpu.memory_space<vmem>>, vector<8x384xf32>,
    return
  }
  func.func @transform_0(%arg0: i32) -> (i32, i32, i32) {
    %c0_i32 = arith.constant 0 : i32
    %c0_i32_0 = arith.constant 0 : i32
    %c0_i32_1 = arith.constant 0 : i32
    return %c0_i32, %arg0, %c0_i32_0 : i32, i32, i32
  }
  func.func @transform_1(%arg0: i32) -> (i32, i32, i32) {
    %c0_i32 = arith.constant 0 : i32
    %c0_i32_0 = arith.constant 0 : i32
    %c0_i32_1 = arith.constant 0 : i32
    return %c0_i32, %arg0, %c0_i32_0 : i32, i32, i32
  }
  func.func @transform_2(%arg0: i32) -> (i32, i32) {
    %c0_i32 = arith.constant 0 : i32
    %c0_i32_0 = arith.constant 0 : i32
    %c0_i32_1 = arith.constant 0 : i32
    return %c0_i32, %c0_i32_0 : i32, i32
  }
  func.func @transform_3(%arg0: i32) -> (i32, i32) {
    %c0_i32 = arith.constant 0 : i32
    %c0_i32_0 = arith.constant 0 : i32
    %c0_i32_1 = arith.constant 0 : i32
    return %c0_i32, %c0_i32_0 : i32, i32
  }
  func.func @transform_4(%arg0: i32) -> (i32, i32) {
    %c0_i32 = arith.constant 0 : i32
    %c0_i32_0 = arith.constant 0 : i32
    %c0_i32_1 = arith.constant 0 : i32
    return %c0_i32, %c0_i32_0 : i32, i32
  }
  func.func @transform_5(%arg0: i32) -> (i32, i32) {
    %c0_i32 = arith.constant 0 : i32
    %c0_i32_0 = arith.constant 0 : i32
    %c0_i32_1 = arith.constant 0 : i32
    return %c0_i32, %c0_i32_0 : i32, i32
  }
  func.func @transform_6(%arg0: i32) -> (i32, i32) {
    %c0_i32 = arith.constant 0 : i32
    %c0_i32_0 = arith.constant 0 : i32
    %c0_i32_1 = arith.constant 0 : i32
    return %c0_i32, %c0_i32_0 : i32, i32
  }
  func.func @transform_7(%arg0: i32) -> (i32, i32) {
    %c0_i32 = arith.constant 0 : i32
    %c0_i32_0 = arith.constant 0 : i32
    %c0_i32_1 = arith.constant 0 : i32
    return %c0_i32, %c0_i32_0 : i32, i32
  }
  func.func @transform_8(%arg0: i32) -> (i32, i32) {
    %c0_i32 = arith.constant 0 : i32
    %c0_i32_0 = arith.constant 0 : i32
    %c0_i32_1 = arith.constant 0 : i32
    return %c0_i32, %c0_i32_0 : i32, i32
  }
  func.func @transform_9(%arg0: i32) -> (i32, i32) {
    %c0_i32 = arith.constant 0 : i32
    %c0_i32_0 = arith.constant 0 : i32
    %c0_i32_1 = arith.constant 0 : i32
    return %c0_i32, %c0_i32_0 : i32, i32
  }
  func.func @transform_10(%arg0: i32) -> (i32, i32) {
    %c0_i32 = arith.constant 0 : i32
    %c0_i32_0 = arith.constant 0 : i32
    %c0_i32_1 = arith.constant 0 : i32
    return %c0_i32, %c0_i32_0 : i32, i32
  }
  func.func @transform_11(%arg0: i32) -> (i32, i32) {
    %c0_i32 = arith.constant 0 : i32
    %c0_i32_0 = arith.constant 0 : i32
    %c0_i32_1 = arith.constant 0 : i32
    return %c0_i32, %c0_i32_0 : i32, i32
  }
  func.func @transform_12(%arg0: i32) -> (i32, i32) {
    %c0_i32 = arith.constant 0 : i32
    %c0_i32_0 = arith.constant 0 : i32
    %c0_i32_1 = arith.constant 0 : i32
    return %c0_i32, %c0_i32_0 : i32, i32
  }
  func.func @transform_13(%arg0: i32) -> (i32, i32) {
    %c0_i32 = arith.constant 0 : i32
    %c0_i32_0 = arith.constant 0 : i32
    %c0_i32_1 = arith.constant 0 : i32
    return %c0_i32, %c0_i32_0 : i32, i32
  }
  func.func @transform_14(%arg0: i32) -> (i32, i32) {
    %c0_i32 = arith.constant 0 : i32
    %c0_i32_0 = arith.constant 0 : i32
    %c0_i32_1 = arith.constant 0 : i32
    return %c0_i32, %c0_i32_0 : i32, i32
  }
  func.func @transform_15(%arg0: i32) -> (i32, i32) {
    %c0_i32 = arith.constant 0 : i32
    %c0_i32_0 = arith.constant 0 : i32
    %c0_i32_1 = arith.constant 0 : i32
    return %c0_i32, %c0_i32_0 : i32, i32
  }
  func.func @transform_16(%arg0: i32) -> (i32, i32) {
    %c0_i32 = arith.constant 0 : i32
    %c0_i32_0 = arith.constant 0 : i32
    %c0_i32_1 = arith.constant 0 : i32
    return %c0_i32, %c0_i32_0 : i32, i32
  }
  func.func @transform_17(%arg0: i32) -> (i32, i32, i32) {
    %c0_i32 = arith.constant 0 : i32
    %c0_i32_0 = arith.constant 0 : i32
    %c0_i32_1 = arith.constant 0 : i32
    return %c0_i32, %arg0, %c0_i32_0 : i32, i32, i32
  }
  func.func @transform_18(%arg0: i32) -> (i32, i32) {
    %c0_i32 = arith.constant 0 : i32
    %c0_i32_0 = arith.constant 0 : i32
    return %arg0, %c0_i32 : i32, i32
  }
}

</mosaic_0001>

<llo_original>
// kernel: tpu_custom_call.1
$region0: #{tpu_custom_call.1}
  #allocation0 [shape = 'u32[]', space=smem, size = 0x4, offset = 0x4, fixed_abs, tag = 'smem constant byte address 0x4 - core index']
  #allocation1 [shape = 'u32[144,128]{1,0:T(1,128)}', space=vmem, size = 0x12000, scoped, tag = 'internal scratch']
  #allocation2 [shape = 'f32[8,8,128]{2,1,0:T(8,128)}', space=vmem, size = 0x8000, scoped, tag = 'scratch operand']
  #allocation3 [shape = 'f32[8,8,384]{2,1,0:T(8,128)}', space=vmem, size = 0x18000, scoped, tag = 'scratch operand']
  %s0 = inlined_call_operand.vmem [shape: f32[8,8,24], index: 0, kind: input, shape index: {}]
  %s1 = inlined_call_operand.hbm [shape: f32[2,8,128], index: 1, kind: input, shape index: {}]
  %s2 = inlined_call_operand.vmem [shape: f32[24,384], index: 2, kind: input, shape index: {}]
  %s3 = inlined_call_operand.hbm [shape: f32[128,384], index: 3, kind: input, shape index: {}]
  %s4 = inlined_call_operand.vmem [shape: f32[1,384], index: 4, kind: input, shape index: {}]
  %s5 = inlined_call_operand.hbm [shape: f32[1,128], index: 5, kind: input, shape index: {}]
  %s6 = inlined_call_operand.hbm [shape: f32[128,384], index: 6, kind: input, shape index: {}]
  %s7 = inlined_call_operand.hbm [shape: f32[128,384], index: 7, kind: input, shape index: {}]
  %s8 = inlined_call_operand.vmem [shape: f32[1,384], index: 8, kind: input, shape index: {}]
  %s9 = inlined_call_operand.hbm [shape: f32[1,128], index: 9, kind: input, shape index: {}]
  %s10 = inlined_call_operand.vmem [shape: f32[128,64], index: 10, kind: input, shape index: {}]
  %s11 = inlined_call_operand.hbm [shape: f32[24,64], index: 11, kind: input, shape index: {}]
  %s12 = inlined_call_operand.hbm [shape: f32[1,64], index: 12, kind: input, shape index: {}]
  %s13 = inlined_call_operand.vmem [shape: f32[64,32], index: 13, kind: input, shape index: {}]
  %s14 = inlined_call_operand.vmem [shape: f32[1,32], index: 14, kind: input, shape index: {}]
  %s15 = inlined_call_operand.vmem [shape: f32[32,384], index: 15, kind: input, shape index: {}]
  %s16 = inlined_call_operand.vmem [shape: f32[1,384], index: 16, kind: input, shape index: {}]
  %s17 = inlined_call_operand.hbm [shape: f32[2,8,128], index: 17, kind: output, shape index: {0}]
  %s18 = inlined_call_operand.hbm [shape: f32[8,384], index: 18, kind: output, shape index: {1}]
  %19 = xla_tuple %s17, %s18
  %s20 = sld [smem:[#allocation0]]
  $region118: #{tpu_custom_call.1} parent=0
    _
  %s22 = ssub.s32 1, %s20
  %s23 = scalar_select 0, %s22, %s20
  $region1: #{tpu_custom_call.1} parent=0
    #allocation4 [shape = 'u8[8192]{0}', space=vmem, size = 0x2000, scoped, tag = 'input window, operand 1, single buffered']
    #allocation5 [shape = 's32[1]{0}', space=sflag, size = 0x4, scoped, tag = 'scoped memory for tpu_custom_call.1']
    #allocation6 [shape = 's32[1]{0}', space=sflag, size = 0x4, scoped, tag = 'scoped memory for tpu_custom_call.1']
    #allocation7 [shape = 'u8[196608]{0}', space=vmem, size = 0x30000, scoped, tag = 'input window, operand 3, single buffered']
    #allocation8 [shape = 's32[1]{0}', space=sflag, size = 0x4, scoped, tag = 'scoped memory for tpu_custom_call.1']
    #allocation9 [shape = 'u8[512]{0}', space=vmem, size = 0x400, scoped, tag = 'input window, operand 5, single buffered']
    #allocation10 [shape = 'u8[196608]{0}', space=vmem, size = 0x30000, scoped, tag = 'input window, operand 6, single buffered']
    #allocation11 [shape = 's32[1]{0}', space=sflag, size = 0x4, scoped, tag = 'scoped memory for tpu_custom_call.1']
    #allocation12 [shape = 'u8[196608]{0}', space=vmem, size = 0x30000, scoped, tag = 'input window, operand 7, single buffered']
    #allocation13 [shape = 'u8[512]{0}', space=vmem, size = 0x400, scoped, tag = 'input window, operand 9, single buffered']
    #allocation14 [shape = 's32[1]{0}', space=sflag, size = 0x4, scoped, tag = 'scoped memory for tpu_custom_call.1']
    #allocation15 [shape = 'u8[12288]{0}', space=vmem, size = 0x3000, scoped, tag = 'input window, operand 11, single buffered']
    #allocation16 [shape = 'u8[512]{0}', space=vmem, size = 0x400, scoped, tag = 'input window, operand 12, single buffered']
    #allocation17 [shape = 's32[1]{0}', space=sflag, size = 0x4, scoped, tag = 'scoped memory for tpu_custom_call.1']
    #allocation18 [shape = 'u8[8192]{0}', space=vmem, size = 0x2000, scoped, tag = 'output window, operand 0, single buffered']
    #allocation19 [shape = 'u8[12288]{0}', space=vmem, size = 0x3000, scoped, tag = 'output window, operand 1, single buffered']
    #allocation20 [shape = 's32[1]{0}', space=sflag, size = 0x4, scoped, tag = 'scoped memory for tpu_custom_call.1']
    %24 = vsyncpa [#allocation5], 0
    %25 = vsyncpa [#allocation8], 0
    %26 = vsyncpa [#allocation11], 0
    %27 = vsyncpa [#allocation14], 0
    %28 = vsyncpa [#allocation17], 0
    %29 = vsyncpa [#allocation6], 0
    %30 = vsyncpa [#allocation20], 0
    // Predicated region
    $region2: #{tpu_custom_call.1} parent=1 // pred_check
      _
    $region3: #{tpu_custom_call.1} parent=1 // pred_check_branch
      %32 = sbr.rel (0) target = $region5
    $region4: #{tpu_custom_call.1} parent=1 // pred_region
      _
    $region5: #{tpu_custom_call.1} parent=1 // pred_fallthru
      _
    // Predicated region
    $region6: #{tpu_custom_call.1} parent=1 // pred_check
      _
    $region7: #{tpu_custom_call.1} parent=1 // pred_check_branch
      %34 = sbr.rel (0) target = $region9
    $region8: #{tpu_custom_call.1} parent=1 // pred_region
      %s36 = ssub.s32 256, 256
      %37 = vsyncadd [#allocation5], %s36
      %s38 = sshll.u32 [#allocation4], 4
      %s39 = int_to_ptr.vmem [resolvable:$true] %s38
      %44 = dma.hbm_to_vmem [thread:$0]  %s1, 256, %s39, [#allocation5], 128, 128, 8
    $region9: #{tpu_custom_call.1} parent=1 // pred_fallthru
      _
    // Predicated region
    $region10: #{tpu_custom_call.1} parent=1 // pred_check
      _
    $region11: #{tpu_custom_call.1} parent=1 // pred_check_branch
      %46 = sbr.rel (0) target = $region13
    $region12: #{tpu_custom_call.1} parent=1 // pred_region
      _
    $region13: #{tpu_custom_call.1} parent=1 // pred_fallthru
      _
    // Predicated region
    $region14: #{tpu_custom_call.1} parent=1 // pred_check
      _
    $region15: #{tpu_custom_call.1} parent=1 // pred_check_branch
      %48 = sbr.rel (0) target = $region17
    $region16: #{tpu_custom_call.1} parent=1 // pred_region
      %s50 = ssub.s32 6144, 6144
      %51 = vsyncadd [#allocation8], %s50
      %s52 = sshll.u32 [#allocation7], 4
      %s53 = int_to_ptr.vmem [resolvable:$true] %s52
      %58 = dma.hbm_to_vmem [thread:$0]  %s3, 6144, %s53, [#allocation8], 384, 384, 24
    $region17: #{tpu_custom_call.1} parent=1 // pred_fallthru
      _
    // Predicated region
    $region18: #{tpu_custom_call.1} parent=1 // pred_check
      _
    $region19: #{tpu_custom_call.1} parent=1 // pred_check_branch
      %60 = sbr.rel (0) target = $region21
    $region20: #{tpu_custom_call.1} parent=1 // pred_region
      _
    $region21: #{tpu_custom_call.1} parent=1 // pred_fallthru
      _
    // Predicated region
    $region22: #{tpu_custom_call.1} parent=1 // pred_check
      _
    $region23: #{tpu_custom_call.1} parent=1 // pred_check_branch
      %62 = sbr.rel (0) target = $region25
    $region24: #{tpu_custom_call.1} parent=1 // pred_region
      %s64 = ssub.s32 16, 16
      %65 = vsyncadd [#allocation8], %s64
      %s67 = sshll.u32 [#allocation9], 4
      %s68 = int_to_ptr.vmem [resolvable:$true] %s67
      %70 = dma.hbm_to_vmem [thread:$0]  %s5, 16, %s68, [#allocation8]
    $region25: #{tpu_custom_call.1} parent=1 // pred_fallthru
      _
    // Predicated region
    $region26: #{tpu_custom_call.1} parent=1 // pred_check
      _
    $region27: #{tpu_custom_call.1} parent=1 // pred_check_branch
      %72 = sbr.rel (0) target = $region29
    $region28: #{tpu_custom_call.1} parent=1 // pred_region
      %s74 = ssub.s32 6144, 6144
      %75 = vsyncadd [#allocation11], %s74
      %s76 = sshll.u32 [#allocation10], 4
      %s77 = int_to_ptr.vmem [resolvable:$true] %s76
      %82 = dma.hbm_to_vmem [thread:$0]  %s6, 6144, %s77, [#allocation11], 384, 384, 24
    $region29: #{tpu_custom_call.1} parent=1 // pred_fallthru
      _
    // Predicated region
    $region30: #{tpu_custom_call.1} parent=1 // pred_check
      _
    $region31: #{tpu_custom_call.1} parent=1 // pred_check_branch
      %84 = sbr.rel (0) target = $region33
    $region32: #{tpu_custom_call.1} parent=1 // pred_region
      %s86 = ssub.s32 6144, 6144
      %87 = vsyncadd [#allocation11], %s86
      %s88 = sshll.u32 [#allocation12], 4
      %s89 = int_to_ptr.vmem [resolvable:$true] %s88
      %94 = dma.hbm_to_vmem [thread:$0]  %s7, 6144, %s89, [#allocation11], 384, 384, 24
    $region33: #{tpu_custom_call.1} parent=1 // pred_fallthru
      _
    // Predicated region
    $region34: #{tpu_custom_call.1} parent=1 // pred_check
      _
    $region35: #{tpu_custom_call.1} parent=1 // pred_check_branch
      %96 = sbr.rel (0) target = $region37
    $region36: #{tpu_custom_call.1} parent=1 // pred_region
      _
    $region37: #{tpu_custom_call.1} parent=1 // pred_fallthru
      _
    // Predicated region
    $region38: #{tpu_custom_call.1} parent=1 // pred_check
      _
    $region39: #{tpu_custom_call.1} parent=1 // pred_check_branch
      %98 = sbr.rel (0) target = $region41
    $region40: #{tpu_custom_call.1} parent=1 // pred_region
      %s100 = ssub.s32 16, 16
      %101 = vsyncadd [#allocation14], %s100
      %s103 = sshll.u32 [#allocation13], 4
      %s104 = int_to_ptr.vmem [resolvable:$true] %s103
      %106 = dma.hbm_to_vmem [thread:$0]  %s9, 16, %s104, [#allocation14]
    $region41: #{tpu_custom_call.1} parent=1 // pred_fallthru
      _
    // Predicated region
    $region42: #{tpu_custom_call.1} parent=1 // pred_check
      _
    $region43: #{tpu_custom_call.1} parent=1 // pred_check_branch
      %108 = sbr.rel (0) target = $region45
    $region44: #{tpu_custom_call.1} parent=1 // pred_region
      _
    $region45: #{tpu_custom_call.1} parent=1 // pred_fallthru
      _
    // Predicated region
    $region46: #{tpu_custom_call.1} parent=1 // pred_check
      _
    $region47: #{tpu_custom_call.1} parent=1 // pred_check_branch
      %110 = sbr.rel (0) target = $region49
    $region48: #{tpu_custom_call.1} parent=1 // pred_region
      %s112 = ssub.s32 384, 384
      %113 = vsyncadd [#allocation14], %s112
      %s114 = sshll.u32 [#allocation15], 4
      %s115 = int_to_ptr.vmem [resolvable:$true] %s114
      %120 = dma.hbm_to_vmem [thread:$0]  %s11, 384, %s115, [#allocation14], 128, 128, 8
    $region49: #{tpu_custom_call.1} parent=1 // pred_fallthru
      _
    // Predicated region
    $region50: #{tpu_custom_call.1} parent=1 // pred_check
      _
    $region51: #{tpu_custom_call.1} parent=1 // pred_check_branch
      %122 = sbr.rel (0) target = $region53
    $region52: #{tpu_custom_call.1} parent=1 // pred_region
      %s124 = ssub.s32 16, 16
      %125 = vsyncadd [#allocation17], %s124
      %s127 = sshll.u32 [#allocation16], 4
      %s128 = int_to_ptr.vmem [resolvable:$true] %s127
      %130 = dma.hbm_to_vmem [thread:$0]  %s12, 16, %s128, [#allocation17]
    $region53: #{tpu_custom_call.1} parent=1 // pred_fallthru
      _
    // Predicated region
    $region54: #{tpu_custom_call.1} parent=1 // pred_check
      _
    $region55: #{tpu_custom_call.1} parent=1 // pred_check_branch
      %132 = sbr.rel (0) target = $region57
    $region56: #{tpu_custom_call.1} parent=1 // pred_region
      _
    $region57: #{tpu_custom_call.1} parent=1 // pred_fallthru
      _
    // Predicated region
    $region58: #{tpu_custom_call.1} parent=1 // pred_check
      _
    $region59: #{tpu_custom_call.1} parent=1 // pred_check_branch
      %134 = sbr.rel (0) target = $region61
    $region60: #{tpu_custom_call.1} parent=1 // pred_region
      _
    $region61: #{tpu_custom_call.1} parent=1 // pred_fallthru
      _
    // Predicated region
    $region62: #{tpu_custom_call.1} parent=1 // pred_check
      _
    $region63: #{tpu_custom_call.1} parent=1 // pred_check_branch
      %136 = sbr.rel (0) target = $region65
    $region64: #{tpu_custom_call.1} parent=1 // pred_region
      _
    $region65: #{tpu_custom_call.1} parent=1 // pred_fallthru
      _
    // Predicated region
    $region66: #{tpu_custom_call.1} parent=1 // pred_check
      _
    $region67: #{tpu_custom_call.1} parent=1 // pred_check_branch
      %138 = sbr.rel (0) target = $region69
    $region68: #{tpu_custom_call.1} parent=1 // pred_region
      _
    $region69: #{tpu_custom_call.1} parent=1 // pred_fallthru
      _
    // Predicated region
    $region70: #{tpu_custom_call.1} parent=1 // pred_check
      _
    $region71: #{tpu_custom_call.1} parent=1 // pred_check_branch
      %140 = sbr.rel (0) target = $region73
    $region72: #{tpu_custom_call.1} parent=1 // pred_region
      %141 = dma.done [#allocation5], 256
    $region73: #{tpu_custom_call.1} parent=1 // pred_fallthru
      _
    // Predicated region
    $region74: #{tpu_custom_call.1} parent=1 // pred_check
      _
    $region75: #{tpu_custom_call.1} parent=1 // pred_check_branch
      %143 = sbr.rel (0) target = $region77
    $region76: #{tpu_custom_call.1} parent=1 // pred_region
      %144 = dma.done [#allocation8], 6144
    $region77: #{tpu_custom_call.1} parent=1 // pred_fallthru
      _
    // Predicated region
    $region78: #{tpu_custom_call.1} parent=1 // pred_check
      _
    $region79: #{tpu_custom_call.1} parent=1 // pred_check_branch
      %146 = sbr.rel (0) target = $region81
    $region80: #{tpu_custom_call.1} parent=1 // pred_region
      %147 = dma.done [#allocation8], 16
    $region81: #{tpu_custom_call.1} parent=1 // pred_fallthru
      _
    // Predicated region
    $region82: #{tpu_custom_call.1} parent=1 // pred_check
      _
    $region83: #{tpu_custom_call.1} parent=1 // pred_check_branch
      %149 = sbr.rel (0) target = $region85
    $region84: #{tpu_custom_call.1} parent=1 // pred_region
      %150 = dma.done [#allocation11], 6144
    $region85: #{tpu_custom_call.1} parent=1 // pred_fallthru
      _
    // Predicated region
    $region86: #{tpu_custom_call.1} parent=1 // pred_check
      _
    $region87: #{tpu_custom_call.1} parent=1 // pred_check_branch
      %152 = sbr.rel (0) target = $region89
    $region88: #{tpu_custom_call.1} parent=1 // pred_region
      %153 = dma.done [#allocation11], 6144
    $region89: #{tpu_custom_call.1} parent=1 // pred_fallthru
      _
    // Predicated region
    $region90: #{tpu_custom_call.1} parent=1 // pred_check
      _
    $region91: #{tpu_custom_call.1} parent=1 // pred_check_branch
      %155 = sbr.rel (0) target = $region93
    $region92: #{tpu_custom_call.1} parent=1 // pred_region
      %156 = dma.done [#allocation14], 16
    $region93: #{tpu_custom_call.1} parent=1 // pred_fallthru
      _
    // Predicated region
    $region94: #{tpu_custom_call.1} parent=1 // pred_check
      _
    $region95: #{tpu_custom_call.1} parent=1 // pred_check_branch
      %158 = sbr.rel (0) target = $region97
    $region96: #{tpu_custom_call.1} parent=1 // pred_region
      %159 = dma.done [#allocation14], 384
    $region97: #{tpu_custom_call.1} parent=1 // pred_fallthru
      _
    // Predicated region
    $region98: #{tpu_custom_call.1} parent=1 // pred_check
      _
    $region99: #{tpu_custom_call.1} parent=1 // pred_check_branch
      %161 = sbr.rel (0) target = $region101
    $region100: #{tpu_custom_call.1} parent=1 // pred_region
      %162 = dma.done [#allocation17], 16
    $region101: #{tpu_custom_call.1} parent=1 // pred_fallthru
      _
    %v163 = vld [vmem:[%s2] sm:$0xff]
    %v164 = vld [vmem:[%s2 + $0x8] sm:$0xff]
    %v165 = vld [vmem:[%s2 + $0x10] sm:$0xff]
    %v166 = vld [vmem:[%s2 + $0x18] sm:$0xff]
    %v167 = vld [vmem:[%s2 + $0x20] sm:$0xff]
    %v168 = vld [vmem:[%s2 + $0x28] sm:$0xff]
    %v169 = vld [vmem:[%s2 + $0x30] sm:$0xff]
    %v170 = vld [vmem:[%s2 + $0x38] sm:$0xff]
    %v171 = vld [vmem:[%s2 + $0x40] sm:$0xff]
    %v172 = vld [vmem:[#allocation7] sm:$0xff]
    %v173 = vld [vmem:[#allocation7 + $0x8] sm:$0xff]
    %v174 = vld [vmem:[#allocation7 + $0x10] sm:$0xff]
    %v175 = vld [vmem:[#allocation7 + $0x18] sm:$0xff]
    %v176 = vld [vmem:[#allocation7 + $0x20] sm:$0xff]
    %v177 = vld [vmem:[#allocation7 + $0x28] sm:$0xff]
    %v178 = vld [vmem:[#allocation7 + $0x30] sm:$0xff]
    %v179 = vld [vmem:[#allocation7 + $0x38] sm:$0xff]
    %v180 = vld [vmem:[#allocation7 + $0x40] sm:$0xff]
    %v181 = vld [vmem:[#allocation7 + $0x48] sm:$0xff]
    %v182 = vld [vmem:[#allocation7 + $0x50] sm:$0xff]
    %v183 = vld [vmem:[#allocation7 + $0x58] sm:$0xff]
    %v184 = vld [vmem:[#allocation7 + $0x60] sm:$0xff]
    %v185 = vld [vmem:[#allocation7 + $0x68] sm:$0xff]
    %v186 = vld [vmem:[#allocation7 + $0x70] sm:$0xff]
    %v187 = vld [vmem:[#allocation7 + $0x78] sm:$0xff]
    %v188 = vld [vmem:[#allocation7 + $0x80] sm:$0xff]
    %v189 = vld [vmem:[#allocation7 + $0x88] sm:$0xff]
    %v190 = vld [vmem:[#allocation7 + $0x90] sm:$0xff]
    %v191 = vld [vmem:[#allocation7 + $0x98] sm:$0xff]
    %v192 = vld [vmem:[#allocation7 + $0xa0] sm:$0xff]
    %v193 = vld [vmem:[#allocation7 + $0xa8] sm:$0xff]
    %v194 = vld [vmem:[#allocation7 + $0xb0] sm:$0xff]
    %v195 = vld [vmem:[#allocation7 + $0xb8] sm:$0xff]
    %v196 = vld [vmem:[#allocation7 + $0xc0] sm:$0xff]
    %v197 = vld [vmem:[#allocation7 + $0xc8] sm:$0xff]
    %v198 = vld [vmem:[#allocation7 + $0xd0] sm:$0xff]
    %v199 = vld [vmem:[#allocation7 + $0xd8] sm:$0xff]
    %v200 = vld [vmem:[#allocation7 + $0xe0] sm:$0xff]
    %v201 = vld [vmem:[#allocation7 + $0xe8] sm:$0xff]
    %v202 = vld [vmem:[#allocation7 + $0xf0] sm:$0xff]
    %v203 = vld [vmem:[#allocation7 + $0xf8] sm:$0xff]
    %v204 = vld [vmem:[#allocation7 + $0x100] sm:$0xff]
    %v205 = vld [vmem:[#allocation7 + $0x108] sm:$0xff]
    %v206 = vld [vmem:[#allocation7 + $0x110] sm:$0xff]
    %v207 = vld [vmem:[#allocation7 + $0x118] sm:$0xff]
    %v208 = vld [vmem:[#allocation7 + $0x120] sm:$0xff]
    %v209 = vld [vmem:[#allocation7 + $0x128] sm:$0xff]
    %v210 = vld [vmem:[#allocation7 + $0x130] sm:$0xff]
    %v211 = vld [vmem:[#allocation7 + $0x138] sm:$0xff]
    %v212 = vld [vmem:[#allocation7 + $0x140] sm:$0xff]
    %v213 = vld [vmem:[#allocation7 + $0x148] sm:$0xff]
    %v214 = vld [vmem:[#allocation7 + $0x150] sm:$0xff]
    %v215 = vld [vmem:[#allocation7 + $0x158] sm:$0xff]
    %v216 = vld [vmem:[#allocation7 + $0x160] sm:$0xff]
    %v217 = vld [vmem:[#allocation7 + $0x168] sm:$0xff]
    %v218 = vld [vmem:[#allocation7 + $0x170] sm:$0xff]
    %v219 = vld [vmem:[#allocation7 + $0x178] sm:$0xff]
    %v220 = vld [vmem:[%s4] sm:$0x7]
    %v221 = vld [vmem:[#allocation9] sm:$0x1]
    %v222 = vld [vmem:[%s0] sm:$0xff]
    %v223 = vld [vmem:[%s0 + $0x8] sm:$0xff]
    %v224 = vld [vmem:[%s0 + $0x10] sm:$0xff]
    %v225 = vld [vmem:[%s0 + $0x18] sm:$0xff]
    %v226 = vld [vmem:[%s0 + $0x20] sm:$0xff]
    %v227 = vld [vmem:[%s0 + $0x28] sm:$0xff]
    %v228 = vld [vmem:[%s0 + $0x30] sm:$0xff]
    %v229 = vld [vmem:[%s0 + $0x38] sm:$0xff]
    %v231 = vlaneseq
    %v232 = vshrl.u32 %v231, 7
    %v233 = vsub.s32 0, %v232
    %v234 = vrot.slane %v220, %v233
    %v235 = vlaneseq
    %v236 = vshrl.u32 %v235, 7
    %v237 = vsub.s32 1, %v236
    %v238 = vrot.slane %v220, %v237
    %v239 = vlaneseq
    %v240 = vshrl.u32 %v239, 7
    %v241 = vsub.s32 2, %v240
    %v242 = vrot.slane %v220, %v241
    %vm246 = vcmask 195584
    %v248 = vsel %vm246, %v222, 0
    %v251 = vsel %vm246, %v223, 0
    %v254 = vsel %vm246, %v224, 0
    %v257 = vsel %vm246, %v225, 0
    %v260 = vsel %vm246, %v226, 0
    %v263 = vsel %vm246, %v227, 0
    %v266 = vsel %vm246, %v228, 0
    %v269 = vsel %vm246, %v229, 0
    %271 = vmatprep.subr.mxu0 %v164
    %272 = vmatpush1.msra.mxu0 %v163
    %273 = vmatprep.subr.mxu0 %v167
    %274 = vmatpush1.msra.mxu0 %v166
    %275 = vmatprep.subr.mxu0 %v170
    %276 = vmatpush1.msra.mxu0 %v169
    %277 = vmatprep.subr.mxu0 0.0
    %278 = vmatpush1.msra.mxu0 0.0
    %279 = vmatprep.subr.mxu0 0.0
    %280 = vmatpush1.msra.mxu0 0.0
    %281 = vmatprep.subr.mxu0 0.0
    %282 = vmatpush1.msra.mxu0 0.0
    %283 = vmatprep.subr.mxu0 0.0
    %284 = vmatpush1.msra.mxu0 0.0
    %285 = vmatprep.subr.mxu0 0.0
    %286 = vmatpush1.msra.mxu0 0.0
    %287 = vmatprep.subr.mxu0 0.0
    %288 = vmatpush1.msra.mxu0 0.0
    %289 = vmatprep.subr.mxu0 0.0
    %290 = vmatpush1.msra.mxu0 0.0
    %291 = vmatprep.subr.mxu0 0.0
    %292 = vmatpush1.msra.mxu0 0.0
    %293 = vmatprep.subr.mxu0 0.0
    %294 = vmatpush1.msra.mxu0 0.0
    %295 = vmatprep.subr.mxu0 0.0
    %296 = vmatpush1.msra.mxu0 0.0
    %297 = vmatprep.subr.mxu0 0.0
    %298 = vmatpush1.msra.mxu0 0.0
    %299 = vmatprep.subr.mxu0 0.0
    %300 = vmatpush1.msra.mxu0 0.0
    %301 = vmatprep.subr.mxu0 0.0
    %302 = vmatpush1.msra.mxu0 0.0
    %303 = vmatprep.subr.mxu0 0.0
    %304 = vmatpush1.msra.mxu0 0.0
    %305 = vmatprep.subr.mxu0 0.0
    %306 = vmatpush1.msra.mxu0 0.0
    %307 = vmatprep.subr.mxu0 0.0
    %308 = vmatpush1.msra.mxu0 0.0
    %309 = vmatprep.subr.mxu0 0.0
    %310 = vmatpush1.msra.mxu0 0.0
    %311 = vmatprep.subr.mxu0 0.0
    %312 = vmatpush1.msra.mxu0 0.0
    %313 = vmatprep.subr.mxu0 0.0
    %314 = vmatpush1.msra.mxu0 0.0
    %315 = vmatprep.subr.mxu0 0.0
    %316 = vmatpush1.msra.mxu0 0.0
    %317 = vmatprep.subr.mxu0 0.0
    %318 = vmatpush1.msra.mxu0 0.0
    %319 = vmatprep.subr.mxu0 0.0
    %320 = vmatpush1.msra.mxu0 0.0
    %321 = vmatprep.subr.mxu0 0.0
    %322 = vmatpush1.msra.mxu0 0.0
    %323 = vmatprep.subr.mxu0 0.0
    %324 = vmatpush1.msra.mxu0 0.0
    %325 = vmatprep.subr.mxu0 0.0
    %326 = vmatpush1.msra.mxu0 0.0
    %327 = vmatprep.subr.mxu0 0.0
    %328 = vmatpush1.msra.mxu0 0.0
    %329 = vmatprep.subr.mxu0 0.0
    %330 = vmatpush1.msra.mxu0 0.0
    %331 = vmatprep.subr.mxu0 0.0
    %332 = vmatpush1.msra.mxu0 0.0
    %333 = vmatprep.subr.mxu0 0.0
    %334 = vmatpush1.msra.mxu0 0.0
    %335 = vmatprep.mubr.f32.mxu0 0.0
    %336 = vmatmul.mubr.f32.gmra.mrb[0].mxu0 %v248
    %v337 = vpop.f32.mrb[0].mxu0
    %v338 = vadd.f32 %v234, %v337
    %v339 = vpop.f32.mrb[0].mxu0
    %v340 = vadd.f32 %v238, %v339
    %341 = vmatprep.mubr.f32.mxu0 0.0
    %342 = vmatmul.mubr.f32.gmra.mrb[0].mxu0 %v251
    %v343 = vpop.f32.mrb[0].mxu0
    %v344 = vadd.f32 %v234, %v343
    %v345 = vpop.f32.mrb[0].mxu0
    %v346 = vadd.f32 %v238, %v345
    %347 = vmatprep.mubr.f32.mxu0 0.0
    %348 = vmatmul.mubr.f32.gmra.mrb[0].mxu0 %v254
    %v349 = vpop.f32.mrb[0].mxu0
    %v350 = vadd.f32 %v234, %v349
    %v351 = vpop.f32.mrb[0].mxu0
    %v352 = vadd.f32 %v238, %v351
    %353 = vmatprep.mubr.f32.mxu0 0.0
    %354 = vmatmul.mubr.f32.gmra.mrb[0].mxu0 %v257
    %v355 = vpop.f32.mrb[0].mxu0
    %v356 = vadd.f32 %v234, %v355
    %v357 = vpop.f32.mrb[0].mxu0
    %v358 = vadd.f32 %v238, %v357
    %359 = vmatprep.mubr.f32.mxu0 0.0
    %360 = vmatmul.mubr.f32.gmra.mrb[0].mxu0 %v260
    %v361 = vpop.f32.mrb[0].mxu0
    %v362 = vadd.f32 %v234, %v361
    %v363 = vpop.f32.mrb[0].mxu0
    %v364 = vadd.f32 %v238, %v363
    %365 = vmatprep.mubr.f32.mxu0 0.0
    %366 = vmatmul.mubr.f32.gmra.mrb[0].mxu0 %v263
    %v367 = vpop.f32.mrb[0].mxu0
    %v368 = vadd.f32 %v234, %v367
    %v369 = vpop.f32.mrb[0].mxu0
    %v370 = vadd.f32 %v238, %v369
    %371 = vmatprep.mubr.f32.mxu0 0.0
    %372 = vmatmul.mubr.f32.gmra.mrb[0].mxu0 %v266
    %v373 = vpop.f32.mrb[0].mxu0
    %v374 = vadd.f32 %v234, %v373
    %v375 = vpop.f32.mrb[0].mxu0
    %v376 = vadd.f32 %v238, %v375
    %377 = vmatprep.mubr.f32.mxu0 0.0
    %378 = vmatmul.mubr.f32.gmra.mrb[0].mxu0 %v269
    %v379 = vpop.f32.mrb[0].mxu0
    %v380 = vadd.f32 %v234, %v379
    %v381 = vpop.f32.mrb[0].mxu0
    %v382 = vadd.f32 %v238, %v381
    %383 = vdwg.mxu0
    %384 = vmatprep.subr.mxu0 0.0
    %385 = vmatpush1.msra.mxu0 %v165
    %386 = vmatprep.subr.mxu0 0.0
    %387 = vmatpush1.msra.mxu0 %v168
    %388 = vmatprep.subr.mxu0 0.0
    %389 = vmatpush1.msra.mxu0 %v171
    %390 = vmatprep.subr.mxu0 0.0
    %391 = vmatpush1.msra.mxu0 0.0
    %392 = vmatprep.subr.mxu0 0.0
    %393 = vmatpush1.msra.mxu0 0.0
    %394 = vmatprep.subr.mxu0 0.0
    %395 = vmatpush1.msra.mxu0 0.0
    %396 = vmatprep.subr.mxu0 0.0
    %397 = vmatpush1.msra.mxu0 0.0
    %398 = vmatprep.subr.mxu0 0.0
    %399 = vmatpush1.msra.mxu0 0.0
    %400 = vmatprep.subr.mxu0 0.0
    %401 = vmatpush1.msra.mxu0 0.0
    %402 = vmatprep.subr.mxu0 0.0
    %403 = vmatpush1.msra.mxu0 0.0
    %404 = vmatprep.subr.mxu0 0.0
    %405 = vmatpush1.msra.mxu0 0.0
    %406 = vmatprep.subr.mxu0 0.0
    %407 = vmatpush1.msra.mxu0 0.0
    %408 = vmatprep.subr.mxu0 0.0
    %409 = vmatpush1.msra.mxu0 0.0
    %410 = vmatprep.subr.mxu0 0.0
    %411 = vmatpush1.msra.mxu0 0.0
    %412 = vmatprep.subr.mxu0 0.0
    %413 = vmatpush1.msra.mxu0 0.0
    %414 = vmatprep.subr.mxu0 0.0
    %415 = vmatpush1.msra.mxu0 0.0
    %416 = vmatprep.subr.mxu0 0.0
    %417 = vmatpush1.msra.mxu0 0.0
    %418 = vmatprep.subr.mxu0 0.0
    %419 = vmatpush1.msra.mxu0 0.0
    %420 = vmatprep.subr.mxu0 0.0
    %421 = vmatpush1.msra.mxu0 0.0
    %422 = vmatprep.subr.mxu0 0.0
    %423 = vmatpush1.msra.mxu0 0.0
    %424 = vmatprep.subr.mxu0 0.0
    %425 = vmatpush1.msra.mxu0 0.0
    %426 = vmatprep.subr.mxu0 0.0
    %427 = vmatpush1.msra.mxu0 0.0
    %428 = vmatprep.subr.mxu0 0.0
    %429 = vmatpush1.msra.mxu0 0.0
    %430 = vmatprep.subr.mxu0 0.0
    %431 = vmatpush1.msra.mxu0 0.0
    %432 = vmatprep.subr.mxu0 0.0
    %433 = vmatpush1.msra.mxu0 0.0
    %434 = vmatprep.subr.mxu0 0.0
    %435 = vmatpush1.msra.mxu0 0.0
    %436 = vmatprep.subr.mxu0 0.0
    %437 = vmatpush1.msra.mxu0 0.0
    %438 = vmatprep.subr.mxu0 0.0
    %439 = vmatpush1.msra.mxu0 0.0
    %440 = vmatprep.subr.mxu0 0.0
    %441 = vmatpush1.msra.mxu0 0.0
    %442 = vmatprep.subr.mxu0 0.0
    %443 = vmatpush1.msra.mxu0 0.0
    %444 = vmatprep.subr.mxu0 0.0
    %445 = vmatpush1.msra.mxu0 0.0
    %446 = vmatprep.subr.mxu0 0.0
    %447 = vmatpush1.msra.mxu0 0.0
    %448 = vmatprep.mubr.f32.mxu0 0.0
    %449 = vmatmul.mubr.f32.gmra.mrb[0].mxu0 %v248
    %v450 = vpop.f32.mrb[0].mxu0
    %v451 = vadd.f32 %v242, %v450
    %v452 = vpop.f32.mrb[0].mxu0
    %453 = vmatprep.mubr.f32.mxu0 0.0
    %454 = vmatmul.mubr.f32.gmra.mrb[0].mxu0 %v251
    %v455 = vpop.f32.mrb[0].mxu0
    %v456 = vadd.f32 %v242, %v455
    %v457 = vpop.f32.mrb[0].mxu0
    %458 = vmatprep.mubr.f32.mxu0 0.0
    %459 = vmatmul.mubr.f32.gmra.mrb[0].mxu0 %v254
    %v460 = vpop.f32.mrb[0].mxu0
    %v461 = vadd.f32 %v242, %v460
    %v462 = vpop.f32.mrb[0].mxu0
    %463 = vmatprep.mubr.f32.mxu0 0.0
    %464 = vmatmul.mubr.f32.gmra.mrb[0].mxu0 %v257
    %v465 = vpop.f32.mrb[0].mxu0
    %v466 = vadd.f32 %v242, %v465
    %v467 = vpop.f32.mrb[0].mxu0
    %468 = vmatprep.mubr.f32.mxu0 0.0
    %469 = vmatmul.mubr.f32.gmra.mrb[0].mxu0 %v260
    %v470 = vpop.f32.mrb[0].mxu0
    %v471 = vadd.f32 %v242, %v470
    %v472 = vpop.f32.mrb[0].mxu0
    %473 = vmatprep.mubr.f32.mxu0 0.0
    %474 = vmatmul.mubr.f32.gmra.mrb[0].mxu0 %v263
    %v475 = vpop.f32.mrb[0].mxu0
    %v476 = vadd.f32 %v242, %v475
    %v477 = vpop.f32.mrb[0].mxu0
    %478 = vmatprep.mubr.f32.mxu0 0.0
    %479 = vmatmul.mubr.f32.gmra.mrb[0].mxu0 %v266
    %v480 = vpop.f32.mrb[0].mxu0
    %v481 = vadd.f32 %v242, %v480
    %v482 = vpop.f32.mrb[0].mxu0
    %483 = vmatprep.mubr.f32.mxu0 0.0
    %484 = vmatmul.mubr.f32.gmra.mrb[0].mxu0 %v269
    %v485 = vpop.f32.mrb[0].mxu0
    %v486 = vadd.f32 %v242, %v485
    %v487 = vpop.f32.mrb[0].mxu0
    %488 = vdwg.mxu0
    %489 = vst [vmem:[#allocation3] sm:$0xff] %v338
    %490 = vst [vmem:[#allocation3 + $0x8] sm:$0xff] %v340
    %491 = vst [vmem:[#allocation3 + $0x10] sm:$0xff] %v451
    %492 = vst [vmem:[#allocation3 + $0x18] sm:$0xff] %v344
    %493 = vst [vmem:[#allocation3 + $0x20] sm:$0xff] %v346
    %494 = vst [vmem:[#allocation3 + $0x28] sm:$0xff] %v456
    %495 = vst [vmem:[#allocation3 + $0x30] sm:$0xff] %v350
    %496 = vst [vmem:[#allocation3 + $0x38] sm:$0xff] %v352
    %497 = vst [vmem:[#allocation3 + $0x40] sm:$0xff] %v461
    %498 = vst [vmem:[#allocation3 + $0x48] sm:$0xff] %v356
    %499 = vst [vmem:[#allocation3 + $0x50] sm:$0xff] %v358
    %500 = vst [vmem:[#allocation3 + $0x58] sm:$0xff] %v466
    %501 = vst [vmem:[#allocation3 + $0x60] sm:$0xff] %v362
    %502 = vst [vmem:[#allocation3 + $0x68] sm:$0xff] %v364
    %503 = vst [vmem:[#allocation3 + $0x70] sm:$0xff] %v471
    %504 = vst [vmem:[#allocation3 + $0x78] sm:$0xff] %v368
    %505 = vst [vmem:[#allocation3 + $0x80] sm:$0xff] %v370
    %506 = vst [vmem:[#allocation3 + $0x88] sm:$0xff] %v476
    %507 = vst [vmem:[#allocation3 + $0x90] sm:$0xff] %v374
    %508 = vst [vmem:[#allocation3 + $0x98] sm:$0xff] %v376
    %509 = vst [vmem:[#allocation3 + $0xa0] sm:$0xff] %v481
    %510 = vst [vmem:[#allocation3 + $0xa8] sm:$0xff] %v380
    %511 = vst [vmem:[#allocation3 + $0xb0] sm:$0xff] %v382
    %512 = vst [vmem:[#allocation3 + $0xb8] sm:$0xff] %v486
    %v514 = vlaneseq
    %v515 = vshrl.u32 %v514, 7
    %v516 = vsub.s32 0, %v515
    %v517 = vrot.slane %v221, %v516
    %v519 = vld [vmem:[#allocation4] sm:$0xff]
    %v520 = vld [vmem:[#allocation3] sm:$0xff]
    %v521 = vld [vmem:[#allocation3 + $0x8] sm:$0xff]
    %v522 = vld [vmem:[#allocation3 + $0x10] sm:$0xff]
    %523 = vmatprep.subr.mxu0 %v173
    %524 = vmatpush1.msra.mxu0 %v172
    %525 = vmatprep.subr.mxu0 %v176
    %526 = vmatpush1.msra.mxu0 %v175
    %527 = vmatprep.subr.mxu0 %v179
    %528 = vmatpush1.msra.mxu0 %v178
    %529 = vmatprep.subr.mxu0 %v182
    %530 = vmatpush1.msra.mxu0 %v181
    %531 = vmatprep.subr.mxu0 %v185
    %532 = vmatpush1.msra.mxu0 %v184
    %533 = vmatprep.subr.mxu0 %v188
    %534 = vmatpush1.msra.mxu0 %v187
    %535 = vmatprep.subr.mxu0 %v191
    %536 = vmatpush1.msra.mxu0 %v190
    %537 = vmatprep.subr.mxu0 %v194
    %538 = vmatpush1.msra.mxu0 %v193
    %539 = vmatprep.subr.mxu0 %v197
    %540 = vmatpush1.msra.mxu0 %v196
    %541 = vmatprep.subr.mxu0 %v200
    %542 = vmatpush1.msra.mxu0 %v199
    %543 = vmatprep.subr.mxu0 %v203
    %544 = vmatpush1.msra.mxu0 %v202
    %545 = vmatprep.subr.mxu0 %v206
    %546 = vmatpush1.msra.mxu0 %v205
    %547 = vmatprep.subr.mxu0 %v209
    %548 = vmatpush1.msra.mxu0 %v208
    %549 = vmatprep.subr.mxu0 %v212
    %550 = vmatpush1.msra.mxu0 %v211
    %551 = vmatprep.subr.mxu0 %v215
    %552 = vmatpush1.msra.mxu0 %v214
    %553 = vmatprep.subr.mxu0 %v218
    %554 = vmatpush1.msra.mxu0 %v217
    %555 = vmatprep.subr.mxu0 0.0
    %556 = vmatpush1.msra.mxu0 0.0
    %557 = vmatprep.subr.mxu0 0.0
    %558 = vmatpush1.msra.mxu0 0.0
    %559 = vmatprep.subr.mxu0 0.0
    %560 = vmatpush1.msra.mxu0 0.0
    %561 = vmatprep.subr.mxu0 0.0
    %562 = vmatpush1.msra.mxu0 0.0
    %563 = vmatprep.subr.mxu0 0.0
    %564 = vmatpush1.msra.mxu0 0.0
    %565 = vmatprep.subr.mxu0 0.0
    %566 = vmatpush1.msra.mxu0 0.0
    %567 = vmatprep.subr.mxu0 0.0
    %568 = vmatpush1.msra.mxu0 0.0
    %569 = vmatprep.subr.mxu0 0.0
    %570 = vmatpush1.msra.mxu0 0.0
    %571 = vmatprep.subr.mxu0 0.0
    %572 = vmatpush1.msra.mxu0 0.0
    %573 = vmatprep.subr.mxu0 0.0
    %574 = vmatpush1.msra.mxu0 0.0
    %575 = vmatprep.subr.mxu0 0.0
    %576 = vmatpush1.msra.mxu0 0.0
    %577 = vmatprep.subr.mxu0 0.0
    %578 = vmatpush1.msra.mxu0 0.0
    %579 = vmatprep.subr.mxu0 0.0
    %580 = vmatpush1.msra.mxu0 0.0
    %581 = vmatprep.subr.mxu0 0.0
    %582 = vmatpush1.msra.mxu0 0.0
    %583 = vmatprep.subr.mxu0 0.0
    %584 = vmatpush1.msra.mxu0 0.0
    %585 = vmatprep.subr.mxu0 0.0
    %586 = vmatpush1.msra.mxu0 0.0
    %587 = vmatprep.mubr.f32.mxu0 0.0
    %588 = vmatmul.mubr.f32.gmra.mrb[0].mxu0 %v519
    %v589 = vpop.f32.mrb[0].mxu0
    %v590 = vadd.f32 0.0, %v589
    %v591 = vpop.f32.mrb[0].mxu0
    %v592 = vadd.f32 0.0, %v591
    %593 = vdwg.mxu0
    %594 = vmatprep.subr.mxu0 0.0
    %595 = vmatpush1.msra.mxu0 %v174
    %596 = vmatprep.subr.mxu0 0.0
    %597 = vmatpush1.msra.mxu0 %v177
    %598 = vmatprep.subr.mxu0 0.0
    %599 = vmatpush1.msra.mxu0 %v180
    %600 = vmatprep.subr.mxu0 0.0
    %601 = vmatpush1.msra.mxu0 %v183
    %602 = vmatprep.subr.mxu0 0.0
    %603 = vmatpush1.msra.mxu0 %v186
    %604 = vmatprep.subr.mxu0 0.0
    %605 = vmatpush1.msra.mxu0 %v189
    %606 = vmatprep.subr.mxu0 0.0
    %607 = vmatpush1.msra.mxu0 %v192
    %608 = vmatprep.subr.mxu0 0.0
    %609 = vmatpush1.msra.mxu0 %v195
    %610 = vmatprep.subr.mxu0 0.0
    %611 = vmatpush1.msra.mxu0 %v198
    %612 = vmatprep.subr.mxu0 0.0
    %613 = vmatpush1.msra.mxu0 %v201
    %614 = vmatprep.subr.mxu0 0.0
    %615 = vmatpush1.msra.mxu0 %v204
    %616 = vmatprep.subr.mxu0 0.0
    %617 = vmatpush1.msra.mxu0 %v207
    %618 = vmatprep.subr.mxu0 0.0
    %619 = vmatpush1.msra.mxu0 %v210
    %620 = vmatprep.subr.mxu0 0.0
    %621 = vmatpush1.msra.mxu0 %v213
    %622 = vmatprep.subr.mxu0 0.0
    %623 = vmatpush1.msra.mxu0 %v216
    %624 = vmatprep.subr.mxu0 0.0
    %625 = vmatpush1.msra.mxu0 %v219
    %626 = vmatprep.subr.mxu0 0.0
    %627 = vmatpush1.msra.mxu0 0.0
    %628 = vmatprep.subr.mxu0 0.0
    %629 = vmatpush1.msra.mxu0 0.0
    %630 = vmatprep.subr.mxu0 0.0
    %631 = vmatpush1.msra.mxu0 0.0
    %632 = vmatprep.subr.mxu0 0.0
    %633 = vmatpush1.msra.mxu0 0.0
    %634 = vmatprep.subr.mxu0 0.0
    %635 = vmatpush1.msra.mxu0 0.0
    %636 = vmatprep.subr.mxu0 0.0
    %637 = vmatpush1.msra.mxu0 0.0
    %638 = vmatprep.subr.mxu0 0.0
    %639 = vmatpush1.msra.mxu0 0.0
    %640 = vmatprep.subr.mxu0 0.0
    %641 = vmatpush1.msra.mxu0 0.0
    %642 = vmatprep.subr.mxu0 0.0
    %643 = vmatpush1.msra.mxu0 0.0
    %644 = vmatprep.subr.mxu0 0.0
    %645 = vmatpush1.msra.mxu0 0.0
    %646 = vmatprep.subr.mxu0 0.0
    %647 = vmatpush1.msra.mxu0 0.0
    %648 = vmatprep.subr.mxu0 0.0
    %649 = vmatpush1.msra.mxu0 0.0
    %650 = vmatprep.subr.mxu0 0.0
    %651 = vmatpush1.msra.mxu0 0.0
    %652 = vmatprep.subr.mxu0 0.0
    %653 = vmatpush1.msra.mxu0 0.0
    %654 = vmatprep.subr.mxu0 0.0
    %655 = vmatpush1.msra.mxu0 0.0
    %656 = vmatprep.subr.mxu0 0.0
    %657 = vmatpush1.msra.mxu0 0.0
    %658 = vmatprep.mubr.f32.mxu0 0.0
    %659 = vmatmul.mubr.f32.gmra.mrb[0].mxu0 %v519
    %v660 = vpop.f32.mrb[0].mxu0
    %v661 = vadd.f32 0.0, %v660
    %v662 = vpop.f32.mrb[0].mxu0
    %663 = vdwg.mxu0
    %v664 = vadd.f32 %v520, %v590
    %v665 = vxor.u32 %v664, 2147483648
    %v666 = vmul.f32 %v665, 1.442695
    %v667 = vpow.pop %v666
    %v668 = vadd.f32 %v667, 1.0
    %v669 = vrcp.pop %v668
    %v670 = vmul.f32 1.0, %v669
    %v671 = vadd.f32 %v521, %v592
    %v672 = vxor.u32 %v671, 2147483648
    %v673 = vmul.f32 %v672, 1.442695
    %v674 = vpow.pop %v673
    %v675 = vadd.f32 %v674, 1.0
    %v676 = vrcp.pop %v675
    %v677 = vmul.f32 1.0, %v676
    %v678 = vadd.f32 %v661, %v517
    %v679 = vmul.f32 %v670, %v678
    %v680 = vadd.f32 %v522, %v679
    %v681 = vtanh.pop %v680
    %v682 = vsub.f32 1.0, %v677
    %v683 = vmul.f32 %v682, %v681
    %v684 = vmul.f32 %v677, %v519
    %v685 = vadd.f32 %v683, %v684
    %686 = vst [vmem:[#allocation2] sm:$0xff] %v685
    %s687 = scalar_lea.vmem [#allocation3], 24
    %v688 = vld [vmem:[%s687] sm:$0xff]
    %v689 = vld [vmem:[%s687 + $0x8] sm:$0xff]
    %v690 = vld [vmem:[%s687 + $0x10] sm:$0xff]
    %691 = vmatprep.subr.mxu0 %v173
    %692 = vmatpush1.msra.mxu0 %v172
    %693 = vmatprep.subr.mxu0 %v176
    %694 = vmatpush1.msra.mxu0 %v175
    %695 = vmatprep.subr.mxu0 %v179
    %696 = vmatpush1.msra.mxu0 %v178
    %697 = vmatprep.subr.mxu0 %v182
    %698 = vmatpush1.msra.mxu0 %v181
    %699 = vmatprep.subr.mxu0 %v185
    %700 = vmatpush1.msra.mxu0 %v184
    %701 = vmatprep.subr.mxu0 %v188
    %702 = vmatpush1.msra.mxu0 %v187
    %703 = vmatprep.subr.mxu0 %v191
    %704 = vmatpush1.msra.mxu0 %v190
    %705 = vmatprep.subr.mxu0 %v194
    %706 = vmatpush1.msra.mxu0 %v193
    %707 = vmatprep.subr.mxu0 %v197
    %708 = vmatpush1.msra.mxu0 %v196
    %709 = vmatprep.subr.mxu0 %v200
    %710 = vmatpush1.msra.mxu0 %v199
    %711 = vmatprep.subr.mxu0 %v203
    %712 = vmatpush1.msra.mxu0 %v202
    %713 = vmatprep.subr.mxu0 %v206
    %714 = vmatpush1.msra.mxu0 %v205
    %715 = vmatprep.subr.mxu0 %v209
    %716 = vmatpush1.msra.mxu0 %v208
    %717 = vmatprep.subr.mxu0 %v212
    %718 = vmatpush1.msra.mxu0 %v211
    %719 = vmatprep.subr.mxu0 %v215
    %720 = vmatpush1.msra.mxu0 %v214
    %721 = vmatprep.subr.mxu0 %v218
    %722 = vmatpush1.msra.mxu0 %v217
    %723 = vmatprep.subr.mxu0 0.0
    %724 = vmatpush1.msra.mxu0 0.0
    %725 = vmatprep.subr.mxu0 0.0
    %726 = vmatpush1.msra.mxu0 0.0
    %727 = vmatprep.subr.mxu0 0.0
    %728 = vmatpush1.msra.mxu0 0.0
    %729 = vmatprep.subr.mxu0 0.0
    %730 = vmatpush1.msra.mxu0 0.0
    %731 = vmatprep.subr.mxu0 0.0
    %732 = vmatpush1.msra.mxu0 0.0
    %733 = vmatprep.subr.mxu0 0.0
    %734 = vmatpush1.msra.mxu0 0.0
    %735 = vmatprep.subr.mxu0 0.0
    %736 = vmatpush1.msra.mxu0 0.0
    %737 = vmatprep.subr.mxu0 0.0
    %738 = vmatpush1.msra.mxu0 0.0
    %739 = vmatprep.subr.mxu0 0.0
    %740 = vmatpush1.msra.mxu0 0.0
    %741 = vmatprep.subr.mxu0 0.0
    %742 = vmatpush1.msra.mxu0 0.0
    %743 = vmatprep.subr.mxu0 0.0
    %744 = vmatpush1.msra.mxu0 0.0
    %745 = vmatprep.subr.mxu0 0.0
    %746 = vmatpush1.msra.mxu0 0.0
    %747 = vmatprep.subr.mxu0 0.0
    %748 = vmatpush1.msra.mxu0 0.0
    %749 = vmatprep.subr.mxu0 0.0
    %750 = vmatpush1.msra.mxu0 0.0
    %751 = vmatprep.subr.mxu0 0.0
    %752 = vmatpush1.msra.mxu0 0.0
    %753 = vmatprep.subr.mxu0 0.0
    %754 = vmatpush1.msra.mxu0 0.0
    %755 = vmatprep.mubr.f32.mxu0 0.0
    %756 = vmatmul.mubr.f32.gmra.mrb[0].mxu0 %v685
    %v757 = vpop.f32.mrb[0].mxu0
    %v758 = vadd.f32 0.0, %v757
    %v759 = vpop.f32.mrb[0].mxu0
    %v760 = vadd.f32 0.0, %v759
    %761 = vdwg.mxu0
    %762 = vmatprep.subr.mxu0 0.0
    %763 = vmatpush1.msra.mxu0 %v174
    %764 = vmatprep.subr.mxu0 0.0
    %765 = vmatpush1.msra.mxu0 %v177
    %766 = vmatprep.subr.mxu0 0.0
    %767 = vmatpush1.msra.mxu0 %v180
    %768 = vmatprep.subr.mxu0 0.0
    %769 = vmatpush1.msra.mxu0 %v183
    %770 = vmatprep.subr.mxu0 0.0
    %771 = vmatpush1.msra.mxu0 %v186
    %772 = vmatprep.subr.mxu0 0.0
    %773 = vmatpush1.msra.mxu0 %v189
    %774 = vmatprep.subr.mxu0 0.0
    %775 = vmatpush1.msra.mxu0 %v192
    %776 = vmatprep.subr.mxu0 0.0
    %777 = vmatpush1.msra.mxu0 %v195
    %778 = vmatprep.subr.mxu0 0.0
    %779 = vmatpush1.msra.mxu0 %v198
    %780 = vmatprep.subr.mxu0 0.0
    %781 = vmatpush1.msra.mxu0 %v201
    %782 = vmatprep.subr.mxu0 0.0
    %783 = vmatpush1.msra.mxu0 %v204
    %784 = vmatprep.subr.mxu0 0.0
    %785 = vmatpush1.msra.mxu0 %v207
    %786 = vmatprep.subr.mxu0 0.0
    %787 = vmatpush1.msra.mxu0 %v210
    %788 = vmatprep.subr.mxu0 0.0
    %789 = vmatpush1.msra.mxu0 %v213
    %790 = vmatprep.subr.mxu0 0.0
    %791 = vmatpush1.msra.mxu0 %v216
    %792 = vmatprep.subr.mxu0 0.0
    %793 = vmatpush1.msra.mxu0 %v219
    %794 = vmatprep.subr.mxu0 0.0
    %795 = vmatpush1.msra.mxu0 0.0
    %796 = vmatprep.subr.mxu0 0.0
    %797 = vmatpush1.msra.mxu0 0.0
    %798 = vmatprep.subr.mxu0 0.0
    %799 = vmatpush1.msra.mxu0 0.0
    %800 = vmatprep.subr.mxu0 0.0
    %801 = vmatpush1.msra.mxu0 0.0
    %802 = vmatprep.subr.mxu0 0.0
    %803 = vmatpush1.msra.mxu0 0.0
    %804 = vmatprep.subr.mxu0 0.0
    %805 = vmatpush1.msra.mxu0 0.0
    %806 = vmatprep.subr.mxu0 0.0
    %807 = vmatpush1.msra.mxu0 0.0
    %808 = vmatprep.subr.mxu0 0.0
    %809 = vmatpush1.msra.mxu0 0.0
    %810 = vmatprep.subr.mxu0 0.0
    %811 = vmatpush1.msra.mxu0 0.0
    %812 = vmatprep.subr.mxu0 0.0
    %813 = vmatpush1.msra.mxu0 0.0
    %814 = vmatprep.subr.mxu0 0.0
    %815 = vmatpush1.msra.mxu0 0.0
    %816 = vmatprep.subr.mxu0 0.0
    %817 = vmatpush1.msra.mxu0 0.0
    %818 = vmatprep.subr.mxu0 0.0
    %819 = vmatpush1.msra.mxu0 0.0
    %820 = vmatprep.subr.mxu0 0.0
    %821 = vmatpush1.msra.mxu0 0.0
    %822 = vmatprep.subr.mxu0 0.0
    %823 = vmatpush1.msra.mxu0 0.0
    %824 = vmatprep.subr.mxu0 0.0
    %825 = vmatpush1.msra.mxu0 0.0
    %826 = vmatprep.mubr.f32.mxu0 0.0
    %827 = vmatmul.mubr.f32.gmra.mrb[0].mxu0 %v685
    %v828 = vpop.f32.mrb[0].mxu0
    %v829 = vadd.f32 0.0, %v828
    %v830 = vpop.f32.mrb[0].mxu0
    %831 = vdwg.mxu0
    %v832 = vadd.f32 %v688, %v758
    %v833 = vxor.u32 %v832, 2147483648
    %v834 = vmul.f32 %v833, 1.442695
    %v835 = vpow.pop %v834
    %v836 = vadd.f32 %v835, 1.0
    %v837 = vrcp.pop %v836
    %v838 = vmul.f32 1.0, %v837
    %v839 = vadd.f32 %v689, %v760
    %v840 = vxor.u32 %v839, 2147483648
    %v841 = vmul.f32 %v840, 1.442695
    %v842 = vpow.pop %v841
    %v843 = vadd.f32 %v842, 1.0
    %v844 = vrcp.pop %v843
    %v845 = vmul.f32 1.0, %v844
    %v846 = vadd.f32 %v829, %v517
    %v847 = vmul.f32 %v838, %v846
    %v848 = vadd.f32 %v690, %v847
    %v849 = vtanh.pop %v848
    %v850 = vsub.f32 1.0, %v845
    %v851 = vmul.f32 %v850, %v849
    %v852 = vmul.f32 %v845, %v685
    %v853 = vadd.f32 %v851, %v852
    %s854 = scalar_lea.vmem [#allocation2], 8
    %855 = vst [vmem:[%s854] sm:$0xff] %v853
    %s856 = scalar_lea.vmem [#allocation3], 48
    %v857 = vld [vmem:[%s856] sm:$0xff]
    %v858 = vld [vmem:[%s856 + $0x8] sm:$0xff]
    %v859 = vld [vmem:[%s856 + $0x10] sm:$0xff]
    %860 = vmatprep.subr.mxu0 %v173
    %861 = vmatpush1.msra.mxu0 %v172
    %862 = vmatprep.subr.mxu0 %v176
    %863 = vmatpush1.msra.mxu0 %v175
    %864 = vmatprep.subr.mxu0 %v179
    %865 = vmatpush1.msra.mxu0 %v178
    %866 = vmatprep.subr.mxu0 %v182
    %867 = vmatpush1.msra.mxu0 %v181
    %868 = vmatprep.subr.mxu0 %v185
    %869 = vmatpush1.msra.mxu0 %v184
    %870 = vmatprep.subr.mxu0 %v188
    %871 = vmatpush1.msra.mxu0 %v187
    %872 = vmatprep.subr.mxu0 %v191
    %873 = vmatpush1.msra.mxu0 %v190
    %874 = vmatprep.subr.mxu0 %v194
    %875 = vmatpush1.msra.mxu0 %v193
    %876 = vmatprep.subr.mxu0 %v197
    %877 = vmatpush1.msra.mxu0 %v196
    %878 = vmatprep.subr.mxu0 %v200
    %879 = vmatpush1.msra.mxu0 %v199
    %880 = vmatprep.subr.mxu0 %v203
    %881 = vmatpush1.msra.mxu0 %v202
    %882 = vmatprep.subr.mxu0 %v206
    %883 = vmatpush1.msra.mxu0 %v205
    %884 = vmatprep.subr.mxu0 %v209
    %885 = vmatpush1.msra.mxu0 %v208
    %886 = vmatprep.subr.mxu0 %v212
    %887 = vmatpush1.msra.mxu0 %v211
    %888 = vmatprep.subr.mxu0 %v215
    %889 = vmatpush1.msra.mxu0 %v214
    %890 = vmatprep.subr.mxu0 %v218
    %891 = vmatpush1.msra.mxu0 %v217
    %892 = vmatprep.subr.mxu0 0.0
    %893 = vmatpush1.msra.mxu0 0.0
    %894 = vmatprep.subr.mxu0 0.0
    %895 = vmatpush1.msra.mxu0 0.0
    %896 = vmatprep.subr.mxu0 0.0
    %897 = vmatpush1.msra.mxu0 0.0
    %898 = vmatprep.subr.mxu0 0.0
    %899 = vmatpush1.msra.mxu0 0.0
    %900 = vmatprep.subr.mxu0 0.0
    %901 = vmatpush1.msra.mxu0 0.0
    %902 = vmatprep.subr.mxu0 0.0
    %903 = vmatpush1.msra.mxu0 0.0
    %904 = vmatprep.subr.mxu0 0.0
    %905 = vmatpush1.msra.mxu0 0.0
    %906 = vmatprep.subr.mxu0 0.0
    %907 = vmatpush1.msra.mxu0 0.0
    %908 = vmatprep.subr.mxu0 0.0
    %909 = vmatpush1.msra.mxu0 0.0
    %910 = vmatprep.subr.mxu0 0.0
    %911 = vmatpush1.msra.mxu0 0.0
    %912 = vmatprep.subr.mxu0 0.0
    %913 = vmatpush1.msra.mxu0 0.0
    %914 = vmatprep.subr.mxu0 0.0
    %915 = vmatpush1.msra.mxu0 0.0
    %916 = vmatprep.subr.mxu0 0.0
    %917 = vmatpush1.msra.mxu0 0.0
    %918 = vmatprep.subr.mxu0 0.0
    %919 = vmatpush1.msra.mxu0 0.0
    %920 = vmatprep.subr.mxu0 0.0
    %921 = vmatpush1.msra.mxu0 0.0
    %922 = vmatprep.subr.mxu0 0.0
    %923 = vmatpush1.msra.mxu0 0.0
    %924 = vmatprep.mubr.f32.mxu0 0.0
    %925 = vmatmul.mubr.f32.gmra.mrb[0].mxu0 %v853
    %v926 = vpop.f32.mrb[0].mxu0
    %v927 = vadd.f32 0.0, %v926
    %v928 = vpop.f32.mrb[0].mxu0
    %v929 = vadd.f32 0.0, %v928
    %930 = vdwg.mxu0
    %931 = vmatprep.subr.mxu0 0.0
    %932 = vmatpush1.msra.mxu0 %v174
    %933 = vmatprep.subr.mxu0 0.0
    %934 = vmatpush1.msra.mxu0 %v177
    %935 = vmatprep.subr.mxu0 0.0
    %936 = vmatpush1.msra.mxu0 %v180
    %937 = vmatprep.subr.mxu0 0.0
    %938 = vmatpush1.msra.mxu0 %v183
    %939 = vmatprep.subr.mxu0 0.0
    %940 = vmatpush1.msra.mxu0 %v186
    %941 = vmatprep.subr.mxu0 0.0
    %942 = vmatpush1.msra.mxu0 %v189
    %943 = vmatprep.subr.mxu0 0.0
    %944 = vmatpush1.msra.mxu0 %v192
    %945 = vmatprep.subr.mxu0 0.0
    %946 = vmatpush1.msra.mxu0 %v195
    %947 = vmatprep.subr.mxu0 0.0
    %948 = vmatpush1.msra.mxu0 %v198
    %949 = vmatprep.subr.mxu0 0.0
    %950 = vmatpush1.msra.mxu0 %v201
    %951 = vmatprep.subr.mxu0 0.0
    %952 = vmatpush1.msra.mxu0 %v204
    %953 = vmatprep.subr.mxu0 0.0
    %954 = vmatpush1.msra.mxu0 %v207
    %955 = vmatprep.subr.mxu0 0.0
    %956 = vmatpush1.msra.mxu0 %v210
    %957 = vmatprep.subr.mxu0 0.0
    %958 = vmatpush1.msra.mxu0 %v213
    %959 = vmatprep.subr.mxu0 0.0
    %960 = vmatpush1.msra.mxu0 %v216
    %961 = vmatprep.subr.mxu0 0.0
    %962 = vmatpush1.msra.mxu0 %v219
    %963 = vmatprep.subr.mxu0 0.0
    %964 = vmatpush1.msra.mxu0 0.0
    %965 = vmatprep.subr.mxu0 0.0
    %966 = vmatpush1.msra.mxu0 0.0
    %967 = vmatprep.subr.mxu0 0.0
    %968 = vmatpush1.msra.mxu0 0.0
    %969 = vmatprep.subr.mxu0 0.0
    %970 = vmatpush1.msra.mxu0 0.0
    %971 = vmatprep.subr.mxu0 0.0
    %972 = vmatpush1.msra.mxu0 0.0
    %973 = vmatprep.subr.mxu0 0.0
    %974 = vmatpush1.msra.mxu0 0.0
    %975 = vmatprep.subr.mxu0 0.0
    %976 = vmatpush1.msra.mxu0 0.0
    %977 = vmatprep.subr.mxu0 0.0
    %978 = vmatpush1.msra.mxu0 0.0
    %979 = vmatprep.subr.mxu0 0.0
    %980 = vmatpush1.msra.mxu0 0.0
    %981 = vmatprep.subr.mxu0 0.0
    %982 = vmatpush1.msra.mxu0 0.0
    %983 = vmatprep.subr.mxu0 0.0
    %984 = vmatpush1.msra.mxu0 0.0
    %985 = vmatprep.subr.mxu0 0.0
    %986 = vmatpush1.msra.mxu0 0.0
    %987 = vmatprep.subr.mxu0 0.0
    %988 = vmatpush1.msra.mxu0 0.0
    %989 = vmatprep.subr.mxu0 0.0
    %990 = vmatpush1.msra.mxu0 0.0
    %991 = vmatprep.subr.mxu0 0.0
    %992 = vmatpush1.msra.mxu0 0.0
    %993 = vmatprep.subr.mxu0 0.0
    %994 = vmatpush1.msra.mxu0 0.0
    %995 = vmatprep.mubr.f32.mxu0 0.0
    %996 = vmatmul.mubr.f32.gmra.mrb[0].mxu0 %v853
    %v997 = vpop.f32.mrb[0].mxu0
    %v998 = vadd.f32 0.0, %v997
    %v999 = vpop.f32.mrb[0].mxu0
    %1000 = vdwg.mxu0
    %v1001 = vadd.f32 %v857, %v927
    %v1002 = vxor.u32 %v1001, 2147483648
    %v1003 = vmul.f32 %v1002, 1.442695
    %v1004 = vpow.pop %v1003
    %v1005 = vadd.f32 %v1004, 1.0
    %v1006 = vrcp.pop %v1005
    %v1007 = vmul.f32 1.0, %v1006
    %v1008 = vadd.f32 %v858, %v929
    %v1009 = vxor.u32 %v1008, 2147483648
    %v1010 = vmul.f32 %v1009, 1.442695
    %v1011 = vpow.pop %v1010
    %v1012 = vadd.f32 %v1011, 1.0
    %v1013 = vrcp.pop %v1012
    %v1014 = vmul.f32 1.0, %v1013
    %v1015 = vadd.f32 %v998, %v517
    %v1016 = vmul.f32 %v1007, %v1015
    %v1017 = vadd.f32 %v859, %v1016
    %v1018 = vtanh.pop %v1017
    %v1019 = vsub.f32 1.0, %v1014
    %v1020 = vmul.f32 %v1019, %v1018
    %v1021 = vmul.f32 %v1014, %v853
    %v1022 = vadd.f32 %v1020, %v1021
    %s1023 = scalar_lea.vmem [#allocation2], 16
    %1024 = vst [vmem:[%s1023] sm:$0xff] %v1022
    %s1025 = scalar_lea.vmem [#allocation3], 72
    %v1026 = vld [vmem:[%s1025] sm:$0xff]
    %v1027 = vld [vmem:[%s1025 + $0x8] sm:$0xff]
    %v1028 = vld [vmem:[%s1025 + $0x10] sm:$0xff]
    %1029 = vmatprep.subr.mxu0 %v173
    %1030 = vmatpush1.msra.mxu0 %v172
    %1031 = vmatprep.subr.mxu0 %v176
    %1032 = vmatpush1.msra.mxu0 %v175
    %1033 = vmatprep.subr.mxu0 %v179
    %1034 = vmatpush1.msra.mxu0 %v178
    %1035 = vmatprep.subr.mxu0 %v182
    %1036 = vmatpush1.msra.mxu0 %v181
    %1037 = vmatprep.subr.mxu0 %v185
    %1038 = vmatpush1.msra.mxu0 %v184
    %1039 = vmatprep.subr.mxu0 %v188
    %1040 = vmatpush1.msra.mxu0 %v187
    %1041 = vmatprep.subr.mxu0 %v191
    %1042 = vmatpush1.msra.mxu0 %v190
    %1043 = vmatprep.subr.mxu0 %v194
    %1044 = vmatpush1.msra.mxu0 %v193
    %1045 = vmatprep.subr.mxu0 %v197
    %1046 = vmatpush1.msra.mxu0 %v196
    %1047 = vmatprep.subr.mxu0 %v200
    %1048 = vmatpush1.msra.mxu0 %v199
    %1049 = vmatprep.subr.mxu0 %v203
    %1050 = vmatpush1.msra.mxu0 %v202
    %1051 = vmatprep.subr.mxu0 %v206
    %1052 = vmatpush1.msra.mxu0 %v205
    %1053 = vmatprep.subr.mxu0 %v209
    %1054 = vmatpush1.msra.mxu0 %v208
    %1055 = vmatprep.subr.mxu0 %v212
    %1056 = vmatpush1.msra.mxu0 %v211
    %1057 = vmatprep.subr.mxu0 %v215
    %1058 = vmatpush1.msra.mxu0 %v214
    %1059 = vmatprep.subr.mxu0 %v218
    %1060 = vmatpush1.msra.mxu0 %v217
    %1061 = vmatprep.subr.mxu0 0.0
    %1062 = vmatpush1.msra.mxu0 0.0
    %1063 = vmatprep.subr.mxu0 0.0
    %1064 = vmatpush1.msra.mxu0 0.0
    %1065 = vmatprep.subr.mxu0 0.0
    %1066 = vmatpush1.msra.mxu0 0.0
    %1067 = vmatprep.subr.mxu0 0.0
    %1068 = vmatpush1.msra.mxu0 0.0
    %1069 = vmatprep.subr.mxu0 0.0
    %1070 = vmatpush1.msra.mxu0 0.0
    %1071 = vmatprep.subr.mxu0 0.0
    %1072 = vmatpush1.msra.mxu0 0.0
    %1073 = vmatprep.subr.mxu0 0.0
    %1074 = vmatpush1.msra.mxu0 0.0
    %1075 = vmatprep.subr.mxu0 0.0
    %1076 = vmatpush1.msra.mxu0 0.0
    %1077 = vmatprep.subr.mxu0 0.0
    %1078 = vmatpush1.msra.mxu0 0.0
    %1079 = vmatprep.subr.mxu0 0.0
    %1080 = vmatpush1.msra.mxu0 0.0
    %1081 = vmatprep.subr.mxu0 0.0
    %1082 = vmatpush1.msra.mxu0 0.0
    %1083 = vmatprep.subr.mxu0 0.0
    %1084 = vmatpush1.msra.mxu0 0.0
    %1085 = vmatprep.subr.mxu0 0.0
    %1086 = vmatpush1.msra.mxu0 0.0
    %1087 = vmatprep.subr.mxu0 0.0
    %1088 = vmatpush1.msra.mxu0 0.0
    %1089 = vmatprep.subr.mxu0 0.0
    %1090 = vmatpush1.msra.mxu0 0.0
    %1091 = vmatprep.subr.mxu0 0.0
    %1092 = vmatpush1.msra.mxu0 0.0
    %1093 = vmatprep.mubr.f32.mxu0 0.0
    %1094 = vmatmul.mubr.f32.gmra.mrb[0].mxu0 %v1022
    %v1095 = vpop.f32.mrb[0].mxu0
    %v1096 = vadd.f32 0.0, %v1095
    %v1097 = vpop.f32.mrb[0].mxu0
    %v1098 = vadd.f32 0.0, %v1097
    %1099 = vdwg.mxu0
    %1100 = vmatprep.subr.mxu0 0.0
    %1101 = vmatpush1.msra.mxu0 %v174
    %1102 = vmatprep.subr.mxu0 0.0
    %1103 = vmatpush1.msra.mxu0 %v177
    %1104 = vmatprep.subr.mxu0 0.0
    %1105 = vmatpush1.msra.mxu0 %v180
    %1106 = vmatprep.subr.mxu0 0.0
    %1107 = vmatpush1.msra.mxu0 %v183
    %1108 = vmatprep.subr.mxu0 0.0
    %1109 = vmatpush1.msra.mxu0 %v186
    %1110 = vmatprep.subr.mxu0 0.0
    %1111 = vmatpush1.msra.mxu0 %v189
    %1112 = vmatprep.subr.mxu0 0.0
    %1113 = vmatpush1.msra.mxu0 %v192
    %1114 = vmatprep.subr.mxu0 0.0
    %1115 = vmatpush1.msra.mxu0 %v195
    %1116 = vmatprep.subr.mxu0 0.0
    %1117 = vmatpush1.msra.mxu0 %v198
    %1118 = vmatprep.subr.mxu0 0.0
    %1119 = vmatpush1.msra.mxu0 %v201
    %1120 = vmatprep.subr.mxu0 0.0
    %1121 = vmatpush1.msra.mxu0 %v204
    %1122 = vmatprep.subr.mxu0 0.0
    %1123 = vmatpush1.msra.mxu0 %v207
    %1124 = vmatprep.subr.mxu0 0.0
    %1125 = vmatpush1.msra.mxu0 %v210
    %1126 = vmatprep.subr.mxu0 0.0
    %1127 = vmatpush1.msra.mxu0 %v213
    %1128 = vmatprep.subr.mxu0 0.0
    %1129 = vmatpush1.msra.mxu0 %v216
    %1130 = vmatprep.subr.mxu0 0.0
    %1131 = vmatpush1.msra.mxu0 %v219
    %1132 = vmatprep.subr.mxu0 0.0
    %1133 = vmatpush1.msra.mxu0 0.0
    %1134 = vmatprep.subr.mxu0 0.0
    %1135 = vmatpush1.msra.mxu0 0.0
    %1136 = vmatprep.subr.mxu0 0.0
    %1137 = vmatpush1.msra.mxu0 0.0
    %1138 = vmatprep.subr.mxu0 0.0
    %1139 = vmatpush1.msra.mxu0 0.0
    %1140 = vmatprep.subr.mxu0 0.0
    %1141 = vmatpush1.msra.mxu0 0.0
    %1142 = vmatprep.subr.mxu0 0.0
    %1143 = vmatpush1.msra.mxu0 0.0
    %1144 = vmatprep.subr.mxu0 0.0
    %1145 = vmatpush1.msra.mxu0 0.0
    %1146 = vmatprep.subr.mxu0 0.0
    %1147 = vmatpush1.msra.mxu0 0.0
    %1148 = vmatprep.subr.mxu0 0.0
    %1149 = vmatpush1.msra.mxu0 0.0
    %1150 = vmatprep.subr.mxu0 0.0
    %1151 = vmatpush1.msra.mxu0 0.0
    %1152 = vmatprep.subr.mxu0 0.0
    %1153 = vmatpush1.msra.mxu0 0.0
    %1154 = vmatprep.subr.mxu0 0.0
    %1155 = vmatpush1.msra.mxu0 0.0
    %1156 = vmatprep.subr.mxu0 0.0
    %1157 = vmatpush1.msra.mxu0 0.0
    %1158 = vmatprep.subr.mxu0 0.0
    %1159 = vmatpush1.msra.mxu0 0.0
    %1160 = vmatprep.subr.mxu0 0.0
    %1161 = vmatpush1.msra.mxu0 0.0
    %1162 = vmatprep.subr.mxu0 0.0
    %1163 = vmatpush1.msra.mxu0 0.0
    %1164 = vmatprep.mubr.f32.mxu0 0.0
    %1165 = vmatmul.mubr.f32.gmra.mrb[0].mxu0 %v1022
    %v1166 = vpop.f32.mrb[0].mxu0
    %v1167 = vadd.f32 0.0, %v1166
    %v1168 = vpop.f32.mrb[0].mxu0
    %1169 = vdwg.mxu0
    %v1170 = vadd.f32 %v1026, %v1096
    %v1171 = vxor.u32 %v1170, 2147483648
    %v1172 = vmul.f32 %v1171, 1.442695
    %v1173 = vpow.pop %v1172
    %v1174 = vadd.f32 %v1173, 1.0
    %v1175 = vrcp.pop %v1174
    %v1176 = vmul.f32 1.0, %v1175
    %v1177 = vadd.f32 %v1027, %v1098
    %v1178 = vxor.u32 %v1177, 2147483648
    %v1179 = vmul.f32 %v1178, 1.442695
    %v1180 = vpow.pop %v1179
    %v1181 = vadd.f32 %v1180, 1.0
    %v1182 = vrcp.pop %v1181
    %v1183 = vmul.f32 1.0, %v1182
    %v1184 = vadd.f32 %v1167, %v517
    %v1185 = vmul.f32 %v1176, %v1184
    %v1186 = vadd.f32 %v1028, %v1185
    %v1187 = vtanh.pop %v1186
    %v1188 = vsub.f32 1.0, %v1183
    %v1189 = vmul.f32 %v1188, %v1187
    %v1190 = vmul.f32 %v1183, %v1022
    %v1191 = vadd.f32 %v1189, %v1190
    %s1192 = scalar_lea.vmem [#allocation2], 24
    %1193 = vst [vmem:[%s1192] sm:$0xff] %v1191
    %s1194 = scalar_lea.vmem [#allocation3], 96
    %v1195 = vld [vmem:[%s1194] sm:$0xff]
    %v1196 = vld [vmem:[%s1194 + $0x8] sm:$0xff]
    %v1197 = vld [vmem:[%s1194 + $0x10] sm:$0xff]
    %1198 = vmatprep.subr.mxu0 %v173
    %1199 = vmatpush1.msra.mxu0 %v172
    %1200 = vmatprep.subr.mxu0 %v176
    %1201 = vmatpush1.msra.mxu0 %v175
    %1202 = vmatprep.subr.mxu0 %v179
    %1203 = vmatpush1.msra.mxu0 %v178
    %1204 = vmatprep.subr.mxu0 %v182
    %1205 = vmatpush1.msra.mxu0 %v181
    %1206 = vmatprep.subr.mxu0 %v185
    %1207 = vmatpush1.msra.mxu0 %v184
    %1208 = vmatprep.subr.mxu0 %v188
    %1209 = vmatpush1.msra.mxu0 %v187
    %1210 = vmatprep.subr.mxu0 %v191
    %1211 = vmatpush1.msra.mxu0 %v190
    %1212 = vmatprep.subr.mxu0 %v194
    %1213 = vmatpush1.msra.mxu0 %v193
    %1214 = vmatprep.subr.mxu0 %v197
    %1215 = vmatpush1.msra.mxu0 %v196
    %1216 = vmatprep.subr.mxu0 %v200
    %1217 = vmatpush1.msra.mxu0 %v199
    %1218 = vmatprep.subr.mxu0 %v203
    %1219 = vmatpush1.msra.mxu0 %v202
    %1220 = vmatprep.subr.mxu0 %v206
    %1221 = vmatpush1.msra.mxu0 %v205
    %1222 = vmatprep.subr.mxu0 %v209
    %1223 = vmatpush1.msra.mxu0 %v208
    %1224 = vmatprep.subr.mxu0 %v212
    %1225 = vmatpush1.msra.mxu0 %v211
    %1226 = vmatprep.subr.mxu0 %v215
    %1227 = vmatpush1.msra.mxu0 %v214
    %1228 = vmatprep.subr.mxu0 %v218
    %1229 = vmatpush1.msra.mxu0 %v217
    %1230 = vmatprep.subr.mxu0 0.0
    %1231 = vmatpush1.msra.mxu0 0.0
    %1232 = vmatprep.subr.mxu0 0.0
    %1233 = vmatpush1.msra.mxu0 0.0
    %1234 = vmatprep.subr.mxu0 0.0
    %1235 = vmatpush1.msra.mxu0 0.0
    %1236 = vmatprep.subr.mxu0 0.0
    %1237 = vmatpush1.msra.mxu0 0.0
    %1238 = vmatprep.subr.mxu0 0.0
    %1239 = vmatpush1.msra.mxu0 0.0
    %1240 = vmatprep.subr.mxu0 0.0
    %1241 = vmatpush1.msra.mxu0 0.0
    %1242 = vmatprep.subr.mxu0 0.0
    %1243 = vmatpush1.msra.mxu0 0.0
    %1244 = vmatprep.subr.mxu0 0.0
    %1245 = vmatpush1.msra.mxu0 0.0
    %1246 = vmatprep.subr.mxu0 0.0
    %1247 = vmatpush1.msra.mxu0 0.0
    %1248 = vmatprep.subr.mxu0 0.0
    %1249 = vmatpush1.msra.mxu0 0.0
    %1250 = vmatprep.subr.mxu0 0.0
    %1251 = vmatpush1.msra.mxu0 0.0
    %1252 = vmatprep.subr.mxu0 0.0
    %1253 = vmatpush1.msra.mxu0 0.0
    %1254 = vmatprep.subr.mxu0 0.0
    %1255 = vmatpush1.msra.mxu0 0.0
    %1256 = vmatprep.subr.mxu0 0.0
    %1257 = vmatpush1.msra.mxu0 0.0
    %1258 = vmatprep.subr.mxu0 0.0
    %1259 = vmatpush1.msra.mxu0 0.0
    %1260 = vmatprep.subr.mxu0 0.0
    %1261 = vmatpush1.msra.mxu0 0.0
    %1262 = vmatprep.mubr.f32.mxu0 0.0
    %1263 = vmatmul.mubr.f32.gmra.mrb[0].mxu0 %v1191
    %v1264 = vpop.f32.mrb[0].mxu0
    %v1265 = vadd.f32 0.0, %v1264
    %v1266 = vpop.f32.mrb[0].mxu0
    %v1267 = vadd.f32 0.0, %v1266
    %1268 = vdwg.mxu0
    %1269 = vmatprep.subr.mxu0 0.0
    %1270 = vmatpush1.msra.mxu0 %v174
    %1271 = vmatprep.subr.mxu0 0.0
    %1272 = vmatpush1.msra.mxu0 %v177
    %1273 = vmatprep.subr.mxu0 0.0
    %1274 = vmatpush1.msra.mxu0 %v180
    %1275 = vmatprep.subr.mxu0 0.0
    %1276 = vmatpush1.msra.mxu0 %v183
    %1277 = vmatprep.subr.mxu0 0.0
    %1278 = vmatpush1.msra.mxu0 %v186
    %1279 = vmatprep.subr.mxu0 0.0
    %1280 = vmatpush1.msra.mxu0 %v189
    %1281 = vmatprep.subr.mxu0 0.0
    %1282 = vmatpush1.msra.mxu0 %v192
    %1283 = vmatprep.subr.mxu0 0.0
    %1284 = vmatpush1.msra.mxu0 %v195
    %1285 = vmatprep.subr.mxu0 0.0
    %1286 = vmatpush1.msra.mxu0 %v198
    %1287 = vmatprep.subr.mxu0 0.0
    %1288 = vmatpush1.msra.mxu0 %v201
    %1289 = vmatprep.subr.mxu0 0.0
    %1290 = vmatpush1.msra.mxu0 %v204
    %1291 = vmatprep.subr.mxu0 0.0
    %1292 = vmatpush1.msra.mxu0 %v207
    %1293 = vmatprep.subr.mxu0 0.0
    %1294 = vmatpush1.msra.mxu0 %v210
    %1295 = vmatprep.subr.mxu0 0.0
    %1296 = vmatpush1.msra.mxu0 %v213
    %1297 = vmatprep.subr.mxu0 0.0
    %1298 = vmatpush1.msra.mxu0 %v216
    %1299 = vmatprep.subr.mxu0 0.0
    %1300 = vmatpush1.msra.mxu0 %v219
    %1301 = vmatprep.subr.mxu0 0.0
    %1302 = vmatpush1.msra.mxu0 0.0
    %1303 = vmatprep.subr.mxu0 0.0
    %1304 = vmatpush1.msra.mxu0 0.0
    %1305 = vmatprep.subr.mxu0 0.0
    %1306 = vmatpush1.msra.mxu0 0.0
    %1307 = vmatprep.subr.mxu0 0.0
    %1308 = vmatpush1.msra.mxu0 0.0
    %1309 = vmatprep.subr.mxu0 0.0
    %1310 = vmatpush1.msra.mxu0 0.0
    %1311 = vmatprep.subr.mxu0 0.0
    %1312 = vmatpush1.msra.mxu0 0.0
    %1313 = vmatprep.subr.mxu0 0.0
    %1314 = vmatpush1.msra.mxu0 0.0
    %1315 = vmatprep.subr.mxu0 0.0
    %1316 = vmatpush1.msra.mxu0 0.0
    %1317 = vmatprep.subr.mxu0 0.0
    %1318 = vmatpush1.msra.mxu0 0.0
    %1319 = vmatprep.subr.mxu0 0.0
    %1320 = vmatpush1.msra.mxu0 0.0
    %1321 = vmatprep.subr.mxu0 0.0
    %1322 = vmatpush1.msra.mxu0 0.0
    %1323 = vmatprep.subr.mxu0 0.0
    %1324 = vmatpush1.msra.mxu0 0.0
    %1325 = vmatprep.subr.mxu0 0.0
    %1326 = vmatpush1.msra.mxu0 0.0
    %1327 = vmatprep.subr.mxu0 0.0
    %1328 = vmatpush1.msra.mxu0 0.0
    %1329 = vmatprep.subr.mxu0 0.0
    %1330 = vmatpush1.msra.mxu0 0.0
    %1331 = vmatprep.subr.mxu0 0.0
    %1332 = vmatpush1.msra.mxu0 0.0
    %1333 = vmatprep.mubr.f32.mxu0 0.0
    %1334 = vmatmul.mubr.f32.gmra.mrb[0].mxu0 %v1191
    %v1335 = vpop.f32.mrb[0].mxu0
    %v1336 = vadd.f32 0.0, %v1335
    %v1337 = vpop.f32.mrb[0].mxu0
    %1338 = vdwg.mxu0
    %v1339 = vadd.f32 %v1195, %v1265
    %v1340 = vxor.u32 %v1339, 2147483648
    %v1341 = vmul.f32 %v1340, 1.442695
    %v1342 = vpow.pop %v1341
    %v1343 = vadd.f32 %v1342, 1.0
    %v1344 = vrcp.pop %v1343
    %v1345 = vmul.f32 1.0, %v1344
    %v1346 = vadd.f32 %v1196, %v1267
    %v1347 = vxor.u32 %v1346, 2147483648
    %v1348 = vmul.f32 %v1347, 1.442695
    %v1349 = vpow.pop %v1348
    %v1350 = vadd.f32 %v1349, 1.0
    %v1351 = vrcp.pop %v1350
    %v1352 = vmul.f32 1.0, %v1351
    %v1353 = vadd.f32 %v1336, %v517
    %v1354 = vmul.f32 %v1345, %v1353
    %v1355 = vadd.f32 %v1197, %v1354
    %v1356 = vtanh.pop %v1355
    %v1357 = vsub.f32 1.0, %v1352
    %v1358 = vmul.f32 %v1357, %v1356
    %v1359 = vmul.f32 %v1352, %v1191
    %v1360 = vadd.f32 %v1358, %v1359
    %s1361 = scalar_lea.vmem [#allocation2], 32
    %1362 = vst [vmem:[%s1361] sm:$0xff] %v1360
    %s1363 = scalar_lea.vmem [#allocation3], 120
    %v1364 = vld [vmem:[%s1363] sm:$0xff]
    %v1365 = vld [vmem:[%s1363 + $0x8] sm:$0xff]
    %v1366 = vld [vmem:[%s1363 + $0x10] sm:$0xff]
    %1367 = vmatprep.subr.mxu0 %v173
    %1368 = vmatpush1.msra.mxu0 %v172
    %1369 = vmatprep.subr.mxu0 %v176
    %1370 = vmatpush1.msra.mxu0 %v175
    %1371 = vmatprep.subr.mxu0 %v179
    %1372 = vmatpush1.msra.mxu0 %v178
    %1373 = vmatprep.subr.mxu0 %v182
    %1374 = vmatpush1.msra.mxu0 %v181
    %1375 = vmatprep.subr.mxu0 %v185
    %1376 = vmatpush1.msra.mxu0 %v184
    %1377 = vmatprep.subr.mxu0 %v188
    %1378 = vmatpush1.msra.mxu0 %v187
    %1379 = vmatprep.subr.mxu0 %v191
    %1380 = vmatpush1.msra.mxu0 %v190
    %1381 = vmatprep.subr.mxu0 %v194
    %1382 = vmatpush1.msra.mxu0 %v193
    %1383 = vmatprep.subr.mxu0 %v197
    %1384 = vmatpush1.msra.mxu0 %v196
    %1385 = vmatprep.subr.mxu0 %v200
    %1386 = vmatpush1.msra.mxu0 %v199
    %1387 = vmatprep.subr.mxu0 %v203
    %1388 = vmatpush1.msra.mxu0 %v202
    %1389 = vmatprep.subr.mxu0 %v206
    %1390 = vmatpush1.msra.mxu0 %v205
    %1391 = vmatprep.subr.mxu0 %v209
    %1392 = vmatpush1.msra.mxu0 %v208
    %1393 = vmatprep.subr.mxu0 %v212
    %1394 = vmatpush1.msra.mxu0 %v211
    %1395 = vmatprep.subr.mxu0 %v215
    %1396 = vmatpush1.msra.mxu0 %v214
    %1397 = vmatprep.subr.mxu0 %v218
    %1398 = vmatpush1.msra.mxu0 %v217
    %1399 = vmatprep.subr.mxu0 0.0
    %1400 = vmatpush1.msra.mxu0 0.0
    %1401 = vmatprep.subr.mxu0 0.0
    %1402 = vmatpush1.msra.mxu0 0.0
    %1403 = vmatprep.subr.mxu0 0.0
    %1404 = vmatpush1.msra.mxu0 0.0
    %1405 = vmatprep.subr.mxu0 0.0
    %1406 = vmatpush1.msra.mxu0 0.0
    %1407 = vmatprep.subr.mxu0 0.0
    %1408 = vmatpush1.msra.mxu0 0.0
    %1409 = vmatprep.subr.mxu0 0.0
    %1410 = vmatpush1.msra.mxu0 0.0
    %1411 = vmatprep.subr.mxu0 0.0
    %1412 = vmatpush1.msra.mxu0 0.0
    %1413 = vmatprep.subr.mxu0 0.0
    %1414 = vmatpush1.msra.mxu0 0.0
    %1415 = vmatprep.subr.mxu0 0.0
    %1416 = vmatpush1.msra.mxu0 0.0
    %1417 = vmatprep.subr.mxu0 0.0
    %1418 = vmatpush1.msra.mxu0 0.0
    %1419 = vmatprep.subr.mxu0 0.0
    %1420 = vmatpush1.msra.mxu0 0.0
    %1421 = vmatprep.subr.mxu0 0.0
    %1422 = vmatpush1.msra.mxu0 0.0
    %1423 = vmatprep.subr.mxu0 0.0
    %1424 = vmatpush1.msra.mxu0 0.0
    %1425 = vmatprep.subr.mxu0 0.0
    %1426 = vmatpush1.msra.mxu0 0.0
    %1427 = vmatprep.subr.mxu0 0.0
    %1428 = vmatpush1.msra.mxu0 0.0
    %1429 = vmatprep.subr.mxu0 0.0
    %1430 = vmatpush1.msra.mxu0 0.0
    %1431 = vmatprep.mubr.f32.mxu0 0.0
    %1432 = vmatmul.mubr.f32.gmra.mrb[0].mxu0 %v1360
    %v1433 = vpop.f32.mrb[0].mxu0
    %v1434 = vadd.f32 0.0, %v1433
    %v1435 = vpop.f32.mrb[0].mxu0
    %v1436 = vadd.f32 0.0, %v1435
    %1437 = vdwg.mxu0
    %1438 = vmatprep.subr.mxu0 0.0
    %1439 = vmatpush1.msra.mxu0 %v174
    %1440 = vmatprep.subr.mxu0 0.0
    %1441 = vmatpush1.msra.mxu0 %v177
    %1442 = vmatprep.subr.mxu0 0.0
    %1443 = vmatpush1.msra.mxu0 %v180
    %1444 = vmatprep.subr.mxu0 0.0
    %1445 = vmatpush1.msra.mxu0 %v183
    %1446 = vmatprep.subr.mxu0 0.0
    %1447 = vmatpush1.msra.mxu0 %v186
    %1448 = vmatprep.subr.mxu0 0.0
    %1449 = vmatpush1.msra.mxu0 %v189
    %1450 = vmatprep.subr.mxu0 0.0
    %1451 = vmatpush1.msra.mxu0 %v192
    %1452 = vmatprep.subr.mxu0 0.0
    %1453 = vmatpush1.msra.mxu0 %v195
    %1454 = vmatprep.subr.mxu0 0.0
    %1455 = vmatpush1.msra.mxu0 %v198
    %1456 = vmatprep.subr.mxu0 0.0
    %1457 = vmatpush1.msra.mxu0 %v201
    %1458 = vmatprep.subr.mxu0 0.0
    %1459 = vmatpush1.msra.mxu0 %v204
    %1460 = vmatprep.subr.mxu0 0.0
    %1461 = vmatpush1.msra.mxu0 %v207
    %1462 = vmatprep.subr.mxu0 0.0
    %1463 = vmatpush1.msra.mxu0 %v210
    %1464 = vmatprep.subr.mxu0 0.0
    %1465 = vmatpush1.msra.mxu0 %v213
    %1466 = vmatprep.subr.mxu0 0.0
    %1467 = vmatpush1.msra.mxu0 %v216
    %1468 = vmatprep.subr.mxu0 0.0
    %1469 = vmatpush1.msra.mxu0 %v219
    %1470 = vmatprep.subr.mxu0 0.0
    %1471 = vmatpush1.msra.mxu0 0.0
    %1472 = vmatprep.subr.mxu0 0.0
    %1473 = vmatpush1.msra.mxu0 0.0
    %1474 = vmatprep.subr.mxu0 0.0
    %1475 = vmatpush1.msra.mxu0 0.0
    %1476 = vmatprep.subr.mxu0 0.0
    %1477 = vmatpush1.msra.mxu0 0.0
    %1478 = vmatprep.subr.mxu0 0.0
    %1479 = vmatpush1.msra.mxu0 0.0
    %1480 = vmatprep.subr.mxu0 0.0
    %1481 = vmatpush1.msra.mxu0 0.0
    %1482 = vmatprep.subr.mxu0 0.0
    %1483 = vmatpush1.msra.mxu0 0.0
    %1484 = vmatprep.subr.mxu0 0.0
    %1485 = vmatpush1.msra.mxu0 0.0
    %1486 = vmatprep.subr.mxu0 0.0
    %1487 = vmatpush1.msra.mxu0 0.0
    %1488 = vmatprep.subr.mxu0 0.0
    %1489 = vmatpush1.msra.mxu0 0.0
    %1490 = vmatprep.subr.mxu0 0.0
    %1491 = vmatpush1.msra.mxu0 0.0
    %1492 = vmatprep.subr.mxu0 0.0
    %1493 = vmatpush1.msra.mxu0 0.0
    %1494 = vmatprep.subr.mxu0 0.0
    %1495 = vmatpush1.msra.mxu0 0.0
    %1496 = vmatprep.subr.mxu0 0.0
    %1497 = vmatpush1.msra.mxu0 0.0
    %1498 = vmatprep.subr.mxu0 0.0
    %1499 = vmatpush1.msra.mxu0 0.0
    %1500 = vmatprep.subr.mxu0 0.0
    %1501 = vmatpush1.msra.mxu0 0.0
    %1502 = vmatprep.mubr.f32.mxu0 0.0
    %1503 = vmatmul.mubr.f32.gmra.mrb[0].mxu0 %v1360
    %v1504 = vpop.f32.mrb[0].mxu0
    %v1505 = vadd.f32 0.0, %v1504
    %v1506 = vpop.f32.mrb[0].mxu0
    %1507 = vdwg.mxu0
    %v1508 = vadd.f32 %v1364, %v1434
    %v1509 = vxor.u32 %v1508, 2147483648
    %v1510 = vmul.f32 %v1509, 1.442695
    %v1511 = vpow.pop %v1510
    %v1512 = vadd.f32 %v1511, 1.0
    %v1513 = vrcp.pop %v1512
    %v1514 = vmul.f32 1.0, %v1513
    %v1515 = vadd.f32 %v1365, %v1436
    %v1516 = vxor.u32 %v1515, 2147483648
    %v1517 = vmul.f32 %v1516, 1.442695
    %v1518 = vpow.pop %v1517
    %v1519 = vadd.f32 %v1518, 1.0
    %v1520 = vrcp.pop %v1519
    %v1521 = vmul.f32 1.0, %v1520
    %v1522 = vadd.f32 %v1505, %v517
    %v1523 = vmul.f32 %v1514, %v1522
    %v1524 = vadd.f32 %v1366, %v1523
    %v1525 = vtanh.pop %v1524
    %v1526 = vsub.f32 1.0, %v1521
    %v1527 = vmul.f32 %v1526, %v1525
    %v1528 = vmul.f32 %v1521, %v1360
    %v1529 = vadd.f32 %v1527, %v1528
    %s1530 = scalar_lea.vmem [#allocation2], 40
    %1531 = vst [vmem:[%s1530] sm:$0xff] %v1529
    %s1532 = scalar_lea.vmem [#allocation3], 144
    %v1533 = vld [vmem:[%s1532] sm:$0xff]
    %v1534 = vld [vmem:[%s1532 + $0x8] sm:$0xff]
    %v1535 = vld [vmem:[%s1532 + $0x10] sm:$0xff]
    %1536 = vmatprep.subr.mxu0 %v173
    %1537 = vmatpush1.msra.mxu0 %v172
    %1538 = vmatprep.subr.mxu0 %v176
    %1539 = vmatpush1.msra.mxu0 %v175
    %1540 = vmatprep.subr.mxu0 %v179
    %1541 = vmatpush1.msra.mxu0 %v178
    %1542 = vmatprep.subr.mxu0 %v182
    %1543 = vmatpush1.msra.mxu0 %v181
    %1544 = vmatprep.subr.mxu0 %v185
    %1545 = vmatpush1.msra.mxu0 %v184
    %1546 = vmatprep.subr.mxu0 %v188
    %1547 = vmatpush1.msra.mxu0 %v187
    %1548 = vmatprep.subr.mxu0 %v191
    %1549 = vmatpush1.msra.mxu0 %v190
    %1550 = vmatprep.subr.mxu0 %v194
    %1551 = vmatpush1.msra.mxu0 %v193
    %1552 = vmatprep.subr.mxu0 %v197
    %1553 = vmatpush1.msra.mxu0 %v196
    %1554 = vmatprep.subr.mxu0 %v200
    %1555 = vmatpush1.msra.mxu0 %v199
    %1556 = vmatprep.subr.mxu0 %v203
    %1557 = vmatpush1.msra.mxu0 %v202
    %1558 = vmatprep.subr.mxu0 %v206
    %1559 = vmatpush1.msra.mxu0 %v205
    %1560 = vmatprep.subr.mxu0 %v209
    %1561 = vmatpush1.msra.mxu0 %v208
    %1562 = vmatprep.subr.mxu0 %v212
    %1563 = vmatpush1.msra.mxu0 %v211
    %1564 = vmatprep.subr.mxu0 %v215
    %1565 = vmatpush1.msra.mxu0 %v214
    %1566 = vmatprep.subr.mxu0 %v218
    %1567 = vmatpush1.msra.mxu0 %v217
    %1568 = vmatprep.subr.mxu0 0.0
    %1569 = vmatpush1.msra.mxu0 0.0
    %1570 = vmatprep.subr.mxu0 0.0
    %1571 = vmatpush1.msra.mxu0 0.0
    %1572 = vmatprep.subr.mxu0 0.0
    %1573 = vmatpush1.msra.mxu0 0.0
    %1574 = vmatprep.subr.mxu0 0.0
    %1575 = vmatpush1.msra.mxu0 0.0
    %1576 = vmatprep.subr.mxu0 0.0
    %1577 = vmatpush1.msra.mxu0 0.0
    %1578 = vmatprep.subr.mxu0 0.0
    %1579 = vmatpush1.msra.mxu0 0.0
    %1580 = vmatprep.subr.mxu0 0.0
    %1581 = vmatpush1.msra.mxu0 0.0
    %1582 = vmatprep.subr.mxu0 0.0
    %1583 = vmatpush1.msra.mxu0 0.0
    %1584 = vmatprep.subr.mxu0 0.0
    %1585 = vmatpush1.msra.mxu0 0.0
    %1586 = vmatprep.subr.mxu0 0.0
    %1587 = vmatpush1.msra.mxu0 0.0
    %1588 = vmatprep.subr.mxu0 0.0
    %1589 = vmatpush1.msra.mxu0 0.0
    %1590 = vmatprep.subr.mxu0 0.0
    %1591 = vmatpush1.msra.mxu0 0.0
    %1592 = vmatprep.subr.mxu0 0.0
    %1593 = vmatpush1.msra.mxu0 0.0
    %1594 = vmatprep.subr.mxu0 0.0
    %1595 = vmatpush1.msra.mxu0 0.0
    %1596 = vmatprep.subr.mxu0 0.0
    %1597 = vmatpush1.msra.mxu0 0.0
    %1598 = vmatprep.subr.mxu0 0.0
    %1599 = vmatpush1.msra.mxu0 0.0
    %1600 = vmatprep.mubr.f32.mxu0 0.0
    %1601 = vmatmul.mubr.f32.gmra.mrb[0].mxu0 %v1529
    %v1602 = vpop.f32.mrb[0].mxu0
    %v1603 = vadd.f32 0.0, %v1602
    %v1604 = vpop.f32.mrb[0].mxu0
    %v1605 = vadd.f32 0.0, %v1604
    %1606 = vdwg.mxu0
    %1607 = vmatprep.subr.mxu0 0.0
    %1608 = vmatpush1.msra.mxu0 %v174
    %1609 = vmatprep.subr.mxu0 0.0
    %1610 = vmatpush1.msra.mxu0 %v177
    %1611 = vmatprep.subr.mxu0 0.0
    %1612 = vmatpush1.msra.mxu0 %v180
    %1613 = vmatprep.subr.mxu0 0.0
    %1614 = vmatpush1.msra.mxu0 %v183
    %1615 = vmatprep.subr.mxu0 0.0
    %1616 = vmatpush1.msra.mxu0 %v186
    %1617 = vmatprep.subr.mxu0 0.0
    %1618 = vmatpush1.msra.mxu0 %v189
    %1619 = vmatprep.subr.mxu0 0.0
    %1620 = vmatpush1.msra.mxu0 %v192
    %1621 = vmatprep.subr.mxu0 0.0
    %1622 = vmatpush1.msra.mxu0 %v195
    %1623 = vmatprep.subr.mxu0 0.0
    %1624 = vmatpush1.msra.mxu0 %v198
    %1625 = vmatprep.subr.mxu0 0.0
    %1626 = vmatpush1.msra.mxu0 %v201
    %1627 = vmatprep.subr.mxu0 0.0
    %1628 = vmatpush1.msra.mxu0 %v204
    %1629 = vmatprep.subr.mxu0 0.0
    %1630 = vmatpush1.msra.mxu0 %v207
    %1631 = vmatprep.subr.mxu0 0.0
    %1632 = vmatpush1.msra.mxu0 %v210
    %1633 = vmatprep.subr.mxu0 0.0
    %1634 = vmatpush1.msra.mxu0 %v213
    %1635 = vmatprep.subr.mxu0 0.0
    %1636 = vmatpush1.msra.mxu0 %v216
    %1637 = vmatprep.subr.mxu0 0.0
    %1638 = vmatpush1.msra.mxu0 %v219
    %1639 = vmatprep.subr.mxu0 0.0
    %1640 = vmatpush1.msra.mxu0 0.0
    %1641 = vmatprep.subr.mxu0 0.0
    %1642 = vmatpush1.msra.mxu0 0.0
    %1643 = vmatprep.subr.mxu0 0.0
    %1644 = vmatpush1.msra.mxu0 0.0
    %1645 = vmatprep.subr.mxu0 0.0
    %1646 = vmatpush1.msra.mxu0 0.0
    %1647 = vmatprep.subr.mxu0 0.0
    %1648 = vmatpush1.msra.mxu0 0.0
    %1649 = vmatprep.subr.mxu0 0.0
    %1650 = vmatpush1.msra.mxu0 0.0
    %1651 = vmatprep.subr.mxu0 0.0
    %1652 = vmatpush1.msra.mxu0 0.0
    %1653 = vmatprep.subr.mxu0 0.0
    %1654 = vmatpush1.msra.mxu0 0.0
    %1655 = vmatprep.subr.mxu0 0.0
    %1656 = vmatpush1.msra.mxu0 0.0
    %1657 = vmatprep.subr.mxu0 0.0
    %1658 = vmatpush1.msra.mxu0 0.0
    %1659 = vmatprep.subr.mxu0 0.0
    %1660 = vmatpush1.msra.mxu0 0.0
    %1661 = vmatprep.subr.mxu0 0.0
    %1662 = vmatpush1.msra.mxu0 0.0
    %1663 = vmatprep.subr.mxu0 0.0
    %1664 = vmatpush1.msra.mxu0 0.0
    %1665 = vmatprep.subr.mxu0 0.0
    %1666 = vmatpush1.msra.mxu0 0.0
    %1667 = vmatprep.subr.mxu0 0.0
    %1668 = vmatpush1.msra.mxu0 0.0
    %1669 = vmatprep.subr.mxu0 0.0
    %1670 = vmatpush1.msra.mxu0 0.0
    %1671 = vmatprep.mubr.f32.mxu0 0.0
    %1672 = vmatmul.mubr.f32.gmra.mrb[0].mxu0 %v1529
    %v1673 = vpop.f32.mrb[0].mxu0
    %v1674 = vadd.f32 0.0, %v1673
    %v1675 = vpop.f32.mrb[0].mxu0
    %1676 = vdwg.mxu0
    %v1677 = vadd.f32 %v1533, %v1603
    %v1678 = vxor.u32 %v1677, 2147483648
    %v1679 = vmul.f32 %v1678, 1.442695
    %v1680 = vpow.pop %v1679
    %v1681 = vadd.f32 %v1680, 1.0
    %v1682 = vrcp.pop %v1681
    %v1683 = vmul.f32 1.0, %v1682
    %v1684 = vadd.f32 %v1534, %v1605
    %v1685 = vxor.u32 %v1684, 2147483648
    %v1686 = vmul.f32 %v1685, 1.442695
    %v1687 = vpow.pop %v1686
    %v1688 = vadd.f32 %v1687, 1.0
    %v1689 = vrcp.pop %v1688
    %v1690 = vmul.f32 1.0, %v1689
    %v1691 = vadd.f32 %v1674, %v517
    %v1692 = vmul.f32 %v1683, %v1691
    %v1693 = vadd.f32 %v1535, %v1692
    %v1694 = vtanh.pop %v1693
    %v1695 = vsub.f32 1.0, %v1690
    %v1696 = vmul.f32 %v1695, %v1694
    %v1697 = vmul.f32 %v1690, %v1529
    %v1698 = vadd.f32 %v1696, %v1697
    %s1699 = scalar_lea.vmem [#allocation2], 48
    %1700 = vst [vmem:[%s1699] sm:$0xff] %v1698
    %s1701 = scalar_lea.vmem [#allocation3], 168
    %v1702 = vld [vmem:[%s1701] sm:$0xff]
    %v1703 = vld [vmem:[%s1701 + $0x8] sm:$0xff]
    %v1704 = vld [vmem:[%s1701 + $0x10] sm:$0xff]
    %1705 = vmatprep.subr.mxu0 %v173
    %1706 = vmatpush1.msra.mxu0 %v172
    %1707 = vmatprep.subr.mxu0 %v176
    %1708 = vmatpush1.msra.mxu0 %v175
    %1709 = vmatprep.subr.mxu0 %v179
    %1710 = vmatpush1.msra.mxu0 %v178
    %1711 = vmatprep.subr.mxu0 %v182
    %1712 = vmatpush1.msra.mxu0 %v181
    %1713 = vmatprep.subr.mxu0 %v185
    %1714 = vmatpush1.msra.mxu0 %v184
    %1715 = vmatprep.subr.mxu0 %v188
    %1716 = vmatpush1.msra.mxu0 %v187
    %1717 = vmatprep.subr.mxu0 %v191
    %1718 = vmatpush1.msra.mxu0 %v190
    %1719 = vmatprep.subr.mxu0 %v194
    %1720 = vmatpush1.msra.mxu0 %v193
    %1721 = vmatprep.subr.mxu0 %v197
    %1722 = vmatpush1.msra.mxu0 %v196
    %1723 = vmatprep.subr.mxu0 %v200
    %1724 = vmatpush1.msra.mxu0 %v199
    %1725 = vmatprep.subr.mxu0 %v203
    %1726 = vmatpush1.msra.mxu0 %v202
    %1727 = vmatprep.subr.mxu0 %v206
    %1728 = vmatpush1.msra.mxu0 %v205
    %1729 = vmatprep.subr.mxu0 %v209
    %1730 = vmatpush1.msra.mxu0 %v208
    %1731 = vmatprep.subr.mxu0 %v212
    %1732 = vmatpush1.msra.mxu0 %v211
    %1733 = vmatprep.subr.mxu0 %v215
    %1734 = vmatpush1.msra.mxu0 %v214
    %1735 = vmatprep.subr.mxu0 %v218
    %1736 = vmatpush1.msra.mxu0 %v217
    %1737 = vmatprep.subr.mxu0 0.0
    %1738 = vmatpush1.msra.mxu0 0.0
    %1739 = vmatprep.subr.mxu0 0.0
    %1740 = vmatpush1.msra.mxu0 0.0
    %1741 = vmatprep.subr.mxu0 0.0
    %1742 = vmatpush1.msra.mxu0 0.0
    %1743 = vmatprep.subr.mxu0 0.0
    %1744 = vmatpush1.msra.mxu0 0.0
    %1745 = vmatprep.subr.mxu0 0.0
    %1746 = vmatpush1.msra.mxu0 0.0
    %1747 = vmatprep.subr.mxu0 0.0
    %1748 = vmatpush1.msra.mxu0 0.0
    %1749 = vmatprep.subr.mxu0 0.0
    %1750 = vmatpush1.msra.mxu0 0.0
    %1751 = vmatprep.subr.mxu0 0.0
    %1752 = vmatpush1.msra.mxu0 0.0
    %1753 = vmatprep.subr.mxu0 0.0
    %1754 = vmatpush1.msra.mxu0 0.0
    %1755 = vmatprep.subr.mxu0 0.0
    %1756 = vmatpush1.msra.mxu0 0.0
    %1757 = vmatprep.subr.mxu0 0.0
    %1758 = vmatpush1.msra.mxu0 0.0
    %1759 = vmatprep.subr.mxu0 0.0
    %1760 = vmatpush1.msra.mxu0 0.0
    %1761 = vmatprep.subr.mxu0 0.0
    %1762 = vmatpush1.msra.mxu0 0.0
    %1763 = vmatprep.subr.mxu0 0.0
    %1764 = vmatpush1.msra.mxu0 0.0
    %1765 = vmatprep.subr.mxu0 0.0
    %1766 = vmatpush1.msra.mxu0 0.0
    %1767 = vmatprep.subr.mxu0 0.0
    %1768 = vmatpush1.msra.mxu0 0.0
    %1769 = vmatprep.mubr.f32.mxu0 0.0
    %1770 = vmatmul.mubr.f32.gmra.mrb[0].mxu0 %v1698
    %v1771 = vpop.f32.mrb[0].mxu0
    %v1772 = vadd.f32 0.0, %v1771
    %v1773 = vpop.f32.mrb[0].mxu0
    %v1774 = vadd.f32 0.0, %v1773
    %1775 = vdwg.mxu0
    %1776 = vmatprep.subr.mxu0 0.0
    %1777 = vmatpush1.msra.mxu0 %v174
    %1778 = vmatprep.subr.mxu0 0.0
    %1779 = vmatpush1.msra.mxu0 %v177
    %1780 = vmatprep.subr.mxu0 0.0
    %1781 = vmatpush1.msra.mxu0 %v180
    %1782 = vmatprep.subr.mxu0 0.0
    %1783 = vmatpush1.msra.mxu0 %v183
    %1784 = vmatprep.subr.mxu0 0.0
    %1785 = vmatpush1.msra.mxu0 %v186
    %1786 = vmatprep.subr.mxu0 0.0
    %1787 = vmatpush1.msra.mxu0 %v189
    %1788 = vmatprep.subr.mxu0 0.0
    %1789 = vmatpush1.msra.mxu0 %v192
    %1790 = vmatprep.subr.mxu0 0.0
    %1791 = vmatpush1.msra.mxu0 %v195
    %1792 = vmatprep.subr.mxu0 0.0
    %1793 = vmatpush1.msra.mxu0 %v198
    %1794 = vmatprep.subr.mxu0 0.0
    %1795 = vmatpush1.msra.mxu0 %v201
    %1796 = vmatprep.subr.mxu0 0.0
    %1797 = vmatpush1.msra.mxu0 %v204
    %1798 = vmatprep.subr.mxu0 0.0
    %1799 = vmatpush1.msra.mxu0 %v207
    %1800 = vmatprep.subr.mxu0 0.0
    %1801 = vmatpush1.msra.mxu0 %v210
    %1802 = vmatprep.subr.mxu0 0.0
    %1803 = vmatpush1.msra.mxu0 %v213
    %1804 = vmatprep.subr.mxu0 0.0
    %1805 = vmatpush1.msra.mxu0 %v216
    %1806 = vmatprep.subr.mxu0 0.0
    %1807 = vmatpush1.msra.mxu0 %v219
    %1808 = vmatprep.subr.mxu0 0.0
    %1809 = vmatpush1.msra.mxu0 0.0
    %1810 = vmatprep.subr.mxu0 0.0
    %1811 = vmatpush1.msra.mxu0 0.0
    %1812 = vmatprep.subr.mxu0 0.0
    %1813 = vmatpush1.msra.mxu0 0.0
    %1814 = vmatprep.subr.mxu0 0.0
    %1815 = vmatpush1.msra.mxu0 0.0
    %1816 = vmatprep.subr.mxu0 0.0
    %1817 = vmatpush1.msra.mxu0 0.0
    %1818 = vmatprep.subr.mxu0 0.0
    %1819 = vmatpush1.msra.mxu0 0.0
    %1820 = vmatprep.subr.mxu0 0.0
    %1821 = vmatpush1.msra.mxu0 0.0
    %1822 = vmatprep.subr.mxu0 0.0
    %1823 = vmatpush1.msra.mxu0 0.0
    %1824 = vmatprep.subr.mxu0 0.0
    %1825 = vmatpush1.msra.mxu0 0.0
    %1826 = vmatprep.subr.mxu0 0.0
    %1827 = vmatpush1.msra.mxu0 0.0
    %1828 = vmatprep.subr.mxu0 0.0
    %1829 = vmatpush1.msra.mxu0 0.0
    %1830 = vmatprep.subr.mxu0 0.0
    %1831 = vmatpush1.msra.mxu0 0.0
    %1832 = vmatprep.subr.mxu0 0.0
    %1833 = vmatpush1.msra.mxu0 0.0
    %1834 = vmatprep.subr.mxu0 0.0
    %1835 = vmatpush1.msra.mxu0 0.0
    %1836 = vmatprep.subr.mxu0 0.0
    %1837 = vmatpush1.msra.mxu0 0.0
    %1838 = vmatprep.subr.mxu0 0.0
    %1839 = vmatpush1.msra.mxu0 0.0
    %1840 = vmatprep.mubr.f32.mxu0 0.0
    %1841 = vmatmul.mubr.f32.gmra.mrb[0].mxu0 %v1698
    %v1842 = vpop.f32.mrb[0].mxu0
    %v1843 = vadd.f32 0.0, %v1842
    %v1844 = vpop.f32.mrb[0].mxu0
    %1845 = vdwg.mxu0
    %v1846 = vadd.f32 %v1702, %v1772
    %v1847 = vxor.u32 %v1846, 2147483648
    %v1848 = vmul.f32 %v1847, 1.442695
    %v1849 = vpow.pop %v1848
    %v1850 = vadd.f32 %v1849, 1.0
    %v1851 = vrcp.pop %v1850
    %v1852 = vmul.f32 1.0, %v1851
    %v1853 = vadd.f32 %v1703, %v1774
    %v1854 = vxor.u32 %v1853, 2147483648
    %v1855 = vmul.f32 %v1854, 1.442695
    %v1856 = vpow.pop %v1855
    %v1857 = vadd.f32 %v1856, 1.0
    %v1858 = vrcp.pop %v1857
    %v1859 = vmul.f32 1.0, %v1858
    %v1860 = vadd.f32 %v1843, %v517
    %v1861 = vmul.f32 %v1852, %v1860
    %v1862 = vadd.f32 %v1704, %v1861
    %v1863 = vtanh.pop %v1862
    %v1864 = vsub.f32 1.0, %v1859
    %v1865 = vmul.f32 %v1864, %v1863
    %v1866 = vmul.f32 %v1859, %v1698
    %v1867 = vadd.f32 %v1865, %v1866
    %s1868 = scalar_lea.vmem [#allocation2], 56
    %1869 = vst [vmem:[%s1868] sm:$0xff] %v1867
    %1870 = vst [vmem:[#allocation18] sm:$0xff] %v1867
    %v1871 = vld [vmem:[#allocation10] sm:$0xff]
    %v1872 = vld [vmem:[#allocation10 + $0x8] sm:$0xff]
    %v1873 = vld [vmem:[#allocation10 + $0x10] sm:$0xff]
    %v1874 = vld [vmem:[#allocation10 + $0x18] sm:$0xff]
    %v1875 = vld [vmem:[#allocation10 + $0x20] sm:$0xff]
    %v1876 = vld [vmem:[#allocation10 + $0x28] sm:$0xff]
    %v1877 = vld [vmem:[#allocation10 + $0x30] sm:$0xff]
    %v1878 = vld [vmem:[#allocation10 + $0x38] sm:$0xff]
    %v1879 = vld [vmem:[#allocation10 + $0x40] sm:$0xff]
    %v1880 = vld [vmem:[#allocation10 + $0x48] sm:$0xff]
    %v1881 = vld [vmem:[#allocation10 + $0x50] sm:$0xff]
    %v1882 = vld [vmem:[#allocation10 + $0x58] sm:$0xff]
    %v1883 = vld [vmem:[#allocation10 + $0x60] sm:$0xff]
    %v1884 = vld [vmem:[#allocation10 + $0x68] sm:$0xff]
    %v1885 = vld [vmem:[#allocation10 + $0x70] sm:$0xff]
    %v1886 = vld [vmem:[#allocation10 + $0x78] sm:$0xff]
    %v1887 = vld [vmem:[#allocation10 + $0x80] sm:$0xff]
    %v1888 = vld [vmem:[#allocation10 + $0x88] sm:$0xff]
    %v1889 = vld [vmem:[#allocation10 + $0x90] sm:$0xff]
    %v1890 = vld [vmem:[#allocation10 + $0x98] sm:$0xff]
    %v1891 = vld [vmem:[#allocation10 + $0xa0] sm:$0xff]
    %v1892 = vld [vmem:[#allocation10 + $0xa8] sm:$0xff]
    %v1893 = vld [vmem:[#allocation10 + $0xb0] sm:$0xff]
    %v1894 = vld [vmem:[#allocation10 + $0xb8] sm:$0xff]
    %v1895 = vld [vmem:[#allocation10 + $0xc0] sm:$0xff]
    %v1896 = vld [vmem:[#allocation10 + $0xc8] sm:$0xff]
    %v1897 = vld [vmem:[#allocation10 + $0xd0] sm:$0xff]
    %v1898 = vld [vmem:[#allocation10 + $0xd8] sm:$0xff]
    %v1899 = vld [vmem:[#allocation10 + $0xe0] sm:$0xff]
    %v1900 = vld [vmem:[#allocation10 + $0xe8] sm:$0xff]
    %v1901 = vld [vmem:[#allocation10 + $0xf0] sm:$0xff]
    %v1902 = vld [vmem:[#allocation10 + $0xf8] sm:$0xff]
    %v1903 = vld [vmem:[#allocation10 + $0x100] sm:$0xff]
    %v1904 = vld [vmem:[#allocation10 + $0x108] sm:$0xff]
    %v1905 = vld [vmem:[#allocation10 + $0x110] sm:$0xff]
    %v1906 = vld [vmem:[#allocation10 + $0x118] sm:$0xff]
    %v1907 = vld [vmem:[#allocation10 + $0x120] sm:$0xff]
    %v1908 = vld [vmem:[#allocation10 + $0x128] sm:$0xff]
    %v1909 = vld [vmem:[#allocation10 + $0x130] sm:$0xff]
    %v1910 = vld [vmem:[#allocation10 + $0x138] sm:$0xff]
    %v1911 = vld [vmem:[#allocation10 + $0x140] sm:$0xff]
    %v1912 = vld [vmem:[#allocation10 + $0x148] sm:$0xff]
    %v1913 = vld [vmem:[#allocation10 + $0x150] sm:$0xff]
    %v1914 = vld [vmem:[#allocation10 + $0x158] sm:$0xff]
    %v1915 = vld [vmem:[#allocation10 + $0x160] sm:$0xff]
    %v1916 = vld [vmem:[#allocation10 + $0x168] sm:$0xff]
    %v1917 = vld [vmem:[#allocation10 + $0x170] sm:$0xff]
    %v1918 = vld [vmem:[#allocation10 + $0x178] sm:$0xff]
    %v1919 = vld [vmem:[#allocation12] sm:$0xff]
    %v1920 = vld [vmem:[#allocation12 + $0x8] sm:$0xff]
    %v1921 = vld [vmem:[#allocation12 + $0x10] sm:$0xff]
    %v1922 = vld [vmem:[#allocation12 + $0x18] sm:$0xff]
    %v1923 = vld [vmem:[#allocation12 + $0x20] sm:$0xff]
    %v1924 = vld [vmem:[#allocation12 + $0x28] sm:$0xff]
    %v1925 = vld [vmem:[#allocation12 + $0x30] sm:$0xff]
    %v1926 = vld [vmem:[#allocation12 + $0x38] sm:$0xff]
    %v1927 = vld [vmem:[#allocation12 + $0x40] sm:$0xff]
    %v1928 = vld [vmem:[#allocation12 + $0x48] sm:$0xff]
    %v1929 = vld [vmem:[#allocation12 + $0x50] sm:$0xff]
    %v1930 = vld [vmem:[#allocation12 + $0x58] sm:$0xff]
    %v1931 = vld [vmem:[#allocation12 + $0x60] sm:$0xff]
    %v1932 = vld [vmem:[#allocation12 + $0x68] sm:$0xff]
    %v1933 = vld [vmem:[#allocation12 + $0x70] sm:$0xff]
    %v1934 = vld [vmem:[#allocation12 + $0x78] sm:$0xff]
    %v1935 = vld [vmem:[#allocation12 + $0x80] sm:$0xff]
    %v1936 = vld [vmem:[#allocation12 + $0x88] sm:$0xff]
    %v1937 = vld [vmem:[#allocation12 + $0x90] sm:$0xff]
    %v1938 = vld [vmem:[#allocation12 + $0x98] sm:$0xff]
    %v1939 = vld [vmem:[#allocation12 + $0xa0] sm:$0xff]
    %v1940 = vld [vmem:[#allocation12 + $0xa8] sm:$0xff]
    %v1941 = vld [vmem:[#allocation12 + $0xb0] sm:$0xff]
    %v1942 = vld [vmem:[#allocation12 + $0xb8] sm:$0xff]
    %v1943 = vld [vmem:[#allocation12 + $0xc0] sm:$0xff]
    %v1944 = vld [vmem:[#allocation12 + $0xc8] sm:$0xff]
    %v1945 = vld [vmem:[#allocation12 + $0xd0] sm:$0xff]
    %v1946 = vld [vmem:[#allocation12 + $0xd8] sm:$0xff]
    %v1947 = vld [vmem:[#allocation12 + $0xe0] sm:$0xff]
    %v1948 = vld [vmem:[#allocation12 + $0xe8] sm:$0xff]
    %v1949 = vld [vmem:[#allocation12 + $0xf0] sm:$0xff]
    %v1950 = vld [vmem:[#allocation12 + $0xf8] sm:$0xff]
    %v1951 = vld [vmem:[#allocation12 + $0x100] sm:$0xff]
    %v1952 = vld [vmem:[#allocation12 + $0x108] sm:$0xff]
    %v1953 = vld [vmem:[#allocation12 + $0x110] sm:$0xff]
    %v1954 = vld [vmem:[#allocation12 + $0x118] sm:$0xff]
    %v1955 = vld [vmem:[#allocation12 + $0x120] sm:$0xff]
    %v1956 = vld [vmem:[#allocation12 + $0x128] sm:$0xff]
    %v1957 = vld [vmem:[#allocation12 + $0x130] sm:$0xff]
    %v1958 = vld [vmem:[#allocation12 + $0x138] sm:$0xff]
    %v1959 = vld [vmem:[#allocation12 + $0x140] sm:$0xff]
    %v1960 = vld [vmem:[#allocation12 + $0x148] sm:$0xff]
    %v1961 = vld [vmem:[#allocation12 + $0x150] sm:$0xff]
    %v1962 = vld [vmem:[#allocation12 + $0x158] sm:$0xff]
    %v1963 = vld [vmem:[#allocation12 + $0x160] sm:$0xff]
    %v1964 = vld [vmem:[#allocation12 + $0x168] sm:$0xff]
    %v1965 = vld [vmem:[#allocation12 + $0x170] sm:$0xff]
    %v1966 = vld [vmem:[#allocation12 + $0x178] sm:$0xff]
    %v1967 = vld [vmem:[%s8] sm:$0x7]
    %v1968 = vld [vmem:[#allocation13] sm:$0x1]
    %v1969 = vld [vmem:[#allocation2] sm:$0xff]
    %v1970 = vld [vmem:[#allocation2 + $0x8] sm:$0xff]
    %v1971 = vld [vmem:[#allocation2 + $0x10] sm:$0xff]
    %v1972 = vld [vmem:[#allocation2 + $0x18] sm:$0xff]
    %v1973 = vld [vmem:[#allocation2 + $0x20] sm:$0xff]
    %v1974 = vld [vmem:[#allocation2 + $0x28] sm:$0xff]
    %v1975 = vld [vmem:[#allocation2 + $0x30] sm:$0xff]
    %v1976 = vld [vmem:[#allocation2 + $0x38] sm:$0xff]
    %v1978 = vlaneseq
    %v1979 = vshrl.u32 %v1978, 7
    %v1980 = vsub.s32 0, %v1979
    %v1981 = vrot.slane %v1967, %v1980
    %v1982 = vlaneseq
    %v1983 = vshrl.u32 %v1982, 7
    %v1984 = vsub.s32 1, %v1983
    %v1985 = vrot.slane %v1967, %v1984
    %v1986 = vlaneseq
    %v1987 = vshrl.u32 %v1986, 7
    %v1988 = vsub.s32 2, %v1987
    %v1989 = vrot.slane %v1967, %v1988
    %1993 = vmatprep.subr.mxu0 %v1872
    %1994 = vmatpush1.msra.mxu0 %v1871
    %1995 = vmatprep.subr.mxu0 %v1875
    %1996 = vmatpush1.msra.mxu0 %v1874
    %1997 = vmatprep.subr.mxu0 %v1878
    %1998 = vmatpush1.msra.mxu0 %v1877
    %1999 = vmatprep.subr.mxu0 %v1881
    %2000 = vmatpush1.msra.mxu0 %v1880
    %2001 = vmatprep.subr.mxu0 %v1884
    %2002 = vmatpush1.msra.mxu0 %v1883
    %2003 = vmatprep.subr.mxu0 %v1887
    %2004 = vmatpush1.msra.mxu0 %v1886
    %2005 = vmatprep.subr.mxu0 %v1890
    %2006 = vmatpush1.msra.mxu0 %v1889
    %2007 = vmatprep.subr.mxu0 %v1893
    %2008 = vmatpush1.msra.mxu0 %v1892
    %2009 = vmatprep.subr.mxu0 %v1896
    %2010 = vmatpush1.msra.mxu0 %v1895
    %2011 = vmatprep.subr.mxu0 %v1899
    %2012 = vmatpush1.msra.mxu0 %v1898
    %2013 = vmatprep.subr.mxu0 %v1902
    %2014 = vmatpush1.msra.mxu0 %v1901
    %2015 = vmatprep.subr.mxu0 %v1905
    %2016 = vmatpush1.msra.mxu0 %v1904
    %2017 = vmatprep.subr.mxu0 %v1908
    %2018 = vmatpush1.msra.mxu0 %v1907
    %2019 = vmatprep.subr.mxu0 %v1911
    %2020 = vmatpush1.msra.mxu0 %v1910
    %2021 = vmatprep.subr.mxu0 %v1914
    %2022 = vmatpush1.msra.mxu0 %v1913
    %2023 = vmatprep.subr.mxu0 %v1917
    %2024 = vmatpush1.msra.mxu0 %v1916
    %2025 = vmatprep.subr.mxu0 0.0
    %2026 = vmatpush1.msra.mxu0 0.0
    %2027 = vmatprep.subr.mxu0 0.0
    %2028 = vmatpush1.msra.mxu0 0.0
    %2029 = vmatprep.subr.mxu0 0.0
    %2030 = vmatpush1.msra.mxu0 0.0
    %2031 = vmatprep.subr.mxu0 0.0
    %2032 = vmatpush1.msra.mxu0 0.0
    %2033 = vmatprep.subr.mxu0 0.0
    %2034 = vmatpush1.msra.mxu0 0.0
    %2035 = vmatprep.subr.mxu0 0.0
    %2036 = vmatpush1.msra.mxu0 0.0
    %2037 = vmatprep.subr.mxu0 0.0
    %2038 = vmatpush1.msra.mxu0 0.0
    %2039 = vmatprep.subr.mxu0 0.0
    %2040 = vmatpush1.msra.mxu0 0.0
    %2041 = vmatprep.subr.mxu0 0.0
    %2042 = vmatpush1.msra.mxu0 0.0
    %2043 = vmatprep.subr.mxu0 0.0
    %2044 = vmatpush1.msra.mxu0 0.0
    %2045 = vmatprep.subr.mxu0 0.0
    %2046 = vmatpush1.msra.mxu0 0.0
    %2047 = vmatprep.subr.mxu0 0.0
    %2048 = vmatpush1.msra.mxu0 0.0
    %2049 = vmatprep.subr.mxu0 0.0
    %2050 = vmatpush1.msra.mxu0 0.0
    %2051 = vmatprep.subr.mxu0 0.0
    %2052 = vmatpush1.msra.mxu0 0.0
    %2053 = vmatprep.subr.mxu0 0.0
    %2054 = vmatpush1.msra.mxu0 0.0
    %2055 = vmatprep.subr.mxu0 0.0
    %2056 = vmatpush1.msra.mxu0 0.0
    %2057 = vmatprep.mubr.f32.mxu0 0.0
    %2058 = vmatmul.mubr.f32.gmra.mrb[0].mxu0 %v1969
    %v2059 = vpop.f32.mrb[0].mxu0
    %v2060 = vadd.f32 %v1981, %v2059
    %v2061 = vpop.f32.mrb[0].mxu0
    %v2062 = vadd.f32 %v1985, %v2061
    %2063 = vmatprep.mubr.f32.mxu0 0.0
    %2064 = vmatmul.mubr.f32.gmra.mrb[0].mxu0 %v1970
    %v2065 = vpop.f32.mrb[0].mxu0
    %v2066 = vadd.f32 %v1981, %v2065
    %v2067 = vpop.f32.mrb[0].mxu0
    %v2068 = vadd.f32 %v1985, %v2067
    %2069 = vmatprep.mubr.f32.mxu0 0.0
    %2070 = vmatmul.mubr.f32.gmra.mrb[0].mxu0 %v1971
    %v2071 = vpop.f32.mrb[0].mxu0
    %v2072 = vadd.f32 %v1981, %v2071
    %v2073 = vpop.f32.mrb[0].mxu0
    %v2074 = vadd.f32 %v1985, %v2073
    %2075 = vmatprep.mubr.f32.mxu0 0.0
    %2076 = vmatmul.mubr.f32.gmra.mrb[0].mxu0 %v1972
    %v2077 = vpop.f32.mrb[0].mxu0
    %v2078 = vadd.f32 %v1981, %v2077
    %v2079 = vpop.f32.mrb[0].mxu0
    %v2080 = vadd.f32 %v1985, %v2079
    %2081 = vmatprep.mubr.f32.mxu0 0.0
    %2082 = vmatmul.mubr.f32.gmra.mrb[0].mxu0 %v1973
    %v2083 = vpop.f32.mrb[0].mxu0
    %v2084 = vadd.f32 %v1981, %v2083
    %v2085 = vpop.f32.mrb[0].mxu0
    %v2086 = vadd.f32 %v1985, %v2085
    %2087 = vmatprep.mubr.f32.mxu0 0.0
    %2088 = vmatmul.mubr.f32.gmra.mrb[0].mxu0 %v1974
    %v2089 = vpop.f32.mrb[0].mxu0
    %v2090 = vadd.f32 %v1981, %v2089
    %v2091 = vpop.f32.mrb[0].mxu0
    %v2092 = vadd.f32 %v1985, %v2091
    %2093 = vmatprep.mubr.f32.mxu0 0.0
    %2094 = vmatmul.mubr.f32.gmra.mrb[0].mxu0 %v1975
    %v2095 = vpop.f32.mrb[0].mxu0
    %v2096 = vadd.f32 %v1981, %v2095
    %v2097 = vpop.f32.mrb[0].mxu0
    %v2098 = vadd.f32 %v1985, %v2097
    %2099 = vmatprep.mubr.f32.mxu0 0.0
    %2100 = vmatmul.mubr.f32.gmra.mrb[0].mxu0 %v1976
    %v2101 = vpop.f32.mrb[0].mxu0
    %v2102 = vadd.f32 %v1981, %v2101
    %v2103 = vpop.f32.mrb[0].mxu0
    %v2104 = vadd.f32 %v1985, %v2103
    %2105 = vdwg.mxu0
    %2106 = vmatprep.subr.mxu0 0.0
    %2107 = vmatpush1.msra.mxu0 %v1873
    %2108 = vmatprep.subr.mxu0 0.0
    %2109 = vmatpush1.msra.mxu0 %v1876
    %2110 = vmatprep.subr.mxu0 0.0
    %2111 = vmatpush1.msra.mxu0 %v1879
    %2112 = vmatprep.subr.mxu0 0.0
    %2113 = vmatpush1.msra.mxu0 %v1882
    %2114 = vmatprep.subr.mxu0 0.0
    %2115 = vmatpush1.msra.mxu0 %v1885
    %2116 = vmatprep.subr.mxu0 0.0
    %2117 = vmatpush1.msra.mxu0 %v1888
    %2118 = vmatprep.subr.mxu0 0.0
    %2119 = vmatpush1.msra.mxu0 %v1891
    %2120 = vmatprep.subr.mxu0 0.0
    %2121 = vmatpush1.msra.mxu0 %v1894
    %2122 = vmatprep.subr.mxu0 0.0
    %2123 = vmatpush1.msra.mxu0 %v1897
    %2124 = vmatprep.subr.mxu0 0.0
    %2125 = vmatpush1.msra.mxu0 %v1900
    %2126 = vmatprep.subr.mxu0 0.0
    %2127 = vmatpush1.msra.mxu0 %v1903
    %2128 = vmatprep.subr.mxu0 0.0
    %2129 = vmatpush1.msra.mxu0 %v1906
    %2130 = vmatprep.subr.mxu0 0.0
    %2131 = vmatpush1.msra.mxu0 %v1909
    %2132 = vmatprep.subr.mxu0 0.0
    %2133 = vmatpush1.msra.mxu0 %v1912
    %2134 = vmatprep.subr.mxu0 0.0
    %2135 = vmatpush1.msra.mxu0 %v1915
    %2136 = vmatprep.subr.mxu0 0.0
    %2137 = vmatpush1.msra.mxu0 %v1918
    %2138 = vmatprep.subr.mxu0 0.0
    %2139 = vmatpush1.msra.mxu0 0.0
    %2140 = vmatprep.subr.mxu0 0.0
    %2141 = vmatpush1.msra.mxu0 0.0
    %2142 = vmatprep.subr.mxu0 0.0
    %2143 = vmatpush1.msra.mxu0 0.0
    %2144 = vmatprep.subr.mxu0 0.0
    %2145 = vmatpush1.msra.mxu0 0.0
    %2146 = vmatprep.subr.mxu0 0.0
    %2147 = vmatpush1.msra.mxu0 0.0
    %2148 = vmatprep.subr.mxu0 0.0
    %2149 = vmatpush1.msra.mxu0 0.0
    %2150 = vmatprep.subr.mxu0 0.0
    %2151 = vmatpush1.msra.mxu0 0.0
    %2152 = vmatprep.subr.mxu0 0.0
    %2153 = vmatpush1.msra.mxu0 0.0
    %2154 = vmatprep.subr.mxu0 0.0
    %2155 = vmatpush1.msra.mxu0 0.0
    %2156 = vmatprep.subr.mxu0 0.0
    %2157 = vmatpush1.msra.mxu0 0.0
    %2158 = vmatprep.subr.mxu0 0.0
    %2159 = vmatpush1.msra.mxu0 0.0
    %2160 = vmatprep.subr.mxu0 0.0
    %2161 = vmatpush1.msra.mxu0 0.0
    %2162 = vmatprep.subr.mxu0 0.0
    %2163 = vmatpush1.msra.mxu0 0.0
    %2164 = vmatprep.subr.mxu0 0.0
    %2165 = vmatpush1.msra.mxu0 0.0
    %2166 = vmatprep.subr.mxu0 0.0
    %2167 = vmatpush1.msra.mxu0 0.0
    %2168 = vmatprep.subr.mxu0 0.0
    %2169 = vmatpush1.msra.mxu0 0.0
    %2170 = vmatprep.mubr.f32.mxu0 0.0
    %2171 = vmatmul.mubr.f32.gmra.mrb[0].mxu0 %v1969
    %v2172 = vpop.f32.mrb[0].mxu0
    %v2173 = vadd.f32 %v1989, %v2172
    %v2174 = vpop.f32.mrb[0].mxu0
    %2175 = vmatprep.mubr.f32.mxu0 0.0
    %2176 = vmatmul.mubr.f32.gmra.mrb[0].mxu0 %v1970
    %v2177 = vpop.f32.mrb[0].mxu0
    %v2178 = vadd.f32 %v1989, %v2177
    %v2179 = vpop.f32.mrb[0].mxu0
    %2180 = vmatprep.mubr.f32.mxu0 0.0
    %2181 = vmatmul.mubr.f32.gmra.mrb[0].mxu0 %v1971
    %v2182 = vpop.f32.mrb[0].mxu0
    %v2183 = vadd.f32 %v1989, %v2182
    %v2184 = vpop.f32.mrb[0].mxu0
    %2185 = vmatprep.mubr.f32.mxu0 0.0
    %2186 = vmatmul.mubr.f32.gmra.mrb[0].mxu0 %v1972
    %v2187 = vpop.f32.mrb[0].mxu0
    %v2188 = vadd.f32 %v1989, %v2187
    %v2189 = vpop.f32.mrb[0].mxu0
    %2190 = vmatprep.mubr.f32.mxu0 0.0
    %2191 = vmatmul.mubr.f32.gmra.mrb[0].mxu0 %v1973
    %v2192 = vpop.f32.mrb[0].mxu0
    %v2193 = vadd.f32 %v1989, %v2192
    %v2194 = vpop.f32.mrb[0].mxu0
    %2195 = vmatprep.mubr.f32.mxu0 0.0
    %2196 = vmatmul.mubr.f32.gmra.mrb[0].mxu0 %v1974
    %v2197 = vpop.f32.mrb[0].mxu0
    %v2198 = vadd.f32 %v1989, %v2197
    %v2199 = vpop.f32.mrb[0].mxu0
    %2200 = vmatprep.mubr.f32.mxu0 0.0
    %2201 = vmatmul.mubr.f32.gmra.mrb[0].mxu0 %v1975
    %v2202 = vpop.f32.mrb[0].mxu0
    %v2203 = vadd.f32 %v1989, %v2202
    %v2204 = vpop.f32.mrb[0].mxu0
    %2205 = vmatprep.mubr.f32.mxu0 0.0
    %2206 = vmatmul.mubr.f32.gmra.mrb[0].mxu0 %v1976
    %v2207 = vpop.f32.mrb[0].mxu0
    %v2208 = vadd.f32 %v1989, %v2207
    %v2209 = vpop.f32.mrb[0].mxu0
    %2210 = vdwg.mxu0
    %2211 = vst [vmem:[#allocation3] sm:$0xff] %v2060
    %2212 = vst [vmem:[#allocation3 + $0x8] sm:$0xff] %v2062
    %2213 = vst [vmem:[#allocation3 + $0x10] sm:$0xff] %v2173
    %2214 = vst [vmem:[#allocation3 + $0x18] sm:$0xff] %v2066
    %2215 = vst [vmem:[#allocation3 + $0x20] sm:$0xff] %v2068
    %2216 = vst [vmem:[#allocation3 + $0x28] sm:$0xff] %v2178
    %2217 = vst [vmem:[#allocation3 + $0x30] sm:$0xff] %v2072
    %2218 = vst [vmem:[#allocation3 + $0x38] sm:$0xff] %v2074
    %2219 = vst [vmem:[#allocation3 + $0x40] sm:$0xff] %v2183
    %2220 = vst [vmem:[#allocation3 + $0x48] sm:$0xff] %v2078
    %2221 = vst [vmem:[#allocation3 + $0x50] sm:$0xff] %v2080
    %2222 = vst [vmem:[#allocation3 + $0x58] sm:$0xff] %v2188
    %2223 = vst [vmem:[#allocation3 + $0x60] sm:$0xff] %v2084
    %2224 = vst [vmem:[#allocation3 + $0x68] sm:$0xff] %v2086
    %2225 = vst [vmem:[#allocation3 + $0x70] sm:$0xff] %v2193
    %2226 = vst [vmem:[#allocation3 + $0x78] sm:$0xff] %v2090
    %2227 = vst [vmem:[#allocation3 + $0x80] sm:$0xff] %v2092
    %2228 = vst [vmem:[#allocation3 + $0x88] sm:$0xff] %v2198
    %2229 = vst [vmem:[#allocation3 + $0x90] sm:$0xff] %v2096
    %2230 = vst [vmem:[#allocation3 + $0x98] sm:$0xff] %v2098
    %2231 = vst [vmem:[#allocation3 + $0xa0] sm:$0xff] %v2203
    %2232 = vst [vmem:[#allocation3 + $0xa8] sm:$0xff] %v2102
    %2233 = vst [vmem:[#allocation3 + $0xb0] sm:$0xff] %v2104
    %2234 = vst [vmem:[#allocation3 + $0xb8] sm:$0xff] %v2208
    %v2236 = vlaneseq
    %v2237 = vshrl.u32 %v2236, 7
    %v2238 = vsub.s32 0, %v2237
    %v2239 = vrot.slane %v1968, %v2238
    %s2241 = scalar_lea.vmem [#allocation4], 8
    %v2242 = vld [vmem:[%s2241] sm:$0xff]
    %v2243 = vld [vmem:[#allocation3] sm:$0xff]
    %v2244 = vld [vmem:[#allocation3 + $0x8] sm:$0xff]
    %v2245 = vld [vmem:[#allocation3 + $0x10] sm:$0xff]
    %2246 = vmatprep.subr.mxu0 %v1920
    %2247 = vmatpush1.msra.mxu0 %v1919
    %2248 = vmatprep.subr.mxu0 %v1923
    %2249 = vmatpush1.msra.mxu0 %v1922
    %2250 = vmatprep.subr.mxu0 %v1926
    %2251 = vmatpush1.msra.mxu0 %v1925
    %2252 = vmatprep.subr.mxu0 %v1929
    %2253 = vmatpush1.msra.mxu0 %v1928
    %2254 = vmatprep.subr.mxu0 %v1932
    %2255 = vmatpush1.msra.mxu0 %v1931
    %2256 = vmatprep.subr.mxu0 %v1935
    %2257 = vmatpush1.msra.mxu0 %v1934
    %2258 = vmatprep.subr.mxu0 %v1938
    %2259 = vmatpush1.msra.mxu0 %v1937
    %2260 = vmatprep.subr.mxu0 %v1941
    %2261 = vmatpush1.msra.mxu0 %v1940
    %2262 = vmatprep.subr.mxu0 %v1944
    %2263 = vmatpush1.msra.mxu0 %v1943
    %2264 = vmatprep.subr.mxu0 %v1947
    %2265 = vmatpush1.msra.mxu0 %v1946
    %2266 = vmatprep.subr.mxu0 %v1950
    %2267 = vmatpush1.msra.mxu0 %v1949
    %2268 = vmatprep.subr.mxu0 %v1953
    %2269 = vmatpush1.msra.mxu0 %v1952
    %2270 = vmatprep.subr.mxu0 %v1956
    %2271 = vmatpush1.msra.mxu0 %v1955
    %2272 = vmatprep.subr.mxu0 %v1959
    %2273 = vmatpush1.msra.mxu0 %v1958
    %2274 = vmatprep.subr.mxu0 %v1962
    %2275 = vmatpush1.msra.mxu0 %v1961
    %2276 = vmatprep.subr.mxu0 %v1965
    %2277 = vmatpush1.msra.mxu0 %v1964
    %2278 = vmatprep.subr.mxu0 0.0
    %2279 = vmatpush1.msra.mxu0 0.0
    %2280 = vmatprep.subr.mxu0 0.0
    %2281 = vmatpush1.msra.mxu0 0.0
    %2282 = vmatprep.subr.mxu0 0.0
    %2283 = vmatpush1.msra.mxu0 0.0
    %2284 = vmatprep.subr.mxu0 0.0
    %2285 = vmatpush1.msra.mxu0 0.0
    %2286 = vmatprep.subr.mxu0 0.0
    %2287 = vmatpush1.msra.mxu0 0.0
    %2288 = vmatprep.subr.mxu0 0.0
    %2289 = vmatpush1.msra.mxu0 0.0
    %2290 = vmatprep.subr.mxu0 0.0
    %2291 = vmatpush1.msra.mxu0 0.0
    %2292 = vmatprep.subr.mxu0 0.0
    %2293 = vmatpush1.msra.mxu0 0.0
    %2294 = vmatprep.subr.mxu0 0.0
    %2295 = vmatpush1.msra.mxu0 0.0
    %2296 = vmatprep.subr.mxu0 0.0
    %2297 = vmatpush1.msra.mxu0 0.0
    %2298 = vmatprep.subr.mxu0 0.0
    %2299 = vmatpush1.msra.mxu0 0.0
    %2300 = vmatprep.subr.mxu0 0.0
    %2301 = vmatpush1.msra.mxu0 0.0
    %2302 = vmatprep.subr.mxu0 0.0
    %2303 = vmatpush1.msra.mxu0 0.0
    %2304 = vmatprep.subr.mxu0 0.0
    %2305 = vmatpush1.msra.mxu0 0.0
    %2306 = vmatprep.subr.mxu0 0.0
    %2307 = vmatpush1.msra.mxu0 0.0
    %2308 = vmatprep.subr.mxu0 0.0
    %2309 = vmatpush1.msra.mxu0 0.0
    %2310 = vmatprep.mubr.f32.mxu0 0.0
    %2311 = vmatmul.mubr.f32.gmra.mrb[0].mxu0 %v2242
    %v2312 = vpop.f32.mrb[0].mxu0
    %v2313 = vadd.f32 0.0, %v2312
    %v2314 = vpop.f32.mrb[0].mxu0
    %v2315 = vadd.f32 0.0, %v2314
    %2316 = vdwg.mxu0
    %2317 = vmatprep.subr.mxu0 0.0
    %2318 = vmatpush1.msra.mxu0 %v1921
    %2319 = vmatprep.subr.mxu0 0.0
    %2320 = vmatpush1.msra.mxu0 %v1924
    %2321 = vmatprep.subr.mxu0 0.0
    %2322 = vmatpush1.msra.mxu0 %v1927
    %2323 = vmatprep.subr.mxu0 0.0
    %2324 = vmatpush1.msra.mxu0 %v1930
    %2325 = vmatprep.subr.mxu0 0.0
    %2326 = vmatpush1.msra.mxu0 %v1933
    %2327 = vmatprep.subr.mxu0 0.0
    %2328 = vmatpush1.msra.mxu0 %v1936
    %2329 = vmatprep.subr.mxu0 0.0
    %2330 = vmatpush1.msra.mxu0 %v1939
    %2331 = vmatprep.subr.mxu0 0.0
    %2332 = vmatpush1.msra.mxu0 %v1942
    %2333 = vmatprep.subr.mxu0 0.0
    %2334 = vmatpush1.msra.mxu0 %v1945
    %2335 = vmatprep.subr.mxu0 0.0
    %2336 = vmatpush1.msra.mxu0 %v1948
    %2337 = vmatprep.subr.mxu0 0.0
    %2338 = vmatpush1.msra.mxu0 %v1951
    %2339 = vmatprep.subr.mxu0 0.0
    %2340 = vmatpush1.msra.mxu0 %v1954
    %2341 = vmatprep.subr.mxu0 0.0
    %2342 = vmatpush1.msra.mxu0 %v1957
    %2343 = vmatprep.subr.mxu0 0.0
    %2344 = vmatpush1.msra.mxu0 %v1960
    %2345 = vmatprep.subr.mxu0 0.0
    %2346 = vmatpush1.msra.mxu0 %v1963
    %2347 = vmatprep.subr.mxu0 0.0
    %2348 = vmatpush1.msra.mxu0 %v1966
    %2349 = vmatprep.subr.mxu0 0.0
    %2350 = vmatpush1.msra.mxu0 0.0
    %2351 = vmatprep.subr.mxu0 0.0
    %2352 = vmatpush1.msra.mxu0 0.0
    %2353 = vmatprep.subr.mxu0 0.0
    %2354 = vmatpush1.msra.mxu0 0.0
    %2355 = vmatprep.subr.mxu0 0.0
    %2356 = vmatpush1.msra.mxu0 0.0
    %2357 = vmatprep.subr.mxu0 0.0
    %2358 = vmatpush1.msra.mxu0 0.0
    %2359 = vmatprep.subr.mxu0 0.0
    %2360 = vmatpush1.msra.mxu0 0.0
    %2361 = vmatprep.subr.mxu0 0.0
    %2362 = vmatpush1.msra.mxu0 0.0
    %2363 = vmatprep.subr.mxu0 0.0
    %2364 = vmatpush1.msra.mxu0 0.0
    %2365 = vmatprep.subr.mxu0 0.0
    %2366 = vmatpush1.msra.mxu0 0.0
    %2367 = vmatprep.subr.mxu0 0.0
    %2368 = vmatpush1.msra.mxu0 0.0
    %2369 = vmatprep.subr.mxu0 0.0
    %2370 = vmatpush1.msra.mxu0 0.0
    %2371 = vmatprep.subr.mxu0 0.0
    %2372 = vmatpush1.msra.mxu0 0.0
    %2373 = vmatprep.subr.mxu0 0.0
    %2374 = vmatpush1.msra.mxu0 0.0
    %2375 = vmatprep.subr.mxu0 0.0
    %2376 = vmatpush1.msra.mxu0 0.0
    %2377 = vmatprep.subr.mxu0 0.0
    %2378 = vmatpush1.msra.mxu0 0.0
    %2379 = vmatprep.subr.mxu0 0.0
    %2380 = vmatpush1.msra.mxu0 0.0
    %2381 = vmatprep.mubr.f32.mxu0 0.0
    %2382 = vmatmul.mubr.f32.gmra.mrb[0].mxu0 %v2242
    %v2383 = vpop.f32.mrb[0].mxu0
    %v2384 = vadd.f32 0.0, %v2383
    %v2385 = vpop.f32.mrb[0].mxu0
    %2386 = vdwg.mxu0
    %v2387 = vadd.f32 %v2243, %v2313
    %v2388 = vxor.u32 %v2387, 2147483648
    %v2389 = vmul.f32 %v2388, 1.442695
    %v2390 = vpow.pop %v2389
    %v2391 = vadd.f32 %v2390, 1.0
    %v2392 = vrcp.pop %v2391
    %v2393 = vmul.f32 1.0, %v2392
    %v2394 = vadd.f32 %v2244, %v2315
    %v2395 = vxor.u32 %v2394, 2147483648
    %v2396 = vmul.f32 %v2395, 1.442695
    %v2397 = vpow.pop %v2396
    %v2398 = vadd.f32 %v2397, 1.0
    %v2399 = vrcp.pop %v2398
    %v2400 = vmul.f32 1.0, %v2399
    %v2401 = vadd.f32 %v2384, %v2239
    %v2402 = vmul.f32 %v2393, %v2401
    %v2403 = vadd.f32 %v2245, %v2402
    %v2404 = vtanh.pop %v2403
    %v2405 = vsub.f32 1.0, %v2400
    %v2406 = vmul.f32 %v2405, %v2404
    %v2407 = vmul.f32 %v2400, %v2242
    %v2408 = vadd.f32 %v2406, %v2407
    %2409 = vst [vmem:[#allocation2] sm:$0xff] %v2408
    %v2410 = vld [vmem:[%s687] sm:$0xff]
    %v2411 = vld [vmem:[%s687 + $0x8] sm:$0xff]
    %v2412 = vld [vmem:[%s687 + $0x10] sm:$0xff]
    %2413 = vmatprep.subr.mxu0 %v1920
    %2414 = vmatpush1.msra.mxu0 %v1919
    %2415 = vmatprep.subr.mxu0 %v1923
    %2416 = vmatpush1.msra.mxu0 %v1922
    %2417 = vmatprep.subr.mxu0 %v1926
    %2418 = vmatpush1.msra.mxu0 %v1925
    %2419 = vmatprep.subr.mxu0 %v1929
    %2420 = vmatpush1.msra.mxu0 %v1928
    %2421 = vmatprep.subr.mxu0 %v1932
    %2422 = vmatpush1.msra.mxu0 %v1931
    %2423 = vmatprep.subr.mxu0 %v1935
    %2424 = vmatpush1.msra.mxu0 %v1934
    %2425 = vmatprep.subr.mxu0 %v1938
    %2426 = vmatpush1.msra.mxu0 %v1937
    %2427 = vmatprep.subr.mxu0 %v1941
    %2428 = vmatpush1.msra.mxu0 %v1940
    %2429 = vmatprep.subr.mxu0 %v1944
    %2430 = vmatpush1.msra.mxu0 %v1943
    %2431 = vmatprep.subr.mxu0 %v1947
    %2432 = vmatpush1.msra.mxu0 %v1946
    %2433 = vmatprep.subr.mxu0 %v1950
    %2434 = vmatpush1.msra.mxu0 %v1949
    %2435 = vmatprep.subr.mxu0 %v1953
    %2436 = vmatpush1.msra.mxu0 %v1952
    %2437 = vmatprep.subr.mxu0 %v1956
    %2438 = vmatpush1.msra.mxu0 %v1955
    %2439 = vmatprep.subr.mxu0 %v1959
    %2440 = vmatpush1.msra.mxu0 %v1958
    %2441 = vmatprep.subr.mxu0 %v1962
    %2442 = vmatpush1.msra.mxu0 %v1961
    %2443 = vmatprep.subr.mxu0 %v1965
    %2444 = vmatpush1.msra.mxu0 %v1964
    %2445 = vmatprep.subr.mxu0 0.0
    %2446 = vmatpush1.msra.mxu0 0.0
    %2447 = vmatprep.subr.mxu0 0.0
    %2448 = vmatpush1.msra.mxu0 0.0
    %2449 = vmatprep.subr.mxu0 0.0
    %2450 = vmatpush1.msra.mxu0 0.0
    %2451 = vmatprep.subr.mxu0 0.0
    %2452 = vmatpush1.msra.mxu0 0.0
    %2453 = vmatprep.subr.mxu0 0.0
    %2454 = vmatpush1.msra.mxu0 0.0
    %2455 = vmatprep.subr.mxu0 0.0
    %2456 = vmatpush1.msra.mxu0 0.0
    %2457 = vmatprep.subr.mxu0 0.0
    %2458 = vmatpush1.msra.mxu0 0.0
    %2459 = vmatprep.subr.mxu0 0.0
    %2460 = vmatpush1.msra.mxu0 0.0
    %2461 = vmatprep.subr.mxu0 0.0
    %2462 = vmatpush1.msra.mxu0 0.0
    %2463 = vmatprep.subr.mxu0 0.0
    %2464 = vmatpush1.msra.mxu0 0.0
    %2465 = vmatprep.subr.mxu0 0.0
    %2466 = vmatpush1.msra.mxu0 0.0
    %2467 = vmatprep.subr.mxu0 0.0
    %2468 = vmatpush1.msra.mxu0 0.0
    %2469 = vmatprep.subr.mxu0 0.0
    %2470 = vmatpush1.msra.mxu0 0.0
    %2471 = vmatprep.subr.mxu0 0.0
    %2472 = vmatpush1.msra.mxu0 0.0
    %2473 = vmatprep.subr.mxu0 0.0
    %2474 = vmatpush1.msra.mxu0 0.0
    %2475 = vmatprep.subr.mxu0 0.0
    %2476 = vmatpush1.msra.mxu0 0.0
    %2477 = vmatprep.mubr.f32.mxu0 0.0
    %2478 = vmatmul.mubr.f32.gmra.mrb[0].mxu0 %v2408
    %v2479 = vpop.f32.mrb[0].mxu0
    %v2480 = vadd.f32 0.0, %v2479
    %v2481 = vpop.f32.mrb[0].mxu0
    %v2482 = vadd.f32 0.0, %v2481
    %2483 = vdwg.mxu0
    %2484 = vmatprep.subr.mxu0 0.0
    %2485 = vmatpush1.msra.mxu0 %v1921
    %2486 = vmatprep.subr.mxu0 0.0
    %2487 = vmatpush1.msra.mxu0 %v1924
    %2488 = vmatprep.subr.mxu0 0.0
    %2489 = vmatpush1.msra.mxu0 %v1927
    %2490 = vmatprep.subr.mxu0 0.0
    %2491 = vmatpush1.msra.mxu0 %v1930
    %2492 = vmatprep.subr.mxu0 0.0
    %2493 = vmatpush1.msra.mxu0 %v1933
    %2494 = vmatprep.subr.mxu0 0.0
    %2495 = vmatpush1.msra.mxu0 %v1936
    %2496 = vmatprep.subr.mxu0 0.0
    %2497 = vmatpush1.msra.mxu0 %v1939
    %2498 = vmatprep.subr.mxu0 0.0
    %2499 = vmatpush1.msra.mxu0 %v1942
    %2500 = vmatprep.subr.mxu0 0.0
    %2501 = vmatpush1.msra.mxu0 %v1945
    %2502 = vmatprep.subr.mxu0 0.0
    %2503 = vmatpush1.msra.mxu0 %v1948
    %2504 = vmatprep.subr.mxu0 0.0
    %2505 = vmatpush1.msra.mxu0 %v1951
    %2506 = vmatprep.subr.mxu0 0.0
    %2507 = vmatpush1.msra.mxu0 %v1954
    %2508 = vmatprep.subr.mxu0 0.0
    %2509 = vmatpush1.msra.mxu0 %v1957
    %2510 = vmatprep.subr.mxu0 0.0
    %2511 = vmatpush1.msra.mxu0 %v1960
    %2512 = vmatprep.subr.mxu0 0.0
    %2513 = vmatpush1.msra.mxu0 %v1963
    %2514 = vmatprep.subr.mxu0 0.0
    %2515 = vmatpush1.msra.mxu0 %v1966
    %2516 = vmatprep.subr.mxu0 0.0
    %2517 = vmatpush1.msra.mxu0 0.0
    %2518 = vmatprep.subr.mxu0 0.0
    %2519 = vmatpush1.msra.mxu0 0.0
    %2520 = vmatprep.subr.mxu0 0.0
    %2521 = vmatpush1.msra.mxu0 0.0
    %2522 = vmatprep.subr.mxu0 0.0
    %2523 = vmatpush1.msra.mxu0 0.0
    %2524 = vmatprep.subr.mxu0 0.0
    %2525 = vmatpush1.msra.mxu0 0.0
    %2526 = vmatprep.subr.mxu0 0.0
    %2527 = vmatpush1.msra.mxu0 0.0
    %2528 = vmatprep.subr.mxu0 0.0
    %2529 = vmatpush1.msra.mxu0 0.0
    %2530 = vmatprep.subr.mxu0 0.0
    %2531 = vmatpush1.msra.mxu0 0.0
    %2532 = vmatprep.subr.mxu0 0.0
    %2533 = vmatpush1.msra.mxu0 0.0
    %2534 = vmatprep.subr.mxu0 0.0
    %2535 = vmatpush1.msra.mxu0 0.0
    %2536 = vmatprep.subr.mxu0 0.0
    %2537 = vmatpush1.msra.mxu0 0.0
    %2538 = vmatprep.subr.mxu0 0.0
    %2539 = vmatpush1.msra.mxu0 0.0
    %2540 = vmatprep.subr.mxu0 0.0
    %2541 = vmatpush1.msra.mxu0 0.0
    %2542 = vmatprep.subr.mxu0 0.0
    %2543 = vmatpush1.msra.mxu0 0.0
    %2544 = vmatprep.subr.mxu0 0.0
    %2545 = vmatpush1.msra.mxu0 0.0
    %2546 = vmatprep.subr.mxu0 0.0
    %2547 = vmatpush1.msra.mxu0 0.0
    %2548 = vmatprep.mubr.f32.mxu0 0.0
    %2549 = vmatmul.mubr.f32.gmra.mrb[0].mxu0 %v2408
    %v2550 = vpop.f32.mrb[0].mxu0
    %v2551 = vadd.f32 0.0, %v2550
    %v2552 = vpop.f32.mrb[0].mxu0
    %2553 = vdwg.mxu0
    %v2554 = vadd.f32 %v2410, %v2480
    %v2555 = vxor.u32 %v2554, 2147483648
    %v2556 = vmul.f32 %v2555, 1.442695
    %v2557 = vpow.pop %v2556
    %v2558 = vadd.f32 %v2557, 1.0
    %v2559 = vrcp.pop %v2558
    %v2560 = vmul.f32 1.0, %v2559
    %v2561 = vadd.f32 %v2411, %v2482
    %v2562 = vxor.u32 %v2561, 2147483648
    %v2563 = vmul.f32 %v2562, 1.442695
    %v2564 = vpow.pop %v2563
    %v2565 = vadd.f32 %v2564, 1.0
    %v2566 = vrcp.pop %v2565
    %v2567 = vmul.f32 1.0, %v2566
    %v2568 = vadd.f32 %v2551, %v2239
    %v2569 = vmul.f32 %v2560, %v2568
    %v2570 = vadd.f32 %v2412, %v2569
    %v2571 = vtanh.pop %v2570
    %v2572 = vsub.f32 1.0, %v2567
    %v2573 = vmul.f32 %v2572, %v2571
    %v2574 = vmul.f32 %v2567, %v2408
    %v2575 = vadd.f32 %v2573, %v2574
    %2576 = vst [vmem:[%s854] sm:$0xff] %v2575
    %v2577 = vld [vmem:[%s856] sm:$0xff]
    %v2578 = vld [vmem:[%s856 + $0x8] sm:$0xff]
    %v2579 = vld [vmem:[%s856 + $0x10] sm:$0xff]
    %2580 = vmatprep.subr.mxu0 %v1920
    %2581 = vmatpush1.msra.mxu0 %v1919
    %2582 = vmatprep.subr.mxu0 %v1923
    %2583 = vmatpush1.msra.mxu0 %v1922
    %2584 = vmatprep.subr.mxu0 %v1926
    %2585 = vmatpush1.msra.mxu0 %v1925
    %2586 = vmatprep.subr.mxu0 %v1929
    %2587 = vmatpush1.msra.mxu0 %v1928
    %2588 = vmatprep.subr.mxu0 %v1932
    %2589 = vmatpush1.msra.mxu0 %v1931
    %2590 = vmatprep.subr.mxu0 %v1935
    %2591 = vmatpush1.msra.mxu0 %v1934
    %2592 = vmatprep.subr.mxu0 %v1938
    %2593 = vmatpush1.msra.mxu0 %v1937
    %2594 = vmatprep.subr.mxu0 %v1941
    %2595 = vmatpush1.msra.mxu0 %v1940
    %2596 = vmatprep.subr.mxu0 %v1944
    %2597 = vmatpush1.msra.mxu0 %v1943
    %2598 = vmatprep.subr.mxu0 %v1947
    %2599 = vmatpush1.msra.mxu0 %v1946
    %2600 = vmatprep.subr.mxu0 %v1950
    %2601 = vmatpush1.msra.mxu0 %v1949
    %2602 = vmatprep.subr.mxu0 %v1953
    %2603 = vmatpush1.msra.mxu0 %v1952
    %2604 = vmatprep.subr.mxu0 %v1956
    %2605 = vmatpush1.msra.mxu0 %v1955
    %2606 = vmatprep.subr.mxu0 %v1959
    %2607 = vmatpush1.msra.mxu0 %v1958
    %2608 = vmatprep.subr.mxu0 %v1962
    %2609 = vmatpush1.msra.mxu0 %v1961
    %2610 = vmatprep.subr.mxu0 %v1965
    %2611 = vmatpush1.msra.mxu0 %v1964
    %2612 = vmatprep.subr.mxu0 0.0
    %2613 = vmatpush1.msra.mxu0 0.0
    %2614 = vmatprep.subr.mxu0 0.0
    %2615 = vmatpush1.msra.mxu0 0.0
    %2616 = vmatprep.subr.mxu0 0.0
    %2617 = vmatpush1.msra.mxu0 0.0
    %2618 = vmatprep.subr.mxu0 0.0
    %2619 = vmatpush1.msra.mxu0 0.0
    %2620 = vmatprep.subr.mxu0 0.0
    %2621 = vmatpush1.msra.mxu0 0.0
    %2622 = vmatprep.subr.mxu0 0.0
    %2623 = vmatpush1.msra.mxu0 0.0
    %2624 = vmatprep.subr.mxu0 0.0
    %2625 = vmatpush1.msra.mxu0 0.0
    %2626 = vmatprep.subr.mxu0 0.0
    %2627 = vmatpush1.msra.mxu0 0.0
    %2628 = vmatprep.subr.mxu0 0.0
    %2629 = vmatpush1.msra.mxu0 0.0
    %2630 = vmatprep.subr.mxu0 0.0
    %2631 = vmatpush1.msra.mxu0 0.0
    %2632 = vmatprep.subr.mxu0 0.0
    %2633 = vmatpush1.msra.mxu0 0.0
    %2634 = vmatprep.subr.mxu0 0.0
    %2635 = vmatpush1.msra.mxu0 0.0
    %2636 = vmatprep.subr.mxu0 0.0
    %2637 = vmatpush1.msra.mxu0 0.0
    %2638 = vmatprep.subr.mxu0 0.0
    %2639 = vmatpush1.msra.mxu0 0.0
    %2640 = vmatprep.subr.mxu0 0.0
    %2641 = vmatpush1.msra.mxu0 0.0
    %2642 = vmatprep.subr.mxu0 0.0
    %2643 = vmatpush1.msra.mxu0 0.0
    %2644 = vmatprep.mubr.f32.mxu0 0.0
    %2645 = vmatmul.mubr.f32.gmra.mrb[0].mxu0 %v2575
    %v2646 = vpop.f32.mrb[0].mxu0
    %v2647 = vadd.f32 0.0, %v2646
    %v2648 = vpop.f32.mrb[0].mxu0
    %v2649 = vadd.f32 0.0, %v2648
    %2650 = vdwg.mxu0
    %2651 = vmatprep.subr.mxu0 0.0
    %2652 = vmatpush1.msra.mxu0 %v1921
    %2653 = vmatprep.subr.mxu0 0.0
    %2654 = vmatpush1.msra.mxu0 %v1924
    %2655 = vmatprep.subr.mxu0 0.0
    %2656 = vmatpush1.msra.mxu0 %v1927
    %2657 = vmatprep.subr.mxu0 0.0
    %2658 = vmatpush1.msra.mxu0 %v1930
    %2659 = vmatprep.subr.mxu0 0.0
    %2660 = vmatpush1.msra.mxu0 %v1933
    %2661 = vmatprep.subr.mxu0 0.0
    %2662 = vmatpush1.msra.mxu0 %v1936
    %2663 = vmatprep.subr.mxu0 0.0
    %2664 = vmatpush1.msra.mxu0 %v1939
    %2665 = vmatprep.subr.mxu0 0.0
    %2666 = vmatpush1.msra.mxu0 %v1942
    %2667 = vmatprep.subr.mxu0 0.0
    %2668 = vmatpush1.msra.mxu0 %v1945
    %2669 = vmatprep.subr.mxu0 0.0
    %2670 = vmatpush1.msra.mxu0 %v1948
    %2671 = vmatprep.subr.mxu0 0.0
    %2672 = vmatpush1.msra.mxu0 %v1951
    %2673 = vmatprep.subr.mxu0 0.0
    %2674 = vmatpush1.msra.mxu0 %v1954
    %2675 = vmatprep.subr.mxu0 0.0
    %2676 = vmatpush1.msra.mxu0 %v1957
    %2677 = vmatprep.subr.mxu0 0.0
    %2678 = vmatpush1.msra.mxu0 %v1960
    %2679 = vmatprep.subr.mxu0 0.0
    %2680 = vmatpush1.msra.mxu0 %v1963
    %2681 = vmatprep.subr.mxu0 0.0
    %2682 = vmatpush1.msra.mxu0 %v1966
    %2683 = vmatprep.subr.mxu0 0.0
    %2684 = vmatpush1.msra.mxu0 0.0
    %2685 = vmatprep.subr.mxu0 0.0
    %2686 = vmatpush1.msra.mxu0 0.0
    %2687 = vmatprep.subr.mxu0 0.0
    %2688 = vmatpush1.msra.mxu0 0.0
    %2689 = vmatprep.subr.mxu0 0.0
    %2690 = vmatpush1.msra.mxu0 0.0
    %2691 = vmatprep.subr.mxu0 0.0
    %2692 = vmatpush1.msra.mxu0 0.0
    %2693 = vmatprep.subr.mxu0 0.0
    %2694 = vmatpush1.msra.mxu0 0.0
    %2695 = vmatprep.subr.mxu0 0.0
    %2696 = vmatpush1.msra.mxu0 0.0
    %2697 = vmatprep.subr.mxu0 0.0
    %2698 = vmatpush1.msra.mxu0 0.0
    %2699 = vmatprep.subr.mxu0 0.0
    %2700 = vmatpush1.msra.mxu0 0.0
    %2701 = vmatprep.subr.mxu0 0.0
    %2702 = vmatpush1.msra.mxu0 0.0
    %2703 = vmatprep.subr.mxu0 0.0
    %2704 = vmatpush1.msra.mxu0 0.0
    %2705 = vmatprep.subr.mxu0 0.0
    %2706 = vmatpush1.msra.mxu0 0.0
    %2707 = vmatprep.subr.mxu0 0.0
    %2708 = vmatpush1.msra.mxu0 0.0
    %2709 = vmatprep.subr.mxu0 0.0
    %2710 = vmatpush1.msra.mxu0 0.0
    %2711 = vmatprep.subr.mxu0 0.0
    %2712 = vmatpush1.msra.mxu0 0.0
    %2713 = vmatprep.subr.mxu0 0.0
    %2714 = vmatpush1.msra.mxu0 0.0
    %2715 = vmatprep.mubr.f32.mxu0 0.0
    %2716 = vmatmul.mubr.f32.gmra.mrb[0].mxu0 %v2575
    %v2717 = vpop.f32.mrb[0].mxu0
    %v2718 = vadd.f32 0.0, %v2717
    %v2719 = vpop.f32.mrb[0].mxu0
    %2720 = vdwg.mxu0
    %v2721 = vadd.f32 %v2577, %v2647
    %v2722 = vxor.u32 %v2721, 2147483648
    %v2723 = vmul.f32 %v2722, 1.442695
    %v2724 = vpow.pop %v2723
    %v2725 = vadd.f32 %v2724, 1.0
    %v2726 = vrcp.pop %v2725
    %v2727 = vmul.f32 1.0, %v2726
    %v2728 = vadd.f32 %v2578, %v2649
    %v2729 = vxor.u32 %v2728, 2147483648
    %v2730 = vmul.f32 %v2729, 1.442695
    %v2731 = vpow.pop %v2730
    %v2732 = vadd.f32 %v2731, 1.0
    %v2733 = vrcp.pop %v2732
    %v2734 = vmul.f32 1.0, %v2733
    %v2735 = vadd.f32 %v2718, %v2239
    %v2736 = vmul.f32 %v2727, %v2735
    %v2737 = vadd.f32 %v2579, %v2736
    %v2738 = vtanh.pop %v2737
    %v2739 = vsub.f32 1.0, %v2734
    %v2740 = vmul.f32 %v2739, %v2738
    %v2741 = vmul.f32 %v2734, %v2575
    %v2742 = vadd.f32 %v2740, %v2741
    %2743 = vst [vmem:[%s1023] sm:$0xff] %v2742
    %v2744 = vld [vmem:[%s1025] sm:$0xff]
    %v2745 = vld [vmem:[%s1025 + $0x8] sm:$0xff]
    %v2746 = vld [vmem:[%s1025 + $0x10] sm:$0xff]
    %2747 = vmatprep.subr.mxu0 %v1920
    %2748 = vmatpush1.msra.mxu0 %v1919
    %2749 = vmatprep.subr.mxu0 %v1923
    %2750 = vmatpush1.msra.mxu0 %v1922
    %2751 = vmatprep.subr.mxu0 %v1926
    %2752 = vmatpush1.msra.mxu0 %v1925
    %2753 = vmatprep.subr.mxu0 %v1929
    %2754 = vmatpush1.msra.mxu0 %v1928
    %2755 = vmatprep.subr.mxu0 %v1932
    %2756 = vmatpush1.msra.mxu0 %v1931
    %2757 = vmatprep.subr.mxu0 %v1935
    %2758 = vmatpush1.msra.mxu0 %v1934
    %2759 = vmatprep.subr.mxu0 %v1938
    %2760 = vmatpush1.msra.mxu0 %v1937
    %2761 = vmatprep.subr.mxu0 %v1941
    %2762 = vmatpush1.msra.mxu0 %v1940
    %2763 = vmatprep.subr.mxu0 %v1944
    %2764 = vmatpush1.msra.mxu0 %v1943
    %2765 = vmatprep.subr.mxu0 %v1947
    %2766 = vmatpush1.msra.mxu0 %v1946
    %2767 = vmatprep.subr.mxu0 %v1950
    %2768 = vmatpush1.msra.mxu0 %v1949
    %2769 = vmatprep.subr.mxu0 %v1953
    %2770 = vmatpush1.msra.mxu0 %v1952
    %2771 = vmatprep.subr.mxu0 %v1956
    %2772 = vmatpush1.msra.mxu0 %v1955
    %2773 = vmatprep.subr.mxu0 %v1959
    %2774 = vmatpush1.msra.mxu0 %v1958
    %2775 = vmatprep.subr.mxu0 %v1962
    %2776 = vmatpush1.msra.mxu0 %v1961
    %2777 = vmatprep.subr.mxu0 %v1965
    %2778 = vmatpush1.msra.mxu0 %v1964
    %2779 = vmatprep.subr.mxu0 0.0
    %2780 = vmatpush1.msra.mxu0 0.0
    %2781 = vmatprep.subr.mxu0 0.0
    %2782 = vmatpush1.msra.mxu0 0.0
    %2783 = vmatprep.subr.mxu0 0.0
    %2784 = vmatpush1.msra.mxu0 0.0
    %2785 = vmatprep.subr.mxu0 0.0
    %2786 = vmatpush1.msra.mxu0 0.0
    %2787 = vmatprep.subr.mxu0 0.0
    %2788 = vmatpush1.msra.mxu0 0.0
    %2789 = vmatprep.subr.mxu0 0.0
    %2790 = vmatpush1.msra.mxu0 0.0
    %2791 = vmatprep.subr.mxu0 0.0
    %2792 = vmatpush1.msra.mxu0 0.0
    %2793 = vmatprep.subr.mxu0 0.0
    %2794 = vmatpush1.msra.mxu0 0.0
    %2795 = vmatprep.subr.mxu0 0.0
    %2796 = vmatpush1.msra.mxu0 0.0
    %2797 = vmatprep.subr.mxu0 0.0
    %2798 = vmatpush1.msra.mxu0 0.0
    %2799 = vmatprep.subr.mxu0 0.0
    %2800 = vmatpush1.msra.mxu0 0.0
    %2801 = vmatprep.subr.mxu0 0.0
    %2802 = vmatpush1.msra.mxu0 0.0
    %2803 = vmatprep.subr.mxu0 0.0
    %2804 = vmatpush1.msra.mxu0 0.0
    %2805 = vmatprep.subr.mxu0 0.0
    %2806 = vmatpush1.msra.mxu0 0.0
    %2807 = vmatprep.subr.mxu0 0.0
    %2808 = vmatpush1.msra.mxu0 0.0
    %2809 = vmatprep.subr.mxu0 0.0
    %2810 = vmatpush1.msra.mxu0 0.0
    %2811 = vmatprep.mubr.f32.mxu0 0.0
    %2812 = vmatmul.mubr.f32.gmra.mrb[0].mxu0 %v2742
    %v2813 = vpop.f32.mrb[0].mxu0
    %v2814 = vadd.f32 0.0, %v2813
    %v2815 = vpop.f32.mrb[0].mxu0
    %v2816 = vadd.f32 0.0, %v2815
    %2817 = vdwg.mxu0
    %2818 = vmatprep.subr.mxu0 0.0
    %2819 = vmatpush1.msra.mxu0 %v1921
    %2820 = vmatprep.subr.mxu0 0.0
    %2821 = vmatpush1.msra.mxu0 %v1924
    %2822 = vmatprep.subr.mxu0 0.0
    %2823 = vmatpush1.msra.mxu0 %v1927
    %2824 = vmatprep.subr.mxu0 0.0
    %2825 = vmatpush1.msra.mxu0 %v1930
    %2826 = vmatprep.subr.mxu0 0.0
    %2827 = vmatpush1.msra.mxu0 %v1933
    %2828 = vmatprep.subr.mxu0 0.0
    %2829 = vmatpush1.msra.mxu0 %v1936
    %2830 = vmatprep.subr.mxu0 0.0
    %2831 = vmatpush1.msra.mxu0 %v1939
    %2832 = vmatprep.subr.mxu0 0.0
    %2833 = vmatpush1.msra.mxu0 %v1942
    %2834 = vmatprep.subr.mxu0 0.0
    %2835 = vmatpush1.msra.mxu0 %v1945
    %2836 = vmatprep.subr.mxu0 0.0
    %2837 = vmatpush1.msra.mxu0 %v1948
    %2838 = vmatprep.subr.mxu0 0.0
    %2839 = vmatpush1.msra.mxu0 %v1951
    %2840 = vmatprep.subr.mxu0 0.0
    %2841 = vmatpush1.msra.mxu0 %v1954
    %2842 = vmatprep.subr.mxu0 0.0
    %2843 = vmatpush1.msra.mxu0 %v1957
    %2844 = vmatprep.subr.mxu0 0.0
    %2845 = vmatpush1.msra.mxu0 %v1960
    %2846 = vmatprep.subr.mxu0 0.0
    %2847 = vmatpush1.msra.mxu0 %v1963
    %2848 = vmatprep.subr.mxu0 0.0
    %2849 = vmatpush1.msra.mxu0 %v1966
    %2850 = vmatprep.subr.mxu0 0.0
    %2851 = vmatpush1.msra.mxu0 0.0
    %2852 = vmatprep.subr.mxu0 0.0
    %2853 = vmatpush1.msra.mxu0 0.0
    %2854 = vmatprep.subr.mxu0 0.0
    %2855 = vmatpush1.msra.mxu0 0.0
    %2856 = vmatprep.subr.mxu0 0.0
    %2857 = vmatpush1.msra.mxu0 0.0
    %2858 = vmatprep.subr.mxu0 0.0
    %2859 = vmatpush1.msra.mxu0 0.0
    %2860 = vmatprep.subr.mxu0 0.0
    %2861 = vmatpush1.msra.mxu0 0.0
    %2862 = vmatprep.subr.mxu0 0.0
    %2863 = vmatpush1.msra.mxu0 0.0
    %2864 = vmatprep.subr.mxu0 0.0
    %2865 = vmatpush1.msra.mxu0 0.0
    %2866 = vmatprep.subr.mxu0 0.0
    %2867 = vmatpush1.msra.mxu0 0.0
    %2868 = vmatprep.subr.mxu0 0.0
    %2869 = vmatpush1.msra.mxu0 0.0
    %2870 = vmatprep.subr.mxu0 0.0
    %2871 = vmatpush1.msra.mxu0 0.0
    %2872 = vmatprep.subr.mxu0 0.0
    %2873 = vmatpush1.msra.mxu0 0.0
    %2874 = vmatprep.subr.mxu0 0.0
    %2875 = vmatpush1.msra.mxu0 0.0
    %2876 = vmatprep.subr.mxu0 0.0
    %2877 = vmatpush1.msra.mxu0 0.0
    %2878 = vmatprep.subr.mxu0 0.0
    %2879 = vmatpush1.msra.mxu0 0.0
    %2880 = vmatprep.subr.mxu0 0.0
    %2881 = vmatpush1.msra.mxu0 0.0
    %2882 = vmatprep.mubr.f32.mxu0 0.0
    %2883 = vmatmul.mubr.f32.gmra.mrb[0].mxu0 %v2742
    %v2884 = vpop.f32.mrb[0].mxu0
    %v2885 = vadd.f32 0.0, %v2884
    %v2886 = vpop.f32.mrb[0].mxu0
    %2887 = vdwg.mxu0
    %v2888 = vadd.f32 %v2744, %v2814
    %v2889 = vxor.u32 %v2888, 2147483648
    %v2890 = vmul.f32 %v2889, 1.442695
    %v2891 = vpow.pop %v2890
    %v2892 = vadd.f32 %v2891, 1.0
    %v2893 = vrcp.pop %v2892
    %v2894 = vmul.f32 1.0, %v2893
    %v2895 = vadd.f32 %v2745, %v2816
    %v2896 = vxor.u32 %v2895, 2147483648
    %v2897 = vmul.f32 %v2896, 1.442695
    %v2898 = vpow.pop %v2897
    %v2899 = vadd.f32 %v2898, 1.0
    %v2900 = vrcp.pop %v2899
    %v2901 = vmul.f32 1.0, %v2900
    %v2902 = vadd.f32 %v2885, %v2239
    %v2903 = vmul.f32 %v2894, %v2902
    %v2904 = vadd.f32 %v2746, %v2903
    %v2905 = vtanh.pop %v2904
    %v2906 = vsub.f32 1.0, %v2901
    %v2907 = vmul.f32 %v2906, %v2905
    %v2908 = vmul.f32 %v2901, %v2742
    %v2909 = vadd.f32 %v2907, %v2908
    %2910 = vst [vmem:[%s1192] sm:$0xff] %v2909
    %v2911 = vld [vmem:[%s1194] sm:$0xff]
    %v2912 = vld [vmem:[%s1194 + $0x8] sm:$0xff]
    %v2913 = vld [vmem:[%s1194 + $0x10] sm:$0xff]
    %2914 = vmatprep.subr.mxu0 %v1920
    %2915 = vmatpush1.msra.mxu0 %v1919
    %2916 = vmatprep.subr.mxu0 %v1923
    %2917 = vmatpush1.msra.mxu0 %v1922
    %2918 = vmatprep.subr.mxu0 %v1926
    %2919 = vmatpush1.msra.mxu0 %v1925
    %2920 = vmatprep.subr.mxu0 %v1929
    %2921 = vmatpush1.msra.mxu0 %v1928
    %2922 = vmatprep.subr.mxu0 %v1932
    %2923 = vmatpush1.msra.mxu0 %v1931
    %2924 = vmatprep.subr.mxu0 %v1935
    %2925 = vmatpush1.msra.mxu0 %v1934
    %2926 = vmatprep.subr.mxu0 %v1938
    %2927 = vmatpush1.msra.mxu0 %v1937
    %2928 = vmatprep.subr.mxu0 %v1941
    %2929 = vmatpush1.msra.mxu0 %v1940
    %2930 = vmatprep.subr.mxu0 %v1944
    %2931 = vmatpush1.msra.mxu0 %v1943
    %2932 = vmatprep.subr.mxu0 %v1947
    %2933 = vmatpush1.msra.mxu0 %v1946
    %2934 = vmatprep.subr.mxu0 %v1950
    %2935 = vmatpush1.msra.mxu0 %v1949
    %2936 = vmatprep.subr.mxu0 %v1953
    %2937 = vmatpush1.msra.mxu0 %v1952
    %2938 = vmatprep.subr.mxu0 %v1956
    %2939 = vmatpush1.msra.mxu0 %v1955
    %2940 = vmatprep.subr.mxu0 %v1959
    %2941 = vmatpush1.msra.mxu0 %v1958
    %2942 = vmatprep.subr.mxu0 %v1962
    %2943 = vmatpush1.msra.mxu0 %v1961
    %2944 = vmatprep.subr.mxu0 %v1965
    %2945 = vmatpush1.msra.mxu0 %v1964
    %2946 = vmatprep.subr.mxu0 0.0
    %2947 = vmatpush1.msra.mxu0 0.0
    %2948 = vmatprep.subr.mxu0 0.0
    %2949 = vmatpush1.msra.mxu0 0.0
    %2950 = vmatprep.subr.mxu0 0.0
    %2951 = vmatpush1.msra.mxu0 0.0
    %2952 = vmatprep.subr.mxu0 0.0
    %2953 = vmatpush1.msra.mxu0 0.0
    %2954 = vmatprep.subr.mxu0 0.0
    %2955 = vmatpush1.msra.mxu0 0.0
    %2956 = vmatprep.subr.mxu0 0.0
    %2957 = vmatpush1.msra.mxu0 0.0
    %2958 = vmatprep.subr.mxu0 0.0
    %2959 = vmatpush1.msra.mxu0 0.0
    %2960 = vmatprep.subr.mxu0 0.0
    %2961 = vmatpush1.msra.mxu0 0.0
    %2962 = vmatprep.subr.mxu0 0.0
    %2963 = vmatpush1.msra.mxu0 0.0
    %2964 = vmatprep.subr.mxu0 0.0
    %2965 = vmatpush1.msra.mxu0 0.0
    %2966 = vmatprep.subr.mxu0 0.0
    %2967 = vmatpush1.msra.mxu0 0.0
    %2968 = vmatprep.subr.mxu0 0.0
    %2969 = vmatpush1.msra.mxu0 0.0
    %2970 = vmatprep.subr.mxu0 0.0
    %2971 = vmatpush1.msra.mxu0 0.0
    %2972 = vmatprep.subr.mxu0 0.0
    %2973 = vmatpush1.msra.mxu0 0.0
    %2974 = vmatprep.subr.mxu0 0.0
    %2975 = vmatpush1.msra.mxu0 0.0
    %2976 = vmatprep.subr.mxu0 0.0
    %2977 = vmatpush1.msra.mxu0 0.0
    %2978 = vmatprep.mubr.f32.mxu0 0.0
    %2979 = vmatmul.mubr.f32.gmra.mrb[0].mxu0 %v2909
    %v2980 = vpop.f32.mrb[0].mxu0
    %v2981 = vadd.f32 0.0, %v2980
    %v2982 = vpop.f32.mrb[0].mxu0
    %v2983 = vadd.f32 0.0, %v2982
    %2984 = vdwg.mxu0
    %2985 = vmatprep.subr.mxu0 0.0
    %2986 = vmatpush1.msra.mxu0 %v1921
    %2987 = vmatprep.subr.mxu0 0.0
    %2988 = vmatpush1.msra.mxu0 %v1924
    %2989 = vmatprep.subr.mxu0 0.0
    %2990 = vmatpush1.msra.mxu0 %v1927
    %2991 = vmatprep.subr.mxu0 0.0
    %2992 = vmatpush1.msra.mxu0 %v1930
    %2993 = vmatprep.subr.mxu0 0.0
    %2994 = vmatpush1.msra.mxu0 %v1933
    %2995 = vmatprep.subr.mxu0 0.0
    %2996 = vmatpush1.msra.mxu0 %v1936
    %2997 = vmatprep.subr.mxu0 0.0
    %2998 = vmatpush1.msra.mxu0 %v1939
    %2999 = vmatprep.subr.mxu0 0.0
    %3000 = vmatpush1.msra.mxu0 %v1942
    %3001 = vmatprep.subr.mxu0 0.0
    %3002 = vmatpush1.msra.mxu0 %v1945
    %3003 = vmatprep.subr.mxu0 0.0
    %3004 = vmatpush1.msra.mxu0 %v1948
    %3005 = vmatprep.subr.mxu0 0.0
    %3006 = vmatpush1.msra.mxu0 %v1951
    %3007 = vmatprep.subr.mxu0 0.0
    %3008 = vmatpush1.msra.mxu0 %v1954
    %3009 = vmatprep.subr.mxu0 0.0
    %3010 = vmatpush1.msra.mxu0 %v1957
    %3011 = vmatprep.subr.mxu0 0.0
    %3012 = vmatpush1.msra.mxu0 %v1960
    %3013 = vmatprep.subr.mxu0 0.0
    %3014 = vmatpush1.msra.mxu0 %v1963
    %3015 = vmatprep.subr.mxu0 0.0
    %3016 = vmatpush1.msra.mxu0 %v1966
    %3017 = vmatprep.subr.mxu0 0.0
    %3018 = vmatpush1.msra.mxu0 0.0
    %3019 = vmatprep.subr.mxu0 0.0
    %3020 = vmatpush1.msra.mxu0 0.0
    %3021 = vmatprep.subr.mxu0 0.0
    %3022 = vmatpush1.msra.mxu0 0.0
    %3023 = vmatprep.subr.mxu0 0.0
    %3024 = vmatpush1.msra.mxu0 0.0
    %3025 = vmatprep.subr.mxu0 0.0
    %3026 = vmatpush1.msra.mxu0 0.0
    %3027 = vmatprep.subr.mxu0 0.0
    %3028 = vmatpush1.msra.mxu0 0.0
    %3029 = vmatprep.subr.mxu0 0.0
    %3030 = vmatpush1.msra.mxu0 0.0
    %3031 = vmatprep.subr.mxu0 0.0
    %3032 = vmatpush1.msra.mxu0 0.0
    %3033 = vmatprep.subr.mxu0 0.0
    %3034 = vmatpush1.msra.mxu0 0.0
    %3035 = vmatprep.subr.mxu0 0.0
    %3036 = vmatpush1.msra.mxu0 0.0
    %3037 = vmatprep.subr.mxu0 0.0
    %3038 = vmatpush1.msra.mxu0 0.0
    %3039 = vmatprep.subr.mxu0 0.0
    %3040 = vmatpush1.msra.mxu0 0.0
    %3041 = vmatprep.subr.mxu0 0.0
    %3042 = vmatpush1.msra.mxu0 0.0
    %3043 = vmatprep.subr.mxu0 0.0
    %3044 = vmatpush1.msra.mxu0 0.0
    %3045 = vmatprep.subr.mxu0 0.0
    %3046 = vmatpush1.msra.mxu0 0.0
    %3047 = vmatprep.subr.mxu0 0.0
    %3048 = vmatpush1.msra.mxu0 0.0
    %3049 = vmatprep.mubr.f32.mxu0 0.0
    %3050 = vmatmul.mubr.f32.gmra.mrb[0].mxu0 %v2909
    %v3051 = vpop.f32.mrb[0].mxu0
    %v3052 = vadd.f32 0.0, %v3051
    %v3053 = vpop.f32.mrb[0].mxu0
    %3054 = vdwg.mxu0
    %v3055 = vadd.f32 %v2911, %v2981
    %v3056 = vxor.u32 %v3055, 2147483648
    %v3057 = vmul.f32 %v3056, 1.442695
    %v3058 = vpow.pop %v3057
    %v3059 = vadd.f32 %v3058, 1.0
    %v3060 = vrcp.pop %v3059
    %v3061 = vmul.f32 1.0, %v3060
    %v3062 = vadd.f32 %v2912, %v2983
    %v3063 = vxor.u32 %v3062, 2147483648
    %v3064 = vmul.f32 %v3063, 1.442695
    %v3065 = vpow.pop %v3064
    %v3066 = vadd.f32 %v3065, 1.0
    %v3067 = vrcp.pop %v3066
    %v3068 = vmul.f32 1.0, %v3067
    %v3069 = vadd.f32 %v3052, %v2239
    %v3070 = vmul.f32 %v3061, %v3069
    %v3071 = vadd.f32 %v2913, %v3070
    %v3072 = vtanh.pop %v3071
    %v3073 = vsub.f32 1.0, %v3068
    %v3074 = vmul.f32 %v3073, %v3072
    %v3075 = vmul.f32 %v3068, %v2909
    %v3076 = vadd.f32 %v3074, %v3075
    %3077 = vst [vmem:[%s1361] sm:$0xff] %v3076
    %v3078 = vld [vmem:[%s1363] sm:$0xff]
    %v3079 = vld [vmem:[%s1363 + $0x8] sm:$0xff]
    %v3080 = vld [vmem:[%s1363 + $0x10] sm:$0xff]
    %3081 = vmatprep.subr.mxu0 %v1920
    %3082 = vmatpush1.msra.mxu0 %v1919
    %3083 = vmatprep.subr.mxu0 %v1923
    %3084 = vmatpush1.msra.mxu0 %v1922
    %3085 = vmatprep.subr.mxu0 %v1926
    %3086 = vmatpush1.msra.mxu0 %v1925
    %3087 = vmatprep.subr.mxu0 %v1929
    %3088 = vmatpush1.msra.mxu0 %v1928
    %3089 = vmatprep.subr.mxu0 %v1932
    %3090 = vmatpush1.msra.mxu0 %v1931
    %3091 = vmatprep.subr.mxu0 %v1935
    %3092 = vmatpush1.msra.mxu0 %v1934
    %3093 = vmatprep.subr.mxu0 %v1938
    %3094 = vmatpush1.msra.mxu0 %v1937
    %3095 = vmatprep.subr.mxu0 %v1941
    %3096 = vmatpush1.msra.mxu0 %v1940
    %3097 = vmatprep.subr.mxu0 %v1944
    %3098 = vmatpush1.msra.mxu0 %v1943
    %3099 = vmatprep.subr.mxu0 %v1947
    %3100 = vmatpush1.msra.mxu0 %v1946
    %3101 = vmatprep.subr.mxu0 %v1950
    %3102 = vmatpush1.msra.mxu0 %v1949
    %3103 = vmatprep.subr.mxu0 %v1953
    %3104 = vmatpush1.msra.mxu0 %v1952
    %3105 = vmatprep.subr.mxu0 %v1956
    %3106 = vmatpush1.msra.mxu0 %v1955
    %3107 = vmatprep.subr.mxu0 %v1959
    %3108 = vmatpush1.msra.mxu0 %v1958
    %3109 = vmatprep.subr.mxu0 %v1962
    %3110 = vmatpush1.msra.mxu0 %v1961
    %3111 = vmatprep.subr.mxu0 %v1965
    %3112 = vmatpush1.msra.mxu0 %v1964
    %3113 = vmatprep.subr.mxu0 0.0
    %3114 = vmatpush1.msra.mxu0 0.0
    %3115 = vmatprep.subr.mxu0 0.0
    %3116 = vmatpush1.msra.mxu0 0.0
    %3117 = vmatprep.subr.mxu0 0.0
    %3118 = vmatpush1.msra.mxu0 0.0
    %3119 = vmatprep.subr.mxu0 0.0
    %3120 = vmatpush1.msra.mxu0 0.0
    %3121 = vmatprep.subr.mxu0 0.0
    %3122 = vmatpush1.msra.mxu0 0.0
    %3123 = vmatprep.subr.mxu0 0.0
    %3124 = vmatpush1.msra.mxu0 0.0
    %3125 = vmatprep.subr.mxu0 0.0
    %3126 = vmatpush1.msra.mxu0 0.0
    %3127 = vmatprep.subr.mxu0 0.0
    %3128 = vmatpush1.msra.mxu0 0.0
    %3129 = vmatprep.subr.mxu0 0.0
    %3130 = vmatpush1.msra.mxu0 0.0
    %3131 = vmatprep.subr.mxu0 0.0
    %3132 = vmatpush1.msra.mxu0 0.0
    %3133 = vmatprep.subr.mxu0 0.0
    %3134 = vmatpush1.msra.mxu0 0.0
    %3135 = vmatprep.subr.mxu0 0.0
    %3136 = vmatpush1.msra.mxu0 0.0
    %3137 = vmatprep.subr.mxu0 0.0
    %3138 = vmatpush1.msra.mxu0 0.0
    %3139 = vmatprep.subr.mxu0 0.0
    %3140 = vmatpush1.msra.mxu0 0.0
    %3141 = vmatprep.subr.mxu0 0.0
    %3142 = vmatpush1.msra.mxu0 0.0
    %3143 = vmatprep.subr.mxu0 0.0
    %3144 = vmatpush1.msra.mxu0 0.0
    %3145 = vmatprep.mubr.f32.mxu0 0.0
    %3146 = vmatmul.mubr.f32.gmra.mrb[0].mxu0 %v3076
    %v3147 = vpop.f32.mrb[0].mxu0
    %v3148 = vadd.f32 0.0, %v3147
    %v3149 = vpop.f32.mrb[0].mxu0
    %v3150 = vadd.f32 0.0, %v3149
    %3151 = vdwg.mxu0
    %3152 = vmatprep.subr.mxu0 0.0
    %3153 = vmatpush1.msra.mxu0 %v1921
    %3154 = vmatprep.subr.mxu0 0.0
    %3155 = vmatpush1.msra.mxu0 %v1924
    %3156 = vmatprep.subr.mxu0 0.0
    %3157 = vmatpush1.msra.mxu0 %v1927
    %3158 = vmatprep.subr.mxu0 0.0
    %3159 = vmatpush1.msra.mxu0 %v1930
    %3160 = vmatprep.subr.mxu0 0.0
    %3161 = vmatpush1.msra.mxu0 %v1933
    %3162 = vmatprep.subr.mxu0 0.0
    %3163 = vmatpush1.msra.mxu0 %v1936
    %3164 = vmatprep.subr.mxu0 0.0
    %3165 = vmatpush1.msra.mxu0 %v1939
    %3166 = vmatprep.subr.mxu0 0.0
    %3167 = vmatpush1.msra.mxu0 %v1942
    %3168 = vmatprep.subr.mxu0 0.0
    %3169 = vmatpush1.msra.mxu0 %v1945
    %3170 = vmatprep.subr.mxu0 0.0
    %3171 = vmatpush1.msra.mxu0 %v1948
    %3172 = vmatprep.subr.mxu0 0.0
    %3173 = vmatpush1.msra.mxu0 %v1951
    %3174 = vmatprep.subr.mxu0 0.0
    %3175 = vmatpush1.msra.mxu0 %v1954
    %3176 = vmatprep.subr.mxu0 0.0
    %3177 = vmatpush1.msra.mxu0 %v1957
    %3178 = vmatprep.subr.mxu0 0.0
    %3179 = vmatpush1.msra.mxu0 %v1960
    %3180 = vmatprep.subr.mxu0 0.0
    %3181 = vmatpush1.msra.mxu0 %v1963
    %3182 = vmatprep.subr.mxu0 0.0
    %3183 = vmatpush1.msra.mxu0 %v1966
    %3184 = vmatprep.subr.mxu0 0.0
    %3185 = vmatpush1.msra.mxu0 0.0
    %3186 = vmatprep.subr.mxu0 0.0
    %3187 = vmatpush1.msra.mxu0 0.0
    %3188 = vmatprep.subr.mxu0 0.0
    %3189 = vmatpush1.msra.mxu0 0.0
    %3190 = vmatprep.subr.mxu0 0.0
    %3191 = vmatpush1.msra.mxu0 0.0
    %3192 = vmatprep.subr.mxu0 0.0
    %3193 = vmatpush1.msra.mxu0 0.0
    %3194 = vmatprep.subr.mxu0 0.0
    %3195 = vmatpush1.msra.mxu0 0.0
    %3196 = vmatprep.subr.mxu0 0.0
    %3197 = vmatpush1.msra.mxu0 0.0
    %3198 = vmatprep.subr.mxu0 0.0
    %3199 = vmatpush1.msra.mxu0 0.0
    %3200 = vmatprep.subr.mxu0 0.0
    %3201 = vmatpush1.msra.mxu0 0.0
    %3202 = vmatprep.subr.mxu0 0.0
    %3203 = vmatpush1.msra.mxu0 0.0
    %3204 = vmatprep.subr.mxu0 0.0
    %3205 = vmatpush1.msra.mxu0 0.0
    %3206 = vmatprep.subr.mxu0 0.0
    %3207 = vmatpush1.msra.mxu0 0.0
    %3208 = vmatprep.subr.mxu0 0.0
    %3209 = vmatpush1.msra.mxu0 0.0
    %3210 = vmatprep.subr.mxu0 0.0
    %3211 = vmatpush1.msra.mxu0 0.0
    %3212 = vmatprep.subr.mxu0 0.0
    %3213 = vmatpush1.msra.mxu0 0.0
    %3214 = vmatprep.subr.mxu0 0.0
    %3215 = vmatpush1.msra.mxu0 0.0
    %3216 = vmatprep.mubr.f32.mxu0 0.0
    %3217 = vmatmul.mubr.f32.gmra.mrb[0].mxu0 %v3076
    %v3218 = vpop.f32.mrb[0].mxu0
    %v3219 = vadd.f32 0.0, %v3218
    %v3220 = vpop.f32.mrb[0].mxu0
    %3221 = vdwg.mxu0
    %v3222 = vadd.f32 %v3078, %v3148
    %v3223 = vxor.u32 %v3222, 2147483648
    %v3224 = vmul.f32 %v3223, 1.442695
    %v3225 = vpow.pop %v3224
    %v3226 = vadd.f32 %v3225, 1.0
    %v3227 = vrcp.pop %v3226
    %v3228 = vmul.f32 1.0, %v3227
    %v3229 = vadd.f32 %v3079, %v3150
    %v3230 = vxor.u32 %v3229, 2147483648
    %v3231 = vmul.f32 %v3230, 1.442695
    %v3232 = vpow.pop %v3231
    %v3233 = vadd.f32 %v3232, 1.0
    %v3234 = vrcp.pop %v3233
    %v3235 = vmul.f32 1.0, %v3234
    %v3236 = vadd.f32 %v3219, %v2239
    %v3237 = vmul.f32 %v3228, %v3236
    %v3238 = vadd.f32 %v3080, %v3237
    %v3239 = vtanh.pop %v3238
    %v3240 = vsub.f32 1.0, %v3235
    %v3241 = vmul.f32 %v3240, %v3239
    %v3242 = vmul.f32 %v3235, %v3076
    %v3243 = vadd.f32 %v3241, %v3242
    %3244 = vst [vmem:[%s1530] sm:$0xff] %v3243
    %v3245 = vld [vmem:[%s1532] sm:$0xff]
    %v3246 = vld [vmem:[%s1532 + $0x8] sm:$0xff]
    %v3247 = vld [vmem:[%s1532 + $0x10] sm:$0xff]
    %3248 = vmatprep.subr.mxu0 %v1920
    %3249 = vmatpush1.msra.mxu0 %v1919
    %3250 = vmatprep.subr.mxu0 %v1923
    %3251 = vmatpush1.msra.mxu0 %v1922
    %3252 = vmatprep.subr.mxu0 %v1926
    %3253 = vmatpush1.msra.mxu0 %v1925
    %3254 = vmatprep.subr.mxu0 %v1929
    %3255 = vmatpush1.msra.mxu0 %v1928
    %3256 = vmatprep.subr.mxu0 %v1932
    %3257 = vmatpush1.msra.mxu0 %v1931
    %3258 = vmatprep.subr.mxu0 %v1935
    %3259 = vmatpush1.msra.mxu0 %v1934
    %3260 = vmatprep.subr.mxu0 %v1938
    %3261 = vmatpush1.msra.mxu0 %v1937
    %3262 = vmatprep.subr.mxu0 %v1941
    %3263 = vmatpush1.msra.mxu0 %v1940
    %3264 = vmatprep.subr.mxu0 %v1944
    %3265 = vmatpush1.msra.mxu0 %v1943
    %3266 = vmatprep.subr.mxu0 %v1947
    %3267 = vmatpush1.msra.mxu0 %v1946
    %3268 = vmatprep.subr.mxu0 %v1950
    %3269 = vmatpush1.msra.mxu0 %v1949
    %3270 = vmatprep.subr.mxu0 %v1953
    %3271 = vmatpush1.msra.mxu0 %v1952
    %3272 = vmatprep.subr.mxu0 %v1956
    %3273 = vmatpush1.msra.mxu0 %v1955
    %3274 = vmatprep.subr.mxu0 %v1959
    %3275 = vmatpush1.msra.mxu0 %v1958
    %3276 = vmatprep.subr.mxu0 %v1962
    %3277 = vmatpush1.msra.mxu0 %v1961
    %3278 = vmatprep.subr.mxu0 %v1965
    %3279 = vmatpush1.msra.mxu0 %v1964
    %3280 = vmatprep.subr.mxu0 0.0
    %3281 = vmatpush1.msra.mxu0 0.0
    %3282 = vmatprep.subr.mxu0 0.0
    %3283 = vmatpush1.msra.mxu0 0.0
    %3284 = vmatprep.subr.mxu0 0.0
    %3285 = vmatpush1.msra.mxu0 0.0
    %3286 = vmatprep.subr.mxu0 0.0
    %3287 = vmatpush1.msra.mxu0 0.0
    %3288 = vmatprep.subr.mxu0 0.0
    %3289 = vmatpush1.msra.mxu0 0.0
    %3290 = vmatprep.subr.mxu0 0.0
    %3291 = vmatpush1.msra.mxu0 0.0
    %3292 = vmatprep.subr.mxu0 0.0
    %3293 = vmatpush1.msra.mxu0 0.0
    %3294 = vmatprep.subr.mxu0 0.0
    %3295 = vmatpush1.msra.mxu0 0.0
    %3296 = vmatprep.subr.mxu0 0.0
    %3297 = vmatpush1.msra.mxu0 0.0
    %3298 = vmatprep.subr.mxu0 0.0
    %3299 = vmatpush1.msra.mxu0 0.0
    %3300 = vmatprep.subr.mxu0 0.0
    %3301 = vmatpush1.msra.mxu0 0.0
    %3302 = vmatprep.subr.mxu0 0.0
    %3303 = vmatpush1.msra.mxu0 0.0
    %3304 = vmatprep.subr.mxu0 0.0
    %3305 = vmatpush1.msra.mxu0 0.0
    %3306 = vmatprep.subr.mxu0 0.0
    %3307 = vmatpush1.msra.mxu0 0.0
    %3308 = vmatprep.subr.mxu0 0.0
    %3309 = vmatpush1.msra.mxu0 0.0
    %3310 = vmatprep.subr.mxu0 0.0
    %3311 = vmatpush1.msra.mxu0 0.0
    %3312 = vmatprep.mubr.f32.mxu0 0.0
    %3313 = vmatmul.mubr.f32.gmra.mrb[0].mxu0 %v3243
    %v3314 = vpop.f32.mrb[0].mxu0
    %v3315 = vadd.f32 0.0, %v3314
    %v3316 = vpop.f32.mrb[0].mxu0
    %v3317 = vadd.f32 0.0, %v3316
    %3318 = vdwg.mxu0
    %3319 = vmatprep.subr.mxu0 0.0
    %3320 = vmatpush1.msra.mxu0 %v1921
    %3321 = vmatprep.subr.mxu0 0.0
    %3322 = vmatpush1.msra.mxu0 %v1924
    %3323 = vmatprep.subr.mxu0 0.0
    %3324 = vmatpush1.msra.mxu0 %v1927
    %3325 = vmatprep.subr.mxu0 0.0
    %3326 = vmatpush1.msra.mxu0 %v1930
    %3327 = vmatprep.subr.mxu0 0.0
    %3328 = vmatpush1.msra.mxu0 %v1933
    %3329 = vmatprep.subr.mxu0 0.0
    %3330 = vmatpush1.msra.mxu0 %v1936
    %3331 = vmatprep.subr.mxu0 0.0
    %3332 = vmatpush1.msra.mxu0 %v1939
    %3333 = vmatprep.subr.mxu0 0.0
    %3334 = vmatpush1.msra.mxu0 %v1942
    %3335 = vmatprep.subr.mxu0 0.0
    %3336 = vmatpush1.msra.mxu0 %v1945
    %3337 = vmatprep.subr.mxu0 0.0
    %3338 = vmatpush1.msra.mxu0 %v1948
    %3339 = vmatprep.subr.mxu0 0.0
    %3340 = vmatpush1.msra.mxu0 %v1951
    %3341 = vmatprep.subr.mxu0 0.0
    %3342 = vmatpush1.msra.mxu0 %v1954
    %3343 = vmatprep.subr.mxu0 0.0
    %3344 = vmatpush1.msra.mxu0 %v1957
    %3345 = vmatprep.subr.mxu0 0.0
    %3346 = vmatpush1.msra.mxu0 %v1960
    %3347 = vmatprep.subr.mxu0 0.0
    %3348 = vmatpush1.msra.mxu0 %v1963
    %3349 = vmatprep.subr.mxu0 0.0
    %3350 = vmatpush1.msra.mxu0 %v1966
    %3351 = vmatprep.subr.mxu0 0.0
    %3352 = vmatpush1.msra.mxu0 0.0
    %3353 = vmatprep.subr.mxu0 0.0
    %3354 = vmatpush1.msra.mxu0 0.0
    %3355 = vmatprep.subr.mxu0 0.0
    %3356 = vmatpush1.msra.mxu0 0.0
    %3357 = vmatprep.subr.mxu0 0.0
    %3358 = vmatpush1.msra.mxu0 0.0
    %3359 = vmatprep.subr.mxu0 0.0
    %3360 = vmatpush1.msra.mxu0 0.0
    %3361 = vmatprep.subr.mxu0 0.0
    %3362 = vmatpush1.msra.mxu0 0.0
    %3363 = vmatprep.subr.mxu0 0.0
    %3364 = vmatpush1.msra.mxu0 0.0
    %3365 = vmatprep.subr.mxu0 0.0
    %3366 = vmatpush1.msra.mxu0 0.0
    %3367 = vmatprep.subr.mxu0 0.0
    %3368 = vmatpush1.msra.mxu0 0.0
    %3369 = vmatprep.subr.mxu0 0.0
    %3370 = vmatpush1.msra.mxu0 0.0
    %3371 = vmatprep.subr.mxu0 0.0
    %3372 = vmatpush1.msra.mxu0 0.0
    %3373 = vmatprep.subr.mxu0 0.0
    %3374 = vmatpush1.msra.mxu0 0.0
    %3375 = vmatprep.subr.mxu0 0.0
    %3376 = vmatpush1.msra.mxu0 0.0
    %3377 = vmatprep.subr.mxu0 0.0
    %3378 = vmatpush1.msra.mxu0 0.0
    %3379 = vmatprep.subr.mxu0 0.0
    %3380 = vmatpush1.msra.mxu0 0.0
    %3381 = vmatprep.subr.mxu0 0.0
    %3382 = vmatpush1.msra.mxu0 0.0
    %3383 = vmatprep.mubr.f32.mxu0 0.0
    %3384 = vmatmul.mubr.f32.gmra.mrb[0].mxu0 %v3243
    %v3385 = vpop.f32.mrb[0].mxu0
    %v3386 = vadd.f32 0.0, %v3385
    %v3387 = vpop.f32.mrb[0].mxu0
    %3388 = vdwg.mxu0
    %v3389 = vadd.f32 %v3245, %v3315
    %v3390 = vxor.u32 %v3389, 2147483648
    %v3391 = vmul.f32 %v3390, 1.442695
    %v3392 = vpow.pop %v3391
    %v3393 = vadd.f32 %v3392, 1.0
    %v3394 = vrcp.pop %v3393
    %v3395 = vmul.f32 1.0, %v3394
    %v3396 = vadd.f32 %v3246, %v3317
    %v3397 = vxor.u32 %v3396, 2147483648
    %v3398 = vmul.f32 %v3397, 1.442695
    %v3399 = vpow.pop %v3398
    %v3400 = vadd.f32 %v3399, 1.0
    %v3401 = vrcp.pop %v3400
    %v3402 = vmul.f32 1.0, %v3401
    %v3403 = vadd.f32 %v3386, %v2239
    %v3404 = vmul.f32 %v3395, %v3403
    %v3405 = vadd.f32 %v3247, %v3404
    %v3406 = vtanh.pop %v3405
    %v3407 = vsub.f32 1.0, %v3402
    %v3408 = vmul.f32 %v3407, %v3406
    %v3409 = vmul.f32 %v3402, %v3243
    %v3410 = vadd.f32 %v3408, %v3409
    %3411 = vst [vmem:[%s1699] sm:$0xff] %v3410
    %v3412 = vld [vmem:[%s1701] sm:$0xff]
    %v3413 = vld [vmem:[%s1701 + $0x8] sm:$0xff]
    %v3414 = vld [vmem:[%s1701 + $0x10] sm:$0xff]
    %3415 = vmatprep.subr.mxu0 %v1920
    %3416 = vmatpush1.msra.mxu0 %v1919
    %3417 = vmatprep.subr.mxu0 %v1923
    %3418 = vmatpush1.msra.mxu0 %v1922
    %3419 = vmatprep.subr.mxu0 %v1926
    %3420 = vmatpush1.msra.mxu0 %v1925
    %3421 = vmatprep.subr.mxu0 %v1929
    %3422 = vmatpush1.msra.mxu0 %v1928
    %3423 = vmatprep.subr.mxu0 %v1932
    %3424 = vmatpush1.msra.mxu0 %v1931
    %3425 = vmatprep.subr.mxu0 %v1935
    %3426 = vmatpush1.msra.mxu0 %v1934
    %3427 = vmatprep.subr.mxu0 %v1938
    %3428 = vmatpush1.msra.mxu0 %v1937
    %3429 = vmatprep.subr.mxu0 %v1941
    %3430 = vmatpush1.msra.mxu0 %v1940
    %3431 = vmatprep.subr.mxu0 %v1944
    %3432 = vmatpush1.msra.mxu0 %v1943
    %3433 = vmatprep.subr.mxu0 %v1947
    %3434 = vmatpush1.msra.mxu0 %v1946
    %3435 = vmatprep.subr.mxu0 %v1950
    %3436 = vmatpush1.msra.mxu0 %v1949
    %3437 = vmatprep.subr.mxu0 %v1953
    %3438 = vmatpush1.msra.mxu0 %v1952
    %3439 = vmatprep.subr.mxu0 %v1956
    %3440 = vmatpush1.msra.mxu0 %v1955
    %3441 = vmatprep.subr.mxu0 %v1959
    %3442 = vmatpush1.msra.mxu0 %v1958
    %3443 = vmatprep.subr.mxu0 %v1962
    %3444 = vmatpush1.msra.mxu0 %v1961
    %3445 = vmatprep.subr.mxu0 %v1965
    %3446 = vmatpush1.msra.mxu0 %v1964
    %3447 = vmatprep.subr.mxu0 0.0
    %3448 = vmatpush1.msra.mxu0 0.0
    %3449 = vmatprep.subr.mxu0 0.0
    %3450 = vmatpush1.msra.mxu0 0.0
    %3451 = vmatprep.subr.mxu0 0.0
    %3452 = vmatpush1.msra.mxu0 0.0
    %3453 = vmatprep.subr.mxu0 0.0
    %3454 = vmatpush1.msra.mxu0 0.0
    %3455 = vmatprep.subr.mxu0 0.0
    %3456 = vmatpush1.msra.mxu0 0.0
    %3457 = vmatprep.subr.mxu0 0.0
    %3458 = vmatpush1.msra.mxu0 0.0
    %3459 = vmatprep.subr.mxu0 0.0
    %3460 = vmatpush1.msra.mxu0 0.0
    %3461 = vmatprep.subr.mxu0 0.0
    %3462 = vmatpush1.msra.mxu0 0.0
    %3463 = vmatprep.subr.mxu0 0.0
    %3464 = vmatpush1.msra.mxu0 0.0
    %3465 = vmatprep.subr.mxu0 0.0
    %3466 = vmatpush1.msra.mxu0 0.0
    %3467 = vmatprep.subr.mxu0 0.0
    %3468 = vmatpush1.msra.mxu0 0.0
    %3469 = vmatprep.subr.mxu0 0.0
    %3470 = vmatpush1.msra.mxu0 0.0
    %3471 = vmatprep.subr.mxu0 0.0
    %3472 = vmatpush1.msra.mxu0 0.0
    %3473 = vmatprep.subr.mxu0 0.0
    %3474 = vmatpush1.msra.mxu0 0.0
    %3475 = vmatprep.subr.mxu0 0.0
    %3476 = vmatpush1.msra.mxu0 0.0
    %3477 = vmatprep.subr.mxu0 0.0
    %3478 = vmatpush1.msra.mxu0 0.0
    %3479 = vmatprep.mubr.f32.mxu0 0.0
    %3480 = vmatmul.mubr.f32.gmra.mrb[0].mxu0 %v3410
    %v3481 = vpop.f32.mrb[0].mxu0
    %v3482 = vadd.f32 0.0, %v3481
    %v3483 = vpop.f32.mrb[0].mxu0
    %v3484 = vadd.f32 0.0, %v3483
    %3485 = vdwg.mxu0
    %3486 = vmatprep.subr.mxu0 0.0
    %3487 = vmatpush1.msra.mxu0 %v1921
    %3488 = vmatprep.subr.mxu0 0.0
    %3489 = vmatpush1.msra.mxu0 %v1924
    %3490 = vmatprep.subr.mxu0 0.0
    %3491 = vmatpush1.msra.mxu0 %v1927
    %3492 = vmatprep.subr.mxu0 0.0
    %3493 = vmatpush1.msra.mxu0 %v1930
    %3494 = vmatprep.subr.mxu0 0.0
    %3495 = vmatpush1.msra.mxu0 %v1933
    %3496 = vmatprep.subr.mxu0 0.0
    %3497 = vmatpush1.msra.mxu0 %v1936
    %3498 = vmatprep.subr.mxu0 0.0
    %3499 = vmatpush1.msra.mxu0 %v1939
    %3500 = vmatprep.subr.mxu0 0.0
    %3501 = vmatpush1.msra.mxu0 %v1942
    %3502 = vmatprep.subr.mxu0 0.0
    %3503 = vmatpush1.msra.mxu0 %v1945
    %3504 = vmatprep.subr.mxu0 0.0
    %3505 = vmatpush1.msra.mxu0 %v1948
    %3506 = vmatprep.subr.mxu0 0.0
    %3507 = vmatpush1.msra.mxu0 %v1951
    %3508 = vmatprep.subr.mxu0 0.0
    %3509 = vmatpush1.msra.mxu0 %v1954
    %3510 = vmatprep.subr.mxu0 0.0
    %3511 = vmatpush1.msra.mxu0 %v1957
    %3512 = vmatprep.subr.mxu0 0.0
    %3513 = vmatpush1.msra.mxu0 %v1960
    %3514 = vmatprep.subr.mxu0 0.0
    %3515 = vmatpush1.msra.mxu0 %v1963
    %3516 = vmatprep.subr.mxu0 0.0
    %3517 = vmatpush1.msra.mxu0 %v1966
    %3518 = vmatprep.subr.mxu0 0.0
    %3519 = vmatpush1.msra.mxu0 0.0
    %3520 = vmatprep.subr.mxu0 0.0
    %3521 = vmatpush1.msra.mxu0 0.0
    %3522 = vmatprep.subr.mxu0 0.0
    %3523 = vmatpush1.msra.mxu0 0.0
    %3524 = vmatprep.subr.mxu0 0.0
    %3525 = vmatpush1.msra.mxu0 0.0
    %3526 = vmatprep.subr.mxu0 0.0
    %3527 = vmatpush1.msra.mxu0 0.0
    %3528 = vmatprep.subr.mxu0 0.0
    %3529 = vmatpush1.msra.mxu0 0.0
    %3530 = vmatprep.subr.mxu0 0.0
    %3531 = vmatpush1.msra.mxu0 0.0
    %3532 = vmatprep.subr.mxu0 0.0
    %3533 = vmatpush1.msra.mxu0 0.0
    %3534 = vmatprep.subr.mxu0 0.0
    %3535 = vmatpush1.msra.mxu0 0.0
    %3536 = vmatprep.subr.mxu0 0.0
    %3537 = vmatpush1.msra.mxu0 0.0
    %3538 = vmatprep.subr.mxu0 0.0
    %3539 = vmatpush1.msra.mxu0 0.0
    %3540 = vmatprep.subr.mxu0 0.0
    %3541 = vmatpush1.msra.mxu0 0.0
    %3542 = vmatprep.subr.mxu0 0.0
    %3543 = vmatpush1.msra.mxu0 0.0
    %3544 = vmatprep.subr.mxu0 0.0
    %3545 = vmatpush1.msra.mxu0 0.0
    %3546 = vmatprep.subr.mxu0 0.0
    %3547 = vmatpush1.msra.mxu0 0.0
    %3548 = vmatprep.subr.mxu0 0.0
    %3549 = vmatpush1.msra.mxu0 0.0
    %3550 = vmatprep.mubr.f32.mxu0 0.0
    %3551 = vmatmul.mubr.f32.gmra.mrb[0].mxu0 %v3410
    %v3552 = vpop.f32.mrb[0].mxu0
    %v3553 = vadd.f32 0.0, %v3552
    %v3554 = vpop.f32.mrb[0].mxu0
    %3555 = vdwg.mxu0
    %v3556 = vadd.f32 %v3412, %v3482
    %v3557 = vxor.u32 %v3556, 2147483648
    %v3558 = vmul.f32 %v3557, 1.442695
    %v3559 = vpow.pop %v3558
    %v3560 = vadd.f32 %v3559, 1.0
    %v3561 = vrcp.pop %v3560
    %v3562 = vmul.f32 1.0, %v3561
    %v3563 = vadd.f32 %v3413, %v3484
    %v3564 = vxor.u32 %v3563, 2147483648
    %v3565 = vmul.f32 %v3564, 1.442695
    %v3566 = vpow.pop %v3565
    %v3567 = vadd.f32 %v3566, 1.0
    %v3568 = vrcp.pop %v3567
    %v3569 = vmul.f32 1.0, %v3568
    %v3570 = vadd.f32 %v3553, %v2239
    %v3571 = vmul.f32 %v3562, %v3570
    %v3572 = vadd.f32 %v3414, %v3571
    %v3573 = vtanh.pop %v3572
    %v3574 = vsub.f32 1.0, %v3569
    %v3575 = vmul.f32 %v3574, %v3573
    %v3576 = vmul.f32 %v3569, %v3410
    %v3577 = vadd.f32 %v3575, %v3576
    %3578 = vst [vmem:[%s1868] sm:$0xff] %v3577
    %s3579 = scalar_lea.vmem [#allocation18], 8
    %3580 = vst [vmem:[%s3579] sm:$0xff] %v3577
    %v3581 = vld [vmem:[%s10] sm:$0xff]
    %v3582 = vld [vmem:[%s10 + $0x8] sm:$0xff]
    %v3583 = vld [vmem:[%s10 + $0x10] sm:$0xff]
    %v3584 = vld [vmem:[%s10 + $0x18] sm:$0xff]
    %v3585 = vld [vmem:[%s10 + $0x20] sm:$0xff]
    %v3586 = vld [vmem:[%s10 + $0x28] sm:$0xff]
    %v3587 = vld [vmem:[%s10 + $0x30] sm:$0xff]
    %v3588 = vld [vmem:[%s10 + $0x38] sm:$0xff]
    %v3589 = vld [vmem:[%s10 + $0x40] sm:$0xff]
    %v3590 = vld [vmem:[%s10 + $0x48] sm:$0xff]
    %v3591 = vld [vmem:[%s10 + $0x50] sm:$0xff]
    %v3592 = vld [vmem:[%s10 + $0x58] sm:$0xff]
    %v3593 = vld [vmem:[%s10 + $0x60] sm:$0xff]
    %v3594 = vld [vmem:[%s10 + $0x68] sm:$0xff]
    %v3595 = vld [vmem:[%s10 + $0x70] sm:$0xff]
    %v3596 = vld [vmem:[%s10 + $0x78] sm:$0xff]
    %v3597 = vld [vmem:[#allocation15] sm:$0xff]
    %v3598 = vld [vmem:[#allocation15 + $0x8] sm:$0xff]
    %v3599 = vld [vmem:[#allocation15 + $0x10] sm:$0xff]
    %v3600 = vld [vmem:[#allocation16] sm:$0x1]
    %v3601 = vld [vmem:[%s1868] sm:$0xff]
    %s3602 = scalar_lea.vmem %s0, 56
    %v3603 = vld [vmem:[%s3602] sm:$0xff]
    %v3605 = vsel %vm246, %v3603, 0
    %3607 = vmatprep.subr.mxu0 0.0
    %3608 = vmatpush1.msra.mxu0 %v3597
    %3609 = vmatprep.subr.mxu0 0.0
    %3610 = vmatpush1.msra.mxu0 %v3598
    %3611 = vmatprep.subr.mxu0 0.0
    %3612 = vmatpush1.msra.mxu0 %v3599
    %3613 = vmatprep.subr.mxu0 0.0
    %3614 = vmatpush1.msra.mxu0 0.0
    %3615 = vmatprep.subr.mxu0 0.0
    %3616 = vmatpush1.msra.mxu0 0.0
    %3617 = vmatprep.subr.mxu0 0.0
    %3618 = vmatpush1.msra.mxu0 0.0
    %3619 = vmatprep.subr.mxu0 0.0
    %3620 = vmatpush1.msra.mxu0 0.0
    %3621 = vmatprep.subr.mxu0 0.0
    %3622 = vmatpush1.msra.mxu0 0.0
    %3623 = vmatprep.subr.mxu0 0.0
    %3624 = vmatpush1.msra.mxu0 0.0
    %3625 = vmatprep.subr.mxu0 0.0
    %3626 = vmatpush1.msra.mxu0 0.0
    %3627 = vmatprep.subr.mxu0 0.0
    %3628 = vmatpush1.msra.mxu0 0.0
    %3629 = vmatprep.subr.mxu0 0.0
    %3630 = vmatpush1.msra.mxu0 0.0
    %3631 = vmatprep.subr.mxu0 0.0
    %3632 = vmatpush1.msra.mxu0 0.0
    %3633 = vmatprep.subr.mxu0 0.0
    %3634 = vmatpush1.msra.mxu0 0.0
    %3635 = vmatprep.subr.mxu0 0.0
    %3636 = vmatpush1.msra.mxu0 0.0
    %3637 = vmatprep.subr.mxu0 0.0
    %3638 = vmatpush1.msra.mxu0 0.0
    %3639 = vmatprep.subr.mxu0 0.0
    %3640 = vmatpush1.msra.mxu0 0.0
    %3641 = vmatprep.subr.mxu0 0.0
    %3642 = vmatpush1.msra.mxu0 0.0
    %3643 = vmatprep.subr.mxu0 0.0
    %3644 = vmatpush1.msra.mxu0 0.0
    %3645 = vmatprep.subr.mxu0 0.0
    %3646 = vmatpush1.msra.mxu0 0.0
    %3647 = vmatprep.subr.mxu0 0.0
    %3648 = vmatpush1.msra.mxu0 0.0
    %3649 = vmatprep.subr.mxu0 0.0
    %3650 = vmatpush1.msra.mxu0 0.0
    %3651 = vmatprep.subr.mxu0 0.0
    %3652 = vmatpush1.msra.mxu0 0.0
    %3653 = vmatprep.subr.mxu0 0.0
    %3654 = vmatpush1.msra.mxu0 0.0
    %3655 = vmatprep.subr.mxu0 0.0
    %3656 = vmatpush1.msra.mxu0 0.0
    %3657 = vmatprep.subr.mxu0 0.0
    %3658 = vmatpush1.msra.mxu0 0.0
    %3659 = vmatprep.subr.mxu0 0.0
    %3660 = vmatpush1.msra.mxu0 0.0
    %3661 = vmatprep.subr.mxu0 0.0
    %3662 = vmatpush1.msra.mxu0 0.0
    %3663 = vmatprep.subr.mxu0 0.0
    %3664 = vmatpush1.msra.mxu0 0.0
    %3665 = vmatprep.subr.mxu0 0.0
    %3666 = vmatpush1.msra.mxu0 0.0
    %3667 = vmatprep.subr.mxu0 0.0
    %3668 = vmatpush1.msra.mxu0 0.0
    %3669 = vmatprep.subr.mxu0 0.0
    %3670 = vmatpush1.msra.mxu0 0.0
    %3671 = vmatprep.mubr.f32.mxu0 0.0
    %3672 = vmatmul.mubr.f32.gmra.mrb[0].mxu0 %v3605
    %v3673 = vpop.f32.mrb[0].mxu0
    %v3674 = vadd.f32 0.0, %v3673
    %v3675 = vpop.f32.mrb[0].mxu0
    %3676 = vdwg.mxu0
    %3677 = vmatprep.subr.mxu0 0.0
    %3678 = vmatpush1.msra.mxu0 %v3581
    %3679 = vmatprep.subr.mxu0 0.0
    %3680 = vmatpush1.msra.mxu0 %v3582
    %3681 = vmatprep.subr.mxu0 0.0
    %3682 = vmatpush1.msra.mxu0 %v3583
    %3683 = vmatprep.subr.mxu0 0.0
    %3684 = vmatpush1.msra.mxu0 %v3584
    %3685 = vmatprep.subr.mxu0 0.0
    %3686 = vmatpush1.msra.mxu0 %v3585
    %3687 = vmatprep.subr.mxu0 0.0
    %3688 = vmatpush1.msra.mxu0 %v3586
    %3689 = vmatprep.subr.mxu0 0.0
    %3690 = vmatpush1.msra.mxu0 %v3587
    %3691 = vmatprep.subr.mxu0 0.0
    %3692 = vmatpush1.msra.mxu0 %v3588
    %3693 = vmatprep.subr.mxu0 0.0
    %3694 = vmatpush1.msra.mxu0 %v3589
    %3695 = vmatprep.subr.mxu0 0.0
    %3696 = vmatpush1.msra.mxu0 %v3590
    %3697 = vmatprep.subr.mxu0 0.0
    %3698 = vmatpush1.msra.mxu0 %v3591
    %3699 = vmatprep.subr.mxu0 0.0
    %3700 = vmatpush1.msra.mxu0 %v3592
    %3701 = vmatprep.subr.mxu0 0.0
    %3702 = vmatpush1.msra.mxu0 %v3593
    %3703 = vmatprep.subr.mxu0 0.0
    %3704 = vmatpush1.msra.mxu0 %v3594
    %3705 = vmatprep.subr.mxu0 0.0
    %3706 = vmatpush1.msra.mxu0 %v3595
    %3707 = vmatprep.subr.mxu0 0.0
    %3708 = vmatpush1.msra.mxu0 %v3596
    %3709 = vmatprep.subr.mxu0 0.0
    %3710 = vmatpush1.msra.mxu0 0.0
    %3711 = vmatprep.subr.mxu0 0.0
    %3712 = vmatpush1.msra.mxu0 0.0
    %3713 = vmatprep.subr.mxu0 0.0
    %3714 = vmatpush1.msra.mxu0 0.0
    %3715 = vmatprep.subr.mxu0 0.0
    %3716 = vmatpush1.msra.mxu0 0.0
    %3717 = vmatprep.subr.mxu0 0.0
    %3718 = vmatpush1.msra.mxu0 0.0
    %3719 = vmatprep.subr.mxu0 0.0
    %3720 = vmatpush1.msra.mxu0 0.0
    %3721 = vmatprep.subr.mxu0 0.0
    %3722 = vmatpush1.msra.mxu0 0.0
    %3723 = vmatprep.subr.mxu0 0.0
    %3724 = vmatpush1.msra.mxu0 0.0
    %3725 = vmatprep.subr.mxu0 0.0
    %3726 = vmatpush1.msra.mxu0 0.0
    %3727 = vmatprep.subr.mxu0 0.0
    %3728 = vmatpush1.msra.mxu0 0.0
    %3729 = vmatprep.subr.mxu0 0.0
    %3730 = vmatpush1.msra.mxu0 0.0
    %3731 = vmatprep.subr.mxu0 0.0
    %3732 = vmatpush1.msra.mxu0 0.0
    %3733 = vmatprep.subr.mxu0 0.0
    %3734 = vmatpush1.msra.mxu0 0.0
    %3735 = vmatprep.subr.mxu0 0.0
    %3736 = vmatpush1.msra.mxu0 0.0
    %3737 = vmatprep.subr.mxu0 0.0
    %3738 = vmatpush1.msra.mxu0 0.0
    %3739 = vmatprep.subr.mxu0 0.0
    %3740 = vmatpush1.msra.mxu0 0.0
    %3741 = vmatprep.mubr.f32.mxu0 0.0
    %3742 = vmatmul.mubr.f32.gmra.mrb[0].mxu0 %v3601
    %v3743 = vpop.f32.mrb[0].mxu0
    %v3744 = vadd.f32 %v3674, %v3743
    %v3745 = vpop.f32.mrb[0].mxu0
    %3746 = vdwg.mxu0
    %v3748 = vlaneseq
    %v3749 = vshrl.u32 %v3748, 7
    %v3750 = vsub.s32 0, %v3749
    %v3751 = vrot.slane %v3600, %v3750
    %v3753 = vadd.f32 %v3744, %v3751
    %v3754 = vmul.f32 %v3753, 0.5
    %v3755 = vmul.f32 %v3753, 0.044715
    %v3756 = vmul.f32 %v3755, %v3753
    %v3757 = vmul.f32 %v3756, %v3753
    %v3758 = vadd.f32 %v3753, %v3757
    %v3759 = vmul.f32 %v3758, 0.7978846
    %v3760 = vtanh.pop %v3759
    %v3761 = vadd.f32 %v3760, 1.0
    %v3762 = vmul.f32 %v3754, %v3761
    %v3763 = vld [vmem:[%s13] sm:$0xff]
    %v3764 = vld [vmem:[%s13 + $0x8] sm:$0xff]
    %v3765 = vld [vmem:[%s13 + $0x10] sm:$0xff]
    %v3766 = vld [vmem:[%s13 + $0x18] sm:$0xff]
    %v3767 = vld [vmem:[%s13 + $0x20] sm:$0xff]
    %v3768 = vld [vmem:[%s13 + $0x28] sm:$0xff]
    %v3769 = vld [vmem:[%s13 + $0x30] sm:$0xff]
    %v3770 = vld [vmem:[%s13 + $0x38] sm:$0xff]
    %v3771 = vld [vmem:[%s14] sm:$0x1]
    %v3773 = vlaneseq
    %v3774 = vshrl.u32 %v3773, 7
    %v3775 = vsub.s32 0, %v3774
    %v3776 = vrot.slane %v3771, %v3775
    %vm3778 = vcmask 523264
    %v3780 = vsel %vm3778, %v3762, 0
    %3782 = vmatprep.subr.mxu0 0.0
    %3783 = vmatpush1.msra.mxu0 %v3763
    %3784 = vmatprep.subr.mxu0 0.0
    %3785 = vmatpush1.msra.mxu0 %v3764
    %3786 = vmatprep.subr.mxu0 0.0
    %3787 = vmatpush1.msra.mxu0 %v3765
    %3788 = vmatprep.subr.mxu0 0.0
    %3789 = vmatpush1.msra.mxu0 %v3766
    %3790 = vmatprep.subr.mxu0 0.0
    %3791 = vmatpush1.msra.mxu0 %v3767
    %3792 = vmatprep.subr.mxu0 0.0
    %3793 = vmatpush1.msra.mxu0 %v3768
    %3794 = vmatprep.subr.mxu0 0.0
    %3795 = vmatpush1.msra.mxu0 %v3769
    %3796 = vmatprep.subr.mxu0 0.0
    %3797 = vmatpush1.msra.mxu0 %v3770
    %3798 = vmatprep.subr.mxu0 0.0
    %3799 = vmatpush1.msra.mxu0 0.0
    %3800 = vmatprep.subr.mxu0 0.0
    %3801 = vmatpush1.msra.mxu0 0.0
    %3802 = vmatprep.subr.mxu0 0.0
    %3803 = vmatpush1.msra.mxu0 0.0
    %3804 = vmatprep.subr.mxu0 0.0
    %3805 = vmatpush1.msra.mxu0 0.0
    %3806 = vmatprep.subr.mxu0 0.0
    %3807 = vmatpush1.msra.mxu0 0.0
    %3808 = vmatprep.subr.mxu0 0.0
    %3809 = vmatpush1.msra.mxu0 0.0
    %3810 = vmatprep.subr.mxu0 0.0
    %3811 = vmatpush1.msra.mxu0 0.0
    %3812 = vmatprep.subr.mxu0 0.0
    %3813 = vmatpush1.msra.mxu0 0.0
    %3814 = vmatprep.subr.mxu0 0.0
    %3815 = vmatpush1.msra.mxu0 0.0
    %3816 = vmatprep.subr.mxu0 0.0
    %3817 = vmatpush1.msra.mxu0 0.0
    %3818 = vmatprep.subr.mxu0 0.0
    %3819 = vmatpush1.msra.mxu0 0.0
    %3820 = vmatprep.subr.mxu0 0.0
    %3821 = vmatpush1.msra.mxu0 0.0
    %3822 = vmatprep.subr.mxu0 0.0
    %3823 = vmatpush1.msra.mxu0 0.0
    %3824 = vmatprep.subr.mxu0 0.0
    %3825 = vmatpush1.msra.mxu0 0.0
    %3826 = vmatprep.subr.mxu0 0.0
    %3827 = vmatpush1.msra.mxu0 0.0
    %3828 = vmatprep.subr.mxu0 0.0
    %3829 = vmatpush1.msra.mxu0 0.0
    %3830 = vmatprep.subr.mxu0 0.0
    %3831 = vmatpush1.msra.mxu0 0.0
    %3832 = vmatprep.subr.mxu0 0.0
    %3833 = vmatpush1.msra.mxu0 0.0
    %3834 = vmatprep.subr.mxu0 0.0
    %3835 = vmatpush1.msra.mxu0 0.0
    %3836 = vmatprep.subr.mxu0 0.0
    %3837 = vmatpush1.msra.mxu0 0.0
    %3838 = vmatprep.subr.mxu0 0.0
    %3839 = vmatpush1.msra.mxu0 0.0
    %3840 = vmatprep.subr.mxu0 0.0
    %3841 = vmatpush1.msra.mxu0 0.0
    %3842 = vmatprep.subr.mxu0 0.0
    %3843 = vmatpush1.msra.mxu0 0.0
    %3844 = vmatprep.subr.mxu0 0.0
    %3845 = vmatpush1.msra.mxu0 0.0
    %3846 = vmatprep.mubr.f32.mxu0 0.0
    %3847 = vmatmul.mubr.f32.gmra.mrb[0].mxu0 %v3780
    %v3848 = vpop.f32.mrb[0].mxu0
    %v3849 = vadd.f32 %v3776, %v3848
    %v3850 = vpop.f32.mrb[0].mxu0
    %3851 = vdwg.mxu0
    %v3852 = vmul.f32 %v3849, 0.5
    %v3853 = vmul.f32 %v3849, 0.044715
    %v3854 = vmul.f32 %v3853, %v3849
    %v3855 = vmul.f32 %v3854, %v3849
    %v3856 = vadd.f32 %v3849, %v3855
    %v3857 = vmul.f32 %v3856, 0.7978846
    %v3858 = vtanh.pop %v3857
    %v3859 = vadd.f32 %v3858, 1.0
    %v3860 = vmul.f32 %v3852, %v3859
    %v3861 = vld [vmem:[%s15] sm:$0xff]
    %v3862 = vld [vmem:[%s15 + $0x8] sm:$0xff]
    %v3863 = vld [vmem:[%s15 + $0x10] sm:$0xff]
    %v3864 = vld [vmem:[%s15 + $0x18] sm:$0xff]
    %v3865 = vld [vmem:[%s15 + $0x20] sm:$0xff]
    %v3866 = vld [vmem:[%s15 + $0x28] sm:$0xff]
    %v3867 = vld [vmem:[%s15 + $0x30] sm:$0xff]
    %v3868 = vld [vmem:[%s15 + $0x38] sm:$0xff]
    %v3869 = vld [vmem:[%s15 + $0x40] sm:$0xff]
    %v3870 = vld [vmem:[%s15 + $0x48] sm:$0xff]
    %v3871 = vld [vmem:[%s15 + $0x50] sm:$0xff]
    %v3872 = vld [vmem:[%s15 + $0x58] sm:$0xff]
    %v3873 = vld [vmem:[%s16] sm:$0x7]
    %v3875 = vlaneseq
    %v3876 = vshrl.u32 %v3875, 7
    %v3877 = vsub.s32 0, %v3876
    %v3878 = vrot.slane %v3873, %v3877
    %v3879 = vlaneseq
    %v3880 = vshrl.u32 %v3879, 7
    %v3881 = vsub.s32 1, %v3880
    %v3882 = vrot.slane %v3873, %v3881
    %v3883 = vlaneseq
    %v3884 = vshrl.u32 %v3883, 7
    %v3885 = vsub.s32 2, %v3884
    %v3886 = vrot.slane %v3873, %v3885
    %vm3890 = vcmask 261120
    %v3892 = vsel %vm3890, %v3860, 0
    %3894 = vmatprep.subr.mxu0 %v3862
    %3895 = vmatpush1.msra.mxu0 %v3861
    %3896 = vmatprep.subr.mxu0 %v3865
    %3897 = vmatpush1.msra.mxu0 %v3864
    %3898 = vmatprep.subr.mxu0 %v3868
    %3899 = vmatpush1.msra.mxu0 %v3867
    %3900 = vmatprep.subr.mxu0 %v3871
    %3901 = vmatpush1.msra.mxu0 %v3870
    %3902 = vmatprep.subr.mxu0 0.0
    %3903 = vmatpush1.msra.mxu0 0.0
    %3904 = vmatprep.subr.mxu0 0.0
    %3905 = vmatpush1.msra.mxu0 0.0
    %3906 = vmatprep.subr.mxu0 0.0
    %3907 = vmatpush1.msra.mxu0 0.0
    %3908 = vmatprep.subr.mxu0 0.0
    %3909 = vmatpush1.msra.mxu0 0.0
    %3910 = vmatprep.subr.mxu0 0.0
    %3911 = vmatpush1.msra.mxu0 0.0
    %3912 = vmatprep.subr.mxu0 0.0
    %3913 = vmatpush1.msra.mxu0 0.0
    %3914 = vmatprep.subr.mxu0 0.0
    %3915 = vmatpush1.msra.mxu0 0.0
    %3916 = vmatprep.subr.mxu0 0.0
    %3917 = vmatpush1.msra.mxu0 0.0
    %3918 = vmatprep.subr.mxu0 0.0
    %3919 = vmatpush1.msra.mxu0 0.0
    %3920 = vmatprep.subr.mxu0 0.0
    %3921 = vmatpush1.msra.mxu0 0.0
    %3922 = vmatprep.subr.mxu0 0.0
    %3923 = vmatpush1.msra.mxu0 0.0
    %3924 = vmatprep.subr.mxu0 0.0
    %3925 = vmatpush1.msra.mxu0 0.0
    %3926 = vmatprep.subr.mxu0 0.0
    %3927 = vmatpush1.msra.mxu0 0.0
    %3928 = vmatprep.subr.mxu0 0.0
    %3929 = vmatpush1.msra.mxu0 0.0
    %3930 = vmatprep.subr.mxu0 0.0
    %3931 = vmatpush1.msra.mxu0 0.0
    %3932 = vmatprep.subr.mxu0 0.0
    %3933 = vmatpush1.msra.mxu0 0.0
    %3934 = vmatprep.subr.mxu0 0.0
    %3935 = vmatpush1.msra.mxu0 0.0
    %3936 = vmatprep.subr.mxu0 0.0
    %3937 = vmatpush1.msra.mxu0 0.0
    %3938 = vmatprep.subr.mxu0 0.0
    %3939 = vmatpush1.msra.mxu0 0.0
    %3940 = vmatprep.subr.mxu0 0.0
    %3941 = vmatpush1.msra.mxu0 0.0
    %3942 = vmatprep.subr.mxu0 0.0
    %3943 = vmatpush1.msra.mxu0 0.0
    %3944 = vmatprep.subr.mxu0 0.0
    %3945 = vmatpush1.msra.mxu0 0.0
    %3946 = vmatprep.subr.mxu0 0.0
    %3947 = vmatpush1.msra.mxu0 0.0
    %3948 = vmatprep.subr.mxu0 0.0
    %3949 = vmatpush1.msra.mxu0 0.0
    %3950 = vmatprep.subr.mxu0 0.0
    %3951 = vmatpush1.msra.mxu0 0.0
    %3952 = vmatprep.subr.mxu0 0.0
    %3953 = vmatpush1.msra.mxu0 0.0
    %3954 = vmatprep.subr.mxu0 0.0
    %3955 = vmatpush1.msra.mxu0 0.0
    %3956 = vmatprep.subr.mxu0 0.0
    %3957 = vmatpush1.msra.mxu0 0.0
    %3958 = vmatprep.mubr.f32.mxu0 0.0
    %3959 = vmatmul.mubr.f32.gmra.mrb[0].mxu0 %v3892
    %v3960 = vpop.f32.mrb[0].mxu0
    %v3961 = vadd.f32 %v3878, %v3960
    %v3962 = vpop.f32.mrb[0].mxu0
    %v3963 = vadd.f32 %v3882, %v3962
    %3964 = vdwg.mxu0
    %3965 = vmatprep.subr.mxu0 0.0
    %3966 = vmatpush1.msra.mxu0 %v3863
    %3967 = vmatprep.subr.mxu0 0.0
    %3968 = vmatpush1.msra.mxu0 %v3866
    %3969 = vmatprep.subr.mxu0 0.0
    %3970 = vmatpush1.msra.mxu0 %v3869
    %3971 = vmatprep.subr.mxu0 0.0
    %3972 = vmatpush1.msra.mxu0 %v3872
    %3973 = vmatprep.subr.mxu0 0.0
    %3974 = vmatpush1.msra.mxu0 0.0
    %3975 = vmatprep.subr.mxu0 0.0
    %3976 = vmatpush1.msra.mxu0 0.0
    %3977 = vmatprep.subr.mxu0 0.0
    %3978 = vmatpush1.msra.mxu0 0.0
    %3979 = vmatprep.subr.mxu0 0.0
    %3980 = vmatpush1.msra.mxu0 0.0
    %3981 = vmatprep.subr.mxu0 0.0
    %3982 = vmatpush1.msra.mxu0 0.0
    %3983 = vmatprep.subr.mxu0 0.0
    %3984 = vmatpush1.msra.mxu0 0.0
    %3985 = vmatprep.subr.mxu0 0.0
    %3986 = vmatpush1.msra.mxu0 0.0
    %3987 = vmatprep.subr.mxu0 0.0
    %3988 = vmatpush1.msra.mxu0 0.0
    %3989 = vmatprep.subr.mxu0 0.0
    %3990 = vmatpush1.msra.mxu0 0.0
    %3991 = vmatprep.subr.mxu0 0.0
    %3992 = vmatpush1.msra.mxu0 0.0
    %3993 = vmatprep.subr.mxu0 0.0
    %3994 = vmatpush1.msra.mxu0 0.0
    %3995 = vmatprep.subr.mxu0 0.0
    %3996 = vmatpush1.msra.mxu0 0.0
    %3997 = vmatprep.subr.mxu0 0.0
    %3998 = vmatpush1.msra.mxu0 0.0
    %3999 = vmatprep.subr.mxu0 0.0
    %4000 = vmatpush1.msra.mxu0 0.0
    %4001 = vmatprep.subr.mxu0 0.0
    %4002 = vmatpush1.msra.mxu0 0.0
    %4003 = vmatprep.subr.mxu0 0.0
    %4004 = vmatpush1.msra.mxu0 0.0
    %4005 = vmatprep.subr.mxu0 0.0
    %4006 = vmatpush1.msra.mxu0 0.0
    %4007 = vmatprep.subr.mxu0 0.0
    %4008 = vmatpush1.msra.mxu0 0.0
    %4009 = vmatprep.subr.mxu0 0.0
    %4010 = vmatpush1.msra.mxu0 0.0
    %4011 = vmatprep.subr.mxu0 0.0
    %4012 = vmatpush1.msra.mxu0 0.0
    %4013 = vmatprep.subr.mxu0 0.0
    %4014 = vmatpush1.msra.mxu0 0.0
    %4015 = vmatprep.subr.mxu0 0.0
    %4016 = vmatpush1.msra.mxu0 0.0
    %4017 = vmatprep.subr.mxu0 0.0
    %4018 = vmatpush1.msra.mxu0 0.0
    %4019 = vmatprep.subr.mxu0 0.0
    %4020 = vmatpush1.msra.mxu0 0.0
    %4021 = vmatprep.subr.mxu0 0.0
    %4022 = vmatpush1.msra.mxu0 0.0
    %4023 = vmatprep.subr.mxu0 0.0
    %4024 = vmatpush1.msra.mxu0 0.0
    %4025 = vmatprep.subr.mxu0 0.0
    %4026 = vmatpush1.msra.mxu0 0.0
    %4027 = vmatprep.subr.mxu0 0.0
    %4028 = vmatpush1.msra.mxu0 0.0
    %4029 = vmatprep.mubr.f32.mxu0 0.0
    %4030 = vmatmul.mubr.f32.gmra.mrb[0].mxu0 %v3892
    %v4031 = vpop.f32.mrb[0].mxu0
    %v4032 = vadd.f32 %v3886, %v4031
    %v4033 = vpop.f32.mrb[0].mxu0
    %4034 = vdwg.mxu0
    %v4035 = vmax.f32 %v3961, 0.0
    %v4036 = vand.u32 2147483647, %v3961
    %v4037 = vsub.f32 0.0, %v4036
    %v4038 = vmul.f32 %v4037, 1.442695
    %v4039 = vpow.pop %v4038
    %v4040 = vadd.f32 %v4039, 1.0
    %v4041 = vlog2.pop %v4040
    %v4042 = vmul.f32 %v4041, 0.6931472
    %v4043 = vadd.f32 %v4035, %v4042
    %v4044 = vadd.f32 %v4043, 1.0
    %v4045 = vmax.f32 %v3963, 0.0
    %v4046 = vand.u32 2147483647, %v3963
    %v4047 = vsub.f32 0.0, %v4046
    %v4048 = vmul.f32 %v4047, 1.442695
    %v4049 = vpow.pop %v4048
    %v4050 = vadd.f32 %v4049, 1.0
    %v4051 = vlog2.pop %v4050
    %v4052 = vmul.f32 %v4051, 0.6931472
    %v4053 = vadd.f32 %v4045, %v4052
    %v4054 = vadd.f32 %v4053, 1.0
    %4055 = vmax.xlane.f32.xlu0 %v4032
    %v4056 = vpop.xlane.xlu0 %4055
    %v4057 = vsub.f32 %v4032, %v4056
    %v4058 = vmul.f32 %v4057, 1.442695
    %v4059 = vpow.pop %v4058
    %4060 = vadd.xlane.f32.xlu0 %v4059
    %v4061 = vpop.xlane.xlu0 %4060
    %v4062 = vrcp.pop %v4061
    %v4063 = vmul.f32 %v4059, %v4062
    %4064 = vst [vmem:[#allocation19] sm:$0xff] %v4044
    %4065 = vst [vmem:[#allocation19 + $0x8] sm:$0xff] %v4054
    %4066 = vst [vmem:[#allocation19 + $0x10] sm:$0xff] %v4063
    // Predicated region
    $region102: #{tpu_custom_call.1} parent=1 // pred_check
      _
    $region103: #{tpu_custom_call.1} parent=1 // pred_check_branch
      %4068 = sbr.rel (0) target = $region105
    $region104: #{tpu_custom_call.1} parent=1 // pred_region
      %s4070 = ssub.s32 256, 256
      %4071 = vsyncadd [#allocation6], %s4070
      %s4072 = sshll.u32 [#allocation18], 4
      %s4073 = int_to_ptr.vmem [resolvable:$true] %s4072
      %4078 = dma.vmem_to_hbm [thread:$0]  %s4073, 256, %s17, [#allocation6], 128, 128, 8
    $region105: #{tpu_custom_call.1} parent=1 // pred_fallthru
      _
    // Predicated region
    $region106: #{tpu_custom_call.1} parent=1 // pred_check
      _
    $region107: #{tpu_custom_call.1} parent=1 // pred_check_branch
      %4080 = sbr.rel (0) target = $region109
    $region108: #{tpu_custom_call.1} parent=1 // pred_region
      %s4082 = ssub.s32 384, 384
      %4083 = vsyncadd [#allocation20], %s4082
      %s4085 = sshll.u32 [#allocation19], 4
      %s4086 = int_to_ptr.vmem [resolvable:$true] %s4085
      %4088 = dma.vmem_to_hbm [thread:$0]  %s4086, 384, %s18, [#allocation20]
    $region109: #{tpu_custom_call.1} parent=1 // pred_fallthru
      _
    // Predicated region
    $region110: #{tpu_custom_call.1} parent=1 // pred_check
      _
    $region111: #{tpu_custom_call.1} parent=1 // pred_check_branch
      %4090 = sbr.rel (0) target = $region113
    $region112: #{tpu_custom_call.1} parent=1 // pred_region
      %4091 = dma.done [#allocation6], 256
    $region113: #{tpu_custom_call.1} parent=1 // pred_fallthru
      _
    // Predicated region
    $region114: #{tpu_custom_call.1} parent=1 // pred_check
      _
    $region115: #{tpu_custom_call.1} parent=1 // pred_check_branch
      %4093 = sbr.rel (0) target = $region117
    $region116: #{tpu_custom_call.1} parent=1 // pred_region
      %4094 = dma.done [#allocation20], 384
    $region117: #{tpu_custom_call.1} parent=1 // pred_fallthru
      _
    %4095 = vsyncpa [#allocation5], 1
    %4096 = vsyncpa [#allocation8], 1
    %4097 = vsyncpa [#allocation11], 1
    %4098 = vsyncpa [#allocation14], 1
    %4099 = vsyncpa [#allocation17], 1
    %4100 = vsyncpa [#allocation6], 1
    %4101 = vsyncpa [#allocation20], 1

</llo_original>
